<compile_context>
chip_gen: v5e
topology: v5e:2x2
jax: 0.10.0
libtpu: 0.0.40
codegen_flags: <defaults>
</compile_context>

<pallas_src>
import jax
import jax.numpy as jnp
from jax.experimental import pallas as pl
from jax.experimental.pallas import tpu as pltpu


def _linear_kernel(x_ref, w_ref, b_ref, o_ref, acc_ref):
    # x_ref: (tm, tk)  w_ref: (tk, tn)  b_ref: (1, tn)  o_ref: (tm, tn)
    k = pl.program_id(2)

    partial = jnp.dot(x_ref[...], w_ref[...], preferred_element_type=jnp.float32)

    @pl.when(k == 0)
    def _():
        acc_ref[...] = partial

    @pl.when(k > 0)
    def _():
        acc_ref[...] += partial

    @pl.when(k == pl.num_programs(2) - 1)
    def _():
        o_ref[...] = (acc_ref[...] + b_ref[...].astype(jnp.float32)).astype(o_ref.dtype)


def _round_up(v, m):
    return -(-v // m) * m


def slinear(x, weight, bias, *, tm_target=512, tn_target=512, tk_target=512):
    """y = x @ weight.T + bias  (torch.nn.Linear semantics).

    x:      (..., dim_in)
    weight: (dim_out, dim_in)   (PyTorch layout)
    bias:   (dim_out,)
    """
    dim_out, dim_in = weight.shape
    orig_lead = x.shape[:-1]
    x2 = x.reshape(-1, dim_in)
    M = x2.shape[0]

    # ---- small-shape fast path: per-grid-step overhead dwarfs the matmul ----
    flops = 2 * M * dim_in * dim_out
    if M * dim_out <= 8 * 128 or flops < (1 << 20):
        y = jnp.dot(x2, weight.T, preferred_element_type=jnp.float32) + bias
        return y.astype(x.dtype).reshape(*orig_lead, dim_out)

    # ---- tile selection (block dims: multiple of (8,128) or full extent) ----
    tm = M if M <= tm_target else tm_target                       # full dim or mult of 8
    tn = dim_out if dim_out <= tn_target else tn_target           # full dim or mult of 128
    tk = tk_target if dim_in >= tk_target else _round_up(dim_in, 128)

    # v7x megacore: give both TensorCores work when the grid would be (1,1,K).
    if (pl.cdiv(M, tm) == 1 and pl.cdiv(dim_out, tn) == 1
            and dim_out >= 256 and dim_out % 256 == 0):
        tn = dim_out // 2

    # Zero-pad K (reduction stays exact; garbage never enters the accumulator).
    K_pad = _round_up(dim_in, tk)
    x_p = x2 if K_pad == dim_in else jnp.pad(x2, ((0, 0), (0, K_pad - dim_in)))
    # One-time weight transpose (dim_in, dim_out); callers that reuse the weight
    # should pre-store it transposed.  Keeps the inner loop free of XLU work.
    w_t = weight.T
    w_p = w_t if K_pad == dim_in else jnp.pad(w_t, ((0, K_pad - dim_in), (0, 0)))
    b2 = bias.reshape(1, dim_out)

    grid = (pl.cdiv(M, tm), pl.cdiv(dim_out, tn), K_pad // tk)

    itemsize = x_p.dtype.itemsize
    bytes_accessed = (x_p.size * itemsize + w_p.size * w_p.dtype.itemsize
                      + b2.size * b2.dtype.itemsize + M * dim_out * itemsize)

    # Explicit VMEM budget: raises v5e's 16 MiB default, within v7x's 64 MiB/TC.
    vmem_limit_bytes = 32 * 1024 * 1024

    out = pl.pallas_call(
        _linear_kernel,
        out_shape=jax.ShapeDtypeStruct((M, dim_out), x.dtype),
        grid_spec=pltpu.PrefetchScalarGridSpec(
            num_scalar_prefetch=0,
            grid=grid,
            in_specs=[
                pl.BlockSpec((tm, tk), lambda i, j, k: (i, k)),   # activations
                pl.BlockSpec((tk, tn), lambda i, j, k: (k, j)),   # weight (in, out)
                pl.BlockSpec((1, tn), lambda i, j, k: (0, j)),    # bias row
            ],
            out_specs=pl.BlockSpec((tm, tn), lambda i, j, k: (i, j)),
            scratch_shapes=[pltpu.VMEM((tm, tn), jnp.float32)],
        ),
        compiler_params=pltpu.CompilerParams(
            dimension_semantics=("parallel", "parallel", "arbitrary"),
            vmem_limit_bytes=vmem_limit_bytes),
        cost_estimate=pl.CostEstimate(
            flops=2 * M * K_pad * dim_out, transcendentals=0,
            bytes_accessed=bytes_accessed),
    )(x_p, w_p, b2)

    return out.reshape(*orig_lead, dim_out)


def fc_make_param(w, weight, bias):
    """Pallas equivalent of fc_make_param.forward:
    param = Linear(dim_latent -> 2*n_channel)(w).unsqueeze(2).unsqueeze(3)."""
    y = slinear(w, weight, bias)          # (batch, 2 * n_channel)
    return y[..., None, None]             # (batch, 2 * n_channel, 1, 1)


if __name__ == "__main__":
    key = jax.random.PRNGKey(0)

    # --- Case 1: the actual fc_make_param shapes (tiny -> XLA fast path) -----
    dim_latent, n_channel, batch = 32, 16, 2
    dim_out = 2 * n_channel
    k1, k2, key = jax.random.split(key, 3)

    # nn.Linear-style weight init: U(-1/sqrt(dim_in), 1/sqrt(dim_in)).
    bound = 1.0 / (dim_latent ** 0.5)
    weight = jax.random.uniform(k2, (dim_out, dim_latent), jnp.float32, -bound, bound)
    # fc_make_param bias init: first n_channel entries -> 1, rest -> 0.
    bias = jnp.concatenate([jnp.ones((n_channel,), jnp.float32),
                            jnp.zeros((n_channel,), jnp.float32)])
    w_in = jax.random.normal(k1, (batch, dim_latent), jnp.float32)

    param = fc_make_param(w_in, weight, bias)
    jax.block_until_ready(param)

    ref = (w_in @ weight.T + bias)[..., None, None]
    assert param.shape == (batch, dim_out, 1, 1)
    assert jnp.allclose(param, ref, atol=1e-5, rtol=1e-5), "tiny-shape mismatch"

    # --- Case 2: larger shape that exercises the Pallas kernel path ----------
    # Ragged M (640 vs tm=512), padded K (1100 -> 1536, 3 K-steps), full-dim N tile.
    M2, K2, N2 = 640, 1100, 384
    k3, k4, k5 = jax.random.split(key, 3)
    x_big = jax.random.normal(k3, (M2, K2), jnp.float32)
    w_big = jax.random.normal(k4, (N2, K2), jnp.float32) * 0.05
    b_big = jax.random.normal(k5, (N2,), jnp.float32)

    y_big = slinear(x_big, w_big, b_big)
    jax.block_until_ready(y_big)

    ref_big = x_big @ w_big.T + b_big
    assert y_big.shape == (M2, N2)
    assert jnp.allclose(y_big, ref_big, rtol=2e-3, atol=2e-2), (
        "pallas-path mismatch, max abs err = "
        + str(float(jnp.max(jnp.abs(y_big - ref_big)))))

    print("KERNEL_OK")
</pallas_src>

<mosaic_0001>
module attributes {stable_mosaic.version = 11 : i64} {
  func.func @_linear_kernel(%arg0: i32, %arg1: i32, %arg2: i32, %arg3: memref<512x512xf32, #tpu.memory_space<vmem>>, %arg4: memref<512x384xf32, #tpu.memory_space<vmem>>, %arg5: memref<1x384xf32, #tpu.memory_space<vmem>>, %arg6: memref<512x384xf32, #tpu.memory_space<vmem>>, %arg7: memref<512x384xf32, #tpu.memory_space<vmem>>) attributes {dimension_semantics = [#tpu.dimension_semantics<parallel>, #tpu.dimension_semantics<parallel>, #tpu.dimension_semantics<arbitrary>], iteration_bounds = array<i64: 2, 1, 3>, scalar_prefetch = 0 : i64, scratch_operands = 1 : i64, tpu.core_type = #tpu.core_type<tc>, window_params = [{transform_indices = @transform_0, window_bounds = array<i64: 512, 512>}, {transform_indices = @transform_1, window_bounds = array<i64: 512, 384>}, {transform_indices = @transform_2, window_bounds = array<i64: 1, 384>}, {transform_indices = @transform_3, window_bounds = array<i64: 512, 384>}]} {
    %c0 = arith.constant 0 : index
    %c0_0 = arith.constant 0 : index
    %0 = vector.load %arg3[%c0, %c0_0] : memref<512x512xf32, #tpu.memory_space<vmem>>, vector<512x512xf32>
    %c0_1 = arith.constant 0 : index
    %c0_2 = arith.constant 0 : index
    %1 = vector.load %arg4[%c0_1, %c0_2] : memref<512x384xf32, #tpu.memory_space<vmem>>, vector<512x384xf32>
    %cst = arith.constant dense<0.000000e+00> : vector<512x384xf32>
    %2 = tpu.matmul %0, %1, %cst {dimension_numbers = #tpu.dot_dimension_numbers<[1], [0], [0], [1], [0, 0, 1, 1], [], []>} : vector<512x512xf32>, vector<512x384xf32>, vector<512x384xf32> -> vector<512x384xf32>
    %c0_i32 = arith.constant 0 : i32
    %3 = arith.cmpi eq, %arg2, %c0_i32 : i32
    %4 = arith.extui %3 : i1 to i32
    %c0_i32_3 = arith.constant 0 : i32
    %5 = arith.cmpi ne, %4, %c0_i32_3 : i32
    scf.if %5 {
      %c0_7 = arith.constant 0 : index
      %c0_8 = arith.constant 0 : index
      %12 = vector.load %arg7[%c0_7, %c0_8] : memref<512x384xf32, #tpu.memory_space<vmem>>, vector<512x384xf32>
      tpu.vector_store %arg7[%c0_7, %c0_8], %2 {strides = array<i32>} : memref<512x384xf32, #tpu.memory_space<vmem>>, vector<512x384xf32>,
    } else {
    }
    %c0_i32_4 = arith.constant 0 : i32
    %6 = arith.cmpi sgt, %arg2, %c0_i32_4 : i32
    %7 = arith.extui %6 : i1 to i32
    %c0_i32_5 = arith.constant 0 : i32
    %8 = arith.cmpi ne, %7, %c0_i32_5 : i32
    scf.if %8 {
      %c0_7 = arith.constant 0 : index
      %c0_8 = arith.constant 0 : index
      %12 = vector.load %arg7[%c0_7, %c0_8] : memref<512x384xf32, #tpu.memory_space<vmem>>, vector<512x384xf32>
      %13 = arith.addf %12, %2 : vector<512x384xf32>
      %c0_9 = arith.constant 0 : index
      %c0_10 = arith.constant 0 : index
      %14 = vector.load %arg7[%c0_9, %c0_10] : memref<512x384xf32, #tpu.memory_space<vmem>>, vector<512x384xf32>
      tpu.vector_store %arg7[%c0_9, %c0_10], %13 {strides = array<i32>} : memref<512x384xf32, #tpu.memory_space<vmem>>, vector<512x384xf32>,
    } else {
    }
    %c2_i32 = arith.constant 2 : i32
    %9 = arith.cmpi eq, %arg2, %c2_i32 : i32
    %10 = arith.extui %9 : i1 to i32
    %c0_i32_6 = arith.constant 0 : i32
    %11 = arith.cmpi ne, %10, %c0_i32_6 : i32
    scf.if %11 {
      %c0_7 = arith.constant 0 : index
      %c0_8 = arith.constant 0 : index
      %12 = vector.load %arg7[%c0_7, %c0_8] : memref<512x384xf32, #tpu.memory_space<vmem>>, vector<512x384xf32>
      %c0_9 = arith.constant 0 : index
      %c0_10 = arith.constant 0 : index
      %13 = vector.load %arg5[%c0_9, %c0_10] : memref<1x384xf32, #tpu.memory_space<vmem>>, vector<1x384xf32>
      %14 = vector.broadcast %13 : vector<1x384xf32> to vector<512x384xf32>
      %15 = arith.addf %12, %14 : vector<512x384xf32>
      %c0_11 = arith.constant 0 : index
      %c0_12 = arith.constant 0 : index
      %16 = vector.load %arg6[%c0_11, %c0_12] : memref<512x384xf32, #tpu.memory_space<vmem>>, vector<512x384xf32>
      tpu.vector_store %arg6[%c0_11, %c0_12], %15 {strides = array<i32>} : memref<512x384xf32, #tpu.memory_space<vmem>>, vector<512x384xf32>,
    } else {
    }
    return
  }
  func.func @transform_0(%arg0: i32, %arg1: i32, %arg2: i32) -> (i32, i32) {
    %c0_i32 = arith.constant 0 : i32
    return %arg0, %arg2 : i32, i32
  }
  func.func @transform_1(%arg0: i32, %arg1: i32, %arg2: i32) -> (i32, i32) {
    %c0_i32 = arith.constant 0 : i32
    return %arg2, %arg1 : i32, i32
  }
  func.func @transform_2(%arg0: i32, %arg1: i32, %arg2: i32) -> (i32, i32) {
    %c0_i32 = arith.constant 0 : i32
    %c0_i32_0 = arith.constant 0 : i32
    return %c0_i32, %arg1 : i32, i32
  }
  func.func @transform_3(%arg0: i32, %arg1: i32, %arg2: i32) -> (i32, i32) {
    %c0_i32 = arith.constant 0 : i32
    return %arg0, %arg1 : i32, i32
  }
}

</mosaic_0001>

<llo_original>
// kernel: tpu_custom_call.1
$region0: #{tpu_custom_call.1}
  #allocation0 [shape = 'u32[]', space=smem, size = 0x4, offset = 0x4, fixed_abs, tag = 'smem constant byte address 0x4 - core index']
  #allocation1 [shape = 'u32[72,128]{1,0:T(1,128)}', space=vmem, size = 0x9000, scoped, tag = 'internal scratch']
  #allocation2 [shape = 'f32[512,384]{1,0:T(8,128)}', space=vmem, size = 0xc0000, scoped, tag = 'scratch operand']
  %s0 = inlined_call_operand.hbm [shape: f32[640,1536], index: 0, kind: input, shape index: {}]
  %s1 = inlined_call_operand.hbm [shape: f32[1536,384], index: 1, kind: input, shape index: {}]
  %s2 = inlined_call_operand.hbm [shape: f32[1,384], index: 2, kind: input, shape index: {}]
  %s3 = inlined_call_operand.hbm [shape: f32[640,384], index: 3, kind: output, shape index: {}]
  %s4 = sld [smem:[#allocation0]]
  $region69: #{tpu_custom_call.1} parent=0
    _
  %s6 = ssub.s32 1, %s4
  %s7 = scalar_select 0, %s6, %s4
  $region1: #{tpu_custom_call.1} parent=0
    #allocation3 [shape = 'u8[2097152]{0}', space=vmem, size = 0x200000, scoped, tag = 'input window, operand 0']
    #allocation4 [shape = 's32[2]{0}', space=sflag, size = 0x8, scoped, tag = 'scoped memory for tpu_custom_call.1']
    #allocation5 [shape = 's32[2]{0}', space=sflag, size = 0x8, scoped, tag = 'scoped memory for tpu_custom_call.1']
    #allocation6 [shape = 'u8[1572864]{0}', space=vmem, size = 0x180000, scoped, tag = 'input window, operand 1']
    #allocation7 [shape = 's32[2]{0}', space=sflag, size = 0x8, scoped, tag = 'scoped memory for tpu_custom_call.1']
    #allocation8 [shape = 'u8[1536]{0}', space=vmem, size = 0x800, scoped, tag = 'input window, operand 2, single buffered']
    #allocation9 [shape = 'u8[1572864]{0}', space=vmem, size = 0x180000, scoped, tag = 'output window, operand 0']
    %8 = vsyncpa [#allocation4], 0
    %s9 = scalar_lea.sflag [#allocation4], 1
    %10 = vsyncpa %s9, 0
    %11 = vsyncpa [#allocation7], 0
    %s12 = scalar_lea.sflag [#allocation7], 1
    %13 = vsyncpa %s12, 0
    %14 = vsyncpa [#allocation5], 0
    %s15 = scalar_lea.sflag [#allocation5], 1
    %16 = vsyncpa %s15, 0
    loop: start=0, step=1, limit=8
    $region2: #{tpu_custom_call.1} parent=1 // loop_pre_header
      _
    $region3: #{tpu_custom_call.1} parent=1 // loop_header
      %s18 = sphi 0, %s22
      %p19 = scmp.ge.s32.totalorder %s18, 8
      %s25 = sphi 0, %s44
      %s26 = sphi 0, %s40
      %s27 = sphi 0, %s36
      %s28 = sphi 0, %s25
      %s29 = sphi 0, %s26
      %s30 = sphi 0, %s27
      %s31 = sphi 0, %s28
      %s32 = sphi 0, %s29
      %s33 = sphi 0, %s30
      %s49 = sphi 0, %s51
      %s52 = sphi 0, %s49
      %s53 = sphi 0, %s52
      %s69 = sphi 0, %s53
      %s77 = sphi 0, %s79
      %s80 = sphi 0, %s77
      %s81 = sphi 0, %s80
      %s97 = sphi 0, %s81
      %s103 = sphi 0, %s105
      %s106 = sphi 0, %s103
      %s107 = sphi 0, %s106
      %s123 = sphi 0, %s107
      %s131 = sphi 0, %s133
      %s134 = sphi 0, %s131
      %s135 = sphi 0, %s134
      %s151 = sphi 0, %s135
    $region4: #{tpu_custom_call.1} parent=1 // loop_header_branch
      %21 = sbr.rel (%p19) target = $region8
    $region5: #{tpu_custom_call.1} parent=1 // loop_body
      %s23 = ssub.s32 %s18, 1
      %s24 = ssub.s32 %s18, 2
      %s34 = sadd.s32 1, %s27
      %p35 = scmp.ge.s32.totalorder %s34, 3
      %s36 = scalar_select %p35, 0, %s34
      %s37 = sadd.s32 1, %s26
      %s38 = scalar_select %p35, %s37, %s26
      %p39 = scmp.ge.s32.totalorder %s38, 1
      %s40 = scalar_select %p39, 0, %s38
      %s41 = sadd.s32 1, %s25
      %s42 = scalar_select %p39, %s41, %s25
      %p43 = scmp.ge.s32.totalorder %s42, 2
      %s44 = scalar_select %p43, 0, %s42
      %s45 = ssub.s32 %s25, %s44
      %s46 = ssub.s32 %s27, %s36
      %s47 = sor.u32 %s45, %s46
      %p48 = scmp.eq.s32.totalorder %s47, 0
      %s50 = sadd.s32 %s49, 1
      %s51 = scalar_select %p48, %s49, %s50
      %p54 = pneg %p48
      %p55 = scmp.eq.s32.totalorder %s18, 5
      %p56 = por %p54, %p55
      %p57 = scmp.ne.s32.totalorder %s49, %s52
      %p58 = scmp.eq.s32.totalorder %s18, 0
      %p59 = por %p57, %p58
      %p60 = scmp.ne.s32.totalorder %s49, %s52
      %p61 = scmp.eq.s32.totalorder %s23, 5
      %p62 = por %p60, %p61
      %p63 = scmp.ne.s32.totalorder %s52, %s53
      %p64 = scmp.eq.s32.totalorder %s23, 0
      %p65 = por %p63, %p64
      %p66 = scmp.ne.s32.totalorder %s52, %s53
      %p67 = scmp.eq.s32.totalorder %s24, 5
      %p68 = por %p66, %p67
      %p70 = scmp.ne.s32.totalorder %s53, %s69
      %p71 = scmp.eq.s32.totalorder %s24, 0
      %p72 = por %p70, %p71
      %s73 = ssub.s32 %s27, %s36
      %s74 = ssub.s32 %s26, %s40
      %s75 = sor.u32 %s73, %s74
      %p76 = scmp.eq.s32.totalorder %s75, 0
      %s78 = sadd.s32 %s77, 1
      %s79 = scalar_select %p76, %s77, %s78
      %p82 = pneg %p76
      %p83 = scmp.eq.s32.totalorder %s18, 5
      %p84 = por %p82, %p83
      %p85 = scmp.ne.s32.totalorder %s77, %s80
      %p86 = scmp.eq.s32.totalorder %s18, 0
      %p87 = por %p85, %p86
      %p88 = scmp.ne.s32.totalorder %s77, %s80
      %p89 = scmp.eq.s32.totalorder %s23, 5
      %p90 = por %p88, %p89
      %p91 = scmp.ne.s32.totalorder %s80, %s81
      %p92 = scmp.eq.s32.totalorder %s23, 0
      %p93 = por %p91, %p92
      %p94 = scmp.ne.s32.totalorder %s80, %s81
      %p95 = scmp.eq.s32.totalorder %s24, 5
      %p96 = por %p94, %p95
      %p98 = scmp.ne.s32.totalorder %s81, %s97
      %p99 = scmp.eq.s32.totalorder %s24, 0
      %p100 = por %p98, %p99
      %s101 = ssub.s32 %s26, %s40
      %p102 = scmp.eq.s32.totalorder %s101, 0
      %s104 = sadd.s32 %s103, 1
      %s105 = scalar_select %p102, %s103, %s104
      %p108 = pneg %p102
      %p109 = scmp.eq.s32.totalorder %s18, 5
      %p110 = por %p108, %p109
      %p111 = scmp.ne.s32.totalorder %s103, %s106
      %p112 = scmp.eq.s32.totalorder %s18, 0
      %p113 = por %p111, %p112
      %p114 = scmp.ne.s32.totalorder %s103, %s106
      %p115 = scmp.eq.s32.totalorder %s23, 5
      %p116 = por %p114, %p115
      %p117 = scmp.ne.s32.totalorder %s106, %s107
      %p118 = scmp.eq.s32.totalorder %s23, 0
      %p119 = por %p117, %p118
      %p120 = scmp.ne.s32.totalorder %s106, %s107
      %p121 = scmp.eq.s32.totalorder %s24, 5
      %p122 = por %p120, %p121
      %p124 = scmp.ne.s32.totalorder %s107, %s123
      %p125 = scmp.eq.s32.totalorder %s24, 0
      %p126 = por %p124, %p125
      %s127 = ssub.s32 %s25, %s44
      %s128 = ssub.s32 %s26, %s40
      %s129 = sor.u32 %s127, %s128
      %p130 = scmp.eq.s32.totalorder %s129, 0
      %s132 = sadd.s32 %s131, 1
      %s133 = scalar_select %p130, %s131, %s132
      %p136 = pneg %p130
      %p137 = scmp.eq.s32.totalorder %s18, 5
      %p138 = por %p136, %p137
      %p139 = scmp.ne.s32.totalorder %s131, %s134
      %p140 = scmp.eq.s32.totalorder %s18, 0
      %p141 = por %p139, %p140
      %p142 = scmp.ne.s32.totalorder %s131, %s134
      %p143 = scmp.eq.s32.totalorder %s23, 5
      %p144 = por %p142, %p143
      %p145 = scmp.ne.s32.totalorder %s134, %s135
      %p146 = scmp.eq.s32.totalorder %s23, 0
      %p147 = por %p145, %p146
      %p148 = scmp.ne.s32.totalorder %s134, %s135
      %p149 = scmp.eq.s32.totalorder %s24, 5
      %p150 = por %p148, %p149
      %p152 = scmp.ne.s32.totalorder %s135, %s151
      %p153 = scmp.eq.s32.totalorder %s24, 0
      %p154 = por %p152, %p153
      %p155 = scmp.le.s32.totalorder 1, %s18
      %p156 = scmp.lt.s32.totalorder %s18, 7
      %p157 = pnand %p155, %p156
      %p158 = pneg %p157
      // Predicated region
      $region9: #{tpu_custom_call.1} parent=5 // pred_check
        _
      $region10: #{tpu_custom_call.1} parent=5 // pred_check_branch
        %160 = sbr.rel (%p157) target = $region12
      $region11: #{tpu_custom_call.1} parent=5 // pred_region
        %s161 = ssub.s32 %s18, 1
        // Predicated region
        $region13: #{tpu_custom_call.1} parent=11 // pred_check
          %p162 = pneg %p119
        $region14: #{tpu_custom_call.1} parent=11 // pred_check_branch
          %164 = sbr.rel (%p162) target = $region16
        $region15: #{tpu_custom_call.1} parent=11 // pred_region
          %s165 = smul.u32 3, %s29
          %167 = vsyncadd [#allocation7], 0
          %s168 = scalar_lea.hbm %s2, %s165
          %s170 = sshll.u32 %s168, 4
          %s171 = int_to_ptr.hbm [resolvable:$true] %s170
          %s172 = sshll.u32 [#allocation8], 4
          %s173 = int_to_ptr.vmem [resolvable:$true] %s172
          %175 = dma.hbm_to_vmem [thread:$0]  %s171, 48, %s173, [#allocation7]
        $region16: #{tpu_custom_call.1} parent=11 // pred_fallthru
          _
      $region12: #{tpu_custom_call.1} parent=5 // pred_fallthru
        _
      %p176 = scmp.lt.s32.totalorder %s18, 6
      // Predicated region
      $region17: #{tpu_custom_call.1} parent=5 // pred_check
        %p177 = pneg %p176
      $region18: #{tpu_custom_call.1} parent=5 // pred_check_branch
        %179 = sbr.rel (%p177) target = $region20
      $region19: #{tpu_custom_call.1} parent=5 // pred_region
        // Predicated region
        $region21: #{tpu_custom_call.1} parent=19 // pred_check
          %p180 = pneg %p59
        $region22: #{tpu_custom_call.1} parent=19 // pred_check_branch
          %182 = sbr.rel (%p180) target = $region24
        $region23: #{tpu_custom_call.1} parent=19 // pred_region
          %s183 = sand.u32 %s49, 1
          %s184 = scalar_lea.sflag [#allocation4], %s183
          %s185 = sand.u32 %s49, 1
          %s186 = smul.addr %s185, 2048
          %s187 = scalar_lea.vmem [#allocation3], %s186
          %s188 = smul.u32 64, %s25
          %s189 = smul.u32 4, %s27
          %s190 = ssub.s32 80, %s188
          %p191 = scmp.lt.s32.totalorder %s190, 64
          %s192 = scalar_select %p191, %s190, 64
          %s193 = smul.u32 8, %s192
          %s194 = smul.u32 %s193, 4
          %s195 = ssub.s32 2048, %s194
          %s196 = sshll.u32 %s195, 4
          %197 = vsyncadd %s184, %s196
          %p198 = scmp.ne.s32.totalorder 0, %s194
          %s199 = smul.addr %s188, 12
          %s200 = sadd.s32 %s189, %s199
          %s201 = smul.addr %s200, 8
          %s202 = scalar_lea.hbm %s0, %s201
          %s203 = smul.u32 32, %s192
          %s204 = sshll.u32 %s202, 4
          %s205 = int_to_ptr.hbm [resolvable:$true] %s204
          %s206 = sshll.u32 %s187, 4
          %s207 = int_to_ptr.vmem [resolvable:$true] %s206
          %s208 = sshll.u32 %s203, 4
          %212 = dma.hbm_to_vmem [thread:$0]  (%p198), %s205, %s208, %s207, %s184, 1536, 512, 32
        $region24: #{tpu_custom_call.1} parent=19 // pred_fallthru
          _
        // Predicated region
        $region25: #{tpu_custom_call.1} parent=19 // pred_check
          %p213 = pneg %p87
        $region26: #{tpu_custom_call.1} parent=19 // pred_check_branch
          %215 = sbr.rel (%p213) target = $region28
        $region27: #{tpu_custom_call.1} parent=19 // pred_region
          %s216 = sand.u32 %s18, 1
          %s217 = scalar_lea.sflag [#allocation7], %s216
          %s218 = sand.u32 %s77, 1
          %s219 = smul.addr %s218, 1536
          %s220 = scalar_lea.vmem [#allocation6], %s219
          %s221 = smul.u32 64, %s27
          %s222 = smul.u32 3, %s26
          %224 = vsyncadd %s217, 0
          %s225 = smul.addr %s221, 3
          %s226 = sadd.s32 %s222, %s225
          %s227 = smul.addr %s226, 8
          %s228 = scalar_lea.hbm %s1, %s227
          %s229 = sshll.u32 %s228, 4
          %s230 = int_to_ptr.hbm [resolvable:$true] %s229
          %s231 = sshll.u32 %s220, 4
          %s232 = int_to_ptr.vmem [resolvable:$true] %s231
          %237 = dma.hbm_to_vmem [thread:$0]  %s230, 24576, %s232, %s217, 384, 384, 24
        $region28: #{tpu_custom_call.1} parent=19 // pred_fallthru
          _
      $region20: #{tpu_custom_call.1} parent=5 // pred_fallthru
        _
      %p238 = scmp.le.s32.totalorder 1, %s18
      %p239 = scmp.lt.s32.totalorder %s18, 7
      %p240 = pnand %p238, %p239
      %p241 = pneg %p240
      // Predicated region
      $region29: #{tpu_custom_call.1} parent=5 // pred_check
        _
      $region30: #{tpu_custom_call.1} parent=5 // pred_check_branch
        %243 = sbr.rel (%p240) target = $region32
      $region31: #{tpu_custom_call.1} parent=5 // pred_region
        %s244 = ssub.s32 %s18, 1
        %s245 = sand.u32 %s52, 1
        %s246 = scalar_lea.sflag [#allocation4], %s245
        %s247 = sand.u32 %s52, 1
        %s248 = smul.addr %s247, 2048
        %s249 = scalar_lea.vmem [#allocation3], %s248
        // Predicated region
        $region33: #{tpu_custom_call.1} parent=31 // pred_check
          %p250 = pneg %p65
        $region34: #{tpu_custom_call.1} parent=31 // pred_check_branch
          %252 = sbr.rel (%p250) target = $region36
        $region35: #{tpu_custom_call.1} parent=31 // pred_region
          %254 = dma.done %s246, 32768
        $region36: #{tpu_custom_call.1} parent=31 // pred_fallthru
          _
        %s255 = sand.u32 %s23, 1
        %s256 = scalar_lea.sflag [#allocation7], %s255
        %s257 = sand.u32 %s80, 1
        %s258 = smul.addr %s257, 1536
        %s259 = scalar_lea.vmem [#allocation6], %s258
        // Predicated region
        $region37: #{tpu_custom_call.1} parent=31 // pred_check
          %p260 = pneg %p93
        $region38: #{tpu_custom_call.1} parent=31 // pred_check_branch
          %262 = sbr.rel (%p260) target = $region40
        $region39: #{tpu_custom_call.1} parent=31 // pred_region
          %264 = dma.done %s256, 24576
        $region40: #{tpu_custom_call.1} parent=31 // pred_fallthru
          _
        // Predicated region
        $region41: #{tpu_custom_call.1} parent=31 // pred_check
          %p265 = pneg %p119
        $region42: #{tpu_custom_call.1} parent=31 // pred_check_branch
          %267 = sbr.rel (%p265) target = $region44
        $region43: #{tpu_custom_call.1} parent=31 // pred_region
          %269 = dma.done [#allocation7], 48
        $region44: #{tpu_custom_call.1} parent=31 // pred_fallthru
          _
        %s270 = sand.u32 %s52, 1
        %s271 = scalar_lea.sflag [#allocation4], %s270
        %s272 = sand.u32 %s52, 1
        %s273 = smul.addr %s272, 2048
        %s274 = scalar_lea.vmem [#allocation3], %s273
        %p275 = pneg %p65
        %p276 = pneg %p62
        %s277 = sand.u32 %s23, 1
        %s278 = scalar_lea.sflag [#allocation7], %s277
        %s279 = sand.u32 %s80, 1
        %s280 = smul.addr %s279, 1536
        %s281 = scalar_lea.vmem [#allocation6], %s280
        %p282 = pneg %p93
        %p283 = pneg %p90
        %p284 = pneg %p119
        %p285 = pneg %p116
        %p286 = pneg %p147
        %p287 = pneg %p144
        %s288 = sand.u32 %s134, 1
        %s289 = scalar_lea.sflag [#allocation5], %s288
        %s290 = sand.u32 %s134, 1
        %s291 = smul.addr %s290, 1536
        %s292 = scalar_lea.vmem [#allocation9], %s291
        %s293 = smul.u32 64, %s28
        %s294 = smul.u32 4, %s30
        %s295 = ssub.s32 80, %s293
        %p296 = scmp.lt.s32.totalorder %s295, 64
        %s297 = scalar_select %p296, %s295, 64
        %s298 = smul.u32 8, %s297
        %s299 = smul.u32 %s298, 4
        %s300 = smul.u32 64, %s30
        %s301 = smul.u32 3, %s29
        %s302 = smul.u32 3, %s29
        %s303 = smul.u32 64, %s28
        %s304 = smul.u32 3, %s29
        %s305 = ssub.s32 80, %s303
        %p306 = scmp.lt.s32.totalorder %s305, 64
        %s307 = scalar_select %p306, %s305, 64
        %s308 = smul.u32 8, %s307
        %s309 = smul.u32 %s308, 3
        %v310 = vld [vmem:[%s249] sm:$0xff]
        %v311 = vld [vmem:[%s249 + $0x8] sm:$0xff]
        %v312 = vld [vmem:[%s249 + $0x10] sm:$0xff]
        %v313 = vld [vmem:[%s249 + $0x18] sm:$0xff]
        %v314 = vld [vmem:[%s249 + $0x20] sm:$0xff]
        %v315 = vld [vmem:[%s249 + $0x28] sm:$0xff]
        %v316 = vld [vmem:[%s249 + $0x30] sm:$0xff]
        %v317 = vld [vmem:[%s249 + $0x38] sm:$0xff]
        %v318 = vld [vmem:[%s249 + $0x40] sm:$0xff]
        %v319 = vld [vmem:[%s249 + $0x48] sm:$0xff]
        %v320 = vld [vmem:[%s249 + $0x50] sm:$0xff]
        %v321 = vld [vmem:[%s249 + $0x58] sm:$0xff]
        %v322 = vld [vmem:[%s249 + $0x60] sm:$0xff]
        %v323 = vld [vmem:[%s249 + $0x68] sm:$0xff]
        %v324 = vld [vmem:[%s249 + $0x70] sm:$0xff]
        %v325 = vld [vmem:[%s249 + $0x78] sm:$0xff]
        %v326 = vld [vmem:[%s249 + $0x80] sm:$0xff]
        %v327 = vld [vmem:[%s249 + $0x88] sm:$0xff]
        %v328 = vld [vmem:[%s249 + $0x90] sm:$0xff]
        %v329 = vld [vmem:[%s249 + $0x98] sm:$0xff]
        %v330 = vld [vmem:[%s249 + $0xa0] sm:$0xff]
        %v331 = vld [vmem:[%s249 + $0xa8] sm:$0xff]
        %v332 = vld [vmem:[%s249 + $0xb0] sm:$0xff]
        %v333 = vld [vmem:[%s249 + $0xb8] sm:$0xff]
        %v334 = vld [vmem:[%s249 + $0xc0] sm:$0xff]
        %v335 = vld [vmem:[%s249 + $0xc8] sm:$0xff]
        %v336 = vld [vmem:[%s249 + $0xd0] sm:$0xff]
        %v337 = vld [vmem:[%s249 + $0xd8] sm:$0xff]
        %v338 = vld [vmem:[%s249 + $0xe0] sm:$0xff]
        %v339 = vld [vmem:[%s249 + $0xe8] sm:$0xff]
        %v340 = vld [vmem:[%s249 + $0xf0] sm:$0xff]
        %v341 = vld [vmem:[%s249 + $0xf8] sm:$0xff]
        %v342 = vld [vmem:[%s249 + $0x100] sm:$0xff]
        %v343 = vld [vmem:[%s249 + $0x108] sm:$0xff]
        %v344 = vld [vmem:[%s249 + $0x110] sm:$0xff]
        %v345 = vld [vmem:[%s249 + $0x118] sm:$0xff]
        %v346 = vld [vmem:[%s249 + $0x120] sm:$0xff]
        %v347 = vld [vmem:[%s249 + $0x128] sm:$0xff]
        %v348 = vld [vmem:[%s249 + $0x130] sm:$0xff]
        %v349 = vld [vmem:[%s249 + $0x138] sm:$0xff]
        %v350 = vld [vmem:[%s249 + $0x140] sm:$0xff]
        %v351 = vld [vmem:[%s249 + $0x148] sm:$0xff]
        %v352 = vld [vmem:[%s249 + $0x150] sm:$0xff]
        %v353 = vld [vmem:[%s249 + $0x158] sm:$0xff]
        %v354 = vld [vmem:[%s249 + $0x160] sm:$0xff]
        %v355 = vld [vmem:[%s249 + $0x168] sm:$0xff]
        %v356 = vld [vmem:[%s249 + $0x170] sm:$0xff]
        %v357 = vld [vmem:[%s249 + $0x178] sm:$0xff]
        %v358 = vld [vmem:[%s249 + $0x180] sm:$0xff]
        %v359 = vld [vmem:[%s249 + $0x188] sm:$0xff]
        %v360 = vld [vmem:[%s249 + $0x190] sm:$0xff]
        %v361 = vld [vmem:[%s249 + $0x198] sm:$0xff]
        %v362 = vld [vmem:[%s249 + $0x1a0] sm:$0xff]
        %v363 = vld [vmem:[%s249 + $0x1a8] sm:$0xff]
        %v364 = vld [vmem:[%s249 + $0x1b0] sm:$0xff]
        %v365 = vld [vmem:[%s249 + $0x1b8] sm:$0xff]
        %v366 = vld [vmem:[%s249 + $0x1c0] sm:$0xff]
        %v367 = vld [vmem:[%s249 + $0x1c8] sm:$0xff]
        %v368 = vld [vmem:[%s249 + $0x1d0] sm:$0xff]
        %v369 = vld [vmem:[%s249 + $0x1d8] sm:$0xff]
        %v370 = vld [vmem:[%s249 + $0x1e0] sm:$0xff]
        %v371 = vld [vmem:[%s249 + $0x1e8] sm:$0xff]
        %v372 = vld [vmem:[%s249 + $0x1f0] sm:$0xff]
        %v373 = vld [vmem:[%s249 + $0x1f8] sm:$0xff]
        %v374 = vld [vmem:[%s249 + $0x200] sm:$0xff]
        %v375 = vld [vmem:[%s249 + $0x208] sm:$0xff]
        %v376 = vld [vmem:[%s249 + $0x210] sm:$0xff]
        %v377 = vld [vmem:[%s249 + $0x218] sm:$0xff]
        %v378 = vld [vmem:[%s249 + $0x220] sm:$0xff]
        %v379 = vld [vmem:[%s249 + $0x228] sm:$0xff]
        %v380 = vld [vmem:[%s249 + $0x230] sm:$0xff]
        %v381 = vld [vmem:[%s249 + $0x238] sm:$0xff]
        %v382 = vld [vmem:[%s249 + $0x240] sm:$0xff]
        %v383 = vld [vmem:[%s249 + $0x248] sm:$0xff]
        %v384 = vld [vmem:[%s249 + $0x250] sm:$0xff]
        %v385 = vld [vmem:[%s249 + $0x258] sm:$0xff]
        %v386 = vld [vmem:[%s249 + $0x260] sm:$0xff]
        %v387 = vld [vmem:[%s249 + $0x268] sm:$0xff]
        %v388 = vld [vmem:[%s249 + $0x270] sm:$0xff]
        %v389 = vld [vmem:[%s249 + $0x278] sm:$0xff]
        %v390 = vld [vmem:[%s249 + $0x280] sm:$0xff]
        %v391 = vld [vmem:[%s249 + $0x288] sm:$0xff]
        %v392 = vld [vmem:[%s249 + $0x290] sm:$0xff]
        %v393 = vld [vmem:[%s249 + $0x298] sm:$0xff]
        %v394 = vld [vmem:[%s249 + $0x2a0] sm:$0xff]
        %v395 = vld [vmem:[%s249 + $0x2a8] sm:$0xff]
        %v396 = vld [vmem:[%s249 + $0x2b0] sm:$0xff]
        %v397 = vld [vmem:[%s249 + $0x2b8] sm:$0xff]
        %v398 = vld [vmem:[%s249 + $0x2c0] sm:$0xff]
        %v399 = vld [vmem:[%s249 + $0x2c8] sm:$0xff]
        %v400 = vld [vmem:[%s249 + $0x2d0] sm:$0xff]
        %v401 = vld [vmem:[%s249 + $0x2d8] sm:$0xff]
        %v402 = vld [vmem:[%s249 + $0x2e0] sm:$0xff]
        %v403 = vld [vmem:[%s249 + $0x2e8] sm:$0xff]
        %v404 = vld [vmem:[%s249 + $0x2f0] sm:$0xff]
        %v405 = vld [vmem:[%s249 + $0x2f8] sm:$0xff]
        %v406 = vld [vmem:[%s249 + $0x300] sm:$0xff]
        %v407 = vld [vmem:[%s249 + $0x308] sm:$0xff]
        %v408 = vld [vmem:[%s249 + $0x310] sm:$0xff]
        %v409 = vld [vmem:[%s249 + $0x318] sm:$0xff]
        %v410 = vld [vmem:[%s249 + $0x320] sm:$0xff]
        %v411 = vld [vmem:[%s249 + $0x328] sm:$0xff]
        %v412 = vld [vmem:[%s249 + $0x330] sm:$0xff]
        %v413 = vld [vmem:[%s249 + $0x338] sm:$0xff]
        %v414 = vld [vmem:[%s249 + $0x340] sm:$0xff]
        %v415 = vld [vmem:[%s249 + $0x348] sm:$0xff]
        %v416 = vld [vmem:[%s249 + $0x350] sm:$0xff]
        %v417 = vld [vmem:[%s249 + $0x358] sm:$0xff]
        %v418 = vld [vmem:[%s249 + $0x360] sm:$0xff]
        %v419 = vld [vmem:[%s249 + $0x368] sm:$0xff]
        %v420 = vld [vmem:[%s249 + $0x370] sm:$0xff]
        %v421 = vld [vmem:[%s249 + $0x378] sm:$0xff]
        %v422 = vld [vmem:[%s249 + $0x380] sm:$0xff]
        %v423 = vld [vmem:[%s249 + $0x388] sm:$0xff]
        %v424 = vld [vmem:[%s249 + $0x390] sm:$0xff]
        %v425 = vld [vmem:[%s249 + $0x398] sm:$0xff]
        %v426 = vld [vmem:[%s249 + $0x3a0] sm:$0xff]
        %v427 = vld [vmem:[%s249 + $0x3a8] sm:$0xff]
        %v428 = vld [vmem:[%s249 + $0x3b0] sm:$0xff]
        %v429 = vld [vmem:[%s249 + $0x3b8] sm:$0xff]
        %v430 = vld [vmem:[%s249 + $0x3c0] sm:$0xff]
        %v431 = vld [vmem:[%s249 + $0x3c8] sm:$0xff]
        %v432 = vld [vmem:[%s249 + $0x3d0] sm:$0xff]
        %v433 = vld [vmem:[%s249 + $0x3d8] sm:$0xff]
        %v434 = vld [vmem:[%s249 + $0x3e0] sm:$0xff]
        %v435 = vld [vmem:[%s249 + $0x3e8] sm:$0xff]
        %v436 = vld [vmem:[%s249 + $0x3f0] sm:$0xff]
        %v437 = vld [vmem:[%s249 + $0x3f8] sm:$0xff]
        %v438 = vld [vmem:[%s249 + $0x400] sm:$0xff]
        %v439 = vld [vmem:[%s249 + $0x408] sm:$0xff]
        %v440 = vld [vmem:[%s249 + $0x410] sm:$0xff]
        %v441 = vld [vmem:[%s249 + $0x418] sm:$0xff]
        %v442 = vld [vmem:[%s249 + $0x420] sm:$0xff]
        %v443 = vld [vmem:[%s249 + $0x428] sm:$0xff]
        %v444 = vld [vmem:[%s249 + $0x430] sm:$0xff]
        %v445 = vld [vmem:[%s249 + $0x438] sm:$0xff]
        %v446 = vld [vmem:[%s249 + $0x440] sm:$0xff]
        %v447 = vld [vmem:[%s249 + $0x448] sm:$0xff]
        %v448 = vld [vmem:[%s249 + $0x450] sm:$0xff]
        %v449 = vld [vmem:[%s249 + $0x458] sm:$0xff]
        %v450 = vld [vmem:[%s249 + $0x460] sm:$0xff]
        %v451 = vld [vmem:[%s249 + $0x468] sm:$0xff]
        %v452 = vld [vmem:[%s249 + $0x470] sm:$0xff]
        %v453 = vld [vmem:[%s249 + $0x478] sm:$0xff]
        %v454 = vld [vmem:[%s249 + $0x480] sm:$0xff]
        %v455 = vld [vmem:[%s249 + $0x488] sm:$0xff]
        %v456 = vld [vmem:[%s249 + $0x490] sm:$0xff]
        %v457 = vld [vmem:[%s249 + $0x498] sm:$0xff]
        %v458 = vld [vmem:[%s249 + $0x4a0] sm:$0xff]
        %v459 = vld [vmem:[%s249 + $0x4a8] sm:$0xff]
        %v460 = vld [vmem:[%s249 + $0x4b0] sm:$0xff]
        %v461 = vld [vmem:[%s249 + $0x4b8] sm:$0xff]
        %v462 = vld [vmem:[%s249 + $0x4c0] sm:$0xff]
        %v463 = vld [vmem:[%s249 + $0x4c8] sm:$0xff]
        %v464 = vld [vmem:[%s249 + $0x4d0] sm:$0xff]
        %v465 = vld [vmem:[%s249 + $0x4d8] sm:$0xff]
        %v466 = vld [vmem:[%s249 + $0x4e0] sm:$0xff]
        %v467 = vld [vmem:[%s249 + $0x4e8] sm:$0xff]
        %v468 = vld [vmem:[%s249 + $0x4f0] sm:$0xff]
        %v469 = vld [vmem:[%s249 + $0x4f8] sm:$0xff]
        %v470 = vld [vmem:[%s249 + $0x500] sm:$0xff]
        %v471 = vld [vmem:[%s249 + $0x508] sm:$0xff]
        %v472 = vld [vmem:[%s249 + $0x510] sm:$0xff]
        %v473 = vld [vmem:[%s249 + $0x518] sm:$0xff]
        %v474 = vld [vmem:[%s249 + $0x520] sm:$0xff]
        %v475 = vld [vmem:[%s249 + $0x528] sm:$0xff]
        %v476 = vld [vmem:[%s249 + $0x530] sm:$0xff]
        %v477 = vld [vmem:[%s249 + $0x538] sm:$0xff]
        %v478 = vld [vmem:[%s249 + $0x540] sm:$0xff]
        %v479 = vld [vmem:[%s249 + $0x548] sm:$0xff]
        %v480 = vld [vmem:[%s249 + $0x550] sm:$0xff]
        %v481 = vld [vmem:[%s249 + $0x558] sm:$0xff]
        %v482 = vld [vmem:[%s249 + $0x560] sm:$0xff]
        %v483 = vld [vmem:[%s249 + $0x568] sm:$0xff]
        %v484 = vld [vmem:[%s249 + $0x570] sm:$0xff]
        %v485 = vld [vmem:[%s249 + $0x578] sm:$0xff]
        %v486 = vld [vmem:[%s249 + $0x580] sm:$0xff]
        %v487 = vld [vmem:[%s249 + $0x588] sm:$0xff]
        %v488 = vld [vmem:[%s249 + $0x590] sm:$0xff]
        %v489 = vld [vmem:[%s249 + $0x598] sm:$0xff]
        %v490 = vld [vmem:[%s249 + $0x5a0] sm:$0xff]
        %v491 = vld [vmem:[%s249 + $0x5a8] sm:$0xff]
        %v492 = vld [vmem:[%s249 + $0x5b0] sm:$0xff]
        %v493 = vld [vmem:[%s249 + $0x5b8] sm:$0xff]
        %v494 = vld [vmem:[%s249 + $0x5c0] sm:$0xff]
        %v495 = vld [vmem:[%s249 + $0x5c8] sm:$0xff]
        %v496 = vld [vmem:[%s249 + $0x5d0] sm:$0xff]
        %v497 = vld [vmem:[%s249 + $0x5d8] sm:$0xff]
        %v498 = vld [vmem:[%s249 + $0x5e0] sm:$0xff]
        %v499 = vld [vmem:[%s249 + $0x5e8] sm:$0xff]
        %v500 = vld [vmem:[%s249 + $0x5f0] sm:$0xff]
        %v501 = vld [vmem:[%s249 + $0x5f8] sm:$0xff]
        %v502 = vld [vmem:[%s249 + $0x600] sm:$0xff]
        %v503 = vld [vmem:[%s249 + $0x608] sm:$0xff]
        %v504 = vld [vmem:[%s249 + $0x610] sm:$0xff]
        %v505 = vld [vmem:[%s249 + $0x618] sm:$0xff]
        %v506 = vld [vmem:[%s249 + $0x620] sm:$0xff]
        %v507 = vld [vmem:[%s249 + $0x628] sm:$0xff]
        %v508 = vld [vmem:[%s249 + $0x630] sm:$0xff]
        %v509 = vld [vmem:[%s249 + $0x638] sm:$0xff]
        %v510 = vld [vmem:[%s249 + $0x640] sm:$0xff]
        %v511 = vld [vmem:[%s249 + $0x648] sm:$0xff]
        %v512 = vld [vmem:[%s249 + $0x650] sm:$0xff]
        %v513 = vld [vmem:[%s249 + $0x658] sm:$0xff]
        %v514 = vld [vmem:[%s249 + $0x660] sm:$0xff]
        %v515 = vld [vmem:[%s249 + $0x668] sm:$0xff]
        %v516 = vld [vmem:[%s249 + $0x670] sm:$0xff]
        %v517 = vld [vmem:[%s249 + $0x678] sm:$0xff]
        %v518 = vld [vmem:[%s249 + $0x680] sm:$0xff]
        %v519 = vld [vmem:[%s249 + $0x688] sm:$0xff]
        %v520 = vld [vmem:[%s249 + $0x690] sm:$0xff]
        %v521 = vld [vmem:[%s249 + $0x698] sm:$0xff]
        %v522 = vld [vmem:[%s249 + $0x6a0] sm:$0xff]
        %v523 = vld [vmem:[%s249 + $0x6a8] sm:$0xff]
        %v524 = vld [vmem:[%s249 + $0x6b0] sm:$0xff]
        %v525 = vld [vmem:[%s249 + $0x6b8] sm:$0xff]
        %v526 = vld [vmem:[%s249 + $0x6c0] sm:$0xff]
        %v527 = vld [vmem:[%s249 + $0x6c8] sm:$0xff]
        %v528 = vld [vmem:[%s249 + $0x6d0] sm:$0xff]
        %v529 = vld [vmem:[%s249 + $0x6d8] sm:$0xff]
        %v530 = vld [vmem:[%s249 + $0x6e0] sm:$0xff]
        %v531 = vld [vmem:[%s249 + $0x6e8] sm:$0xff]
        %v532 = vld [vmem:[%s249 + $0x6f0] sm:$0xff]
        %v533 = vld [vmem:[%s249 + $0x6f8] sm:$0xff]
        %v534 = vld [vmem:[%s249 + $0x700] sm:$0xff]
        %v535 = vld [vmem:[%s249 + $0x708] sm:$0xff]
        %v536 = vld [vmem:[%s249 + $0x710] sm:$0xff]
        %v537 = vld [vmem:[%s249 + $0x718] sm:$0xff]
        %v538 = vld [vmem:[%s249 + $0x720] sm:$0xff]
        %v539 = vld [vmem:[%s249 + $0x728] sm:$0xff]
        %v540 = vld [vmem:[%s249 + $0x730] sm:$0xff]
        %v541 = vld [vmem:[%s249 + $0x738] sm:$0xff]
        %v542 = vld [vmem:[%s249 + $0x740] sm:$0xff]
        %v543 = vld [vmem:[%s249 + $0x748] sm:$0xff]
        %v544 = vld [vmem:[%s249 + $0x750] sm:$0xff]
        %v545 = vld [vmem:[%s249 + $0x758] sm:$0xff]
        %v546 = vld [vmem:[%s249 + $0x760] sm:$0xff]
        %v547 = vld [vmem:[%s249 + $0x768] sm:$0xff]
        %v548 = vld [vmem:[%s249 + $0x770] sm:$0xff]
        %v549 = vld [vmem:[%s249 + $0x778] sm:$0xff]
        %v550 = vld [vmem:[%s249 + $0x780] sm:$0xff]
        %v551 = vld [vmem:[%s249 + $0x788] sm:$0xff]
        %v552 = vld [vmem:[%s249 + $0x790] sm:$0xff]
        %v553 = vld [vmem:[%s249 + $0x798] sm:$0xff]
        %v554 = vld [vmem:[%s249 + $0x7a0] sm:$0xff]
        %v555 = vld [vmem:[%s249 + $0x7a8] sm:$0xff]
        %v556 = vld [vmem:[%s249 + $0x7b0] sm:$0xff]
        %v557 = vld [vmem:[%s249 + $0x7b8] sm:$0xff]
        %v558 = vld [vmem:[%s249 + $0x7c0] sm:$0xff]
        %v559 = vld [vmem:[%s249 + $0x7c8] sm:$0xff]
        %v560 = vld [vmem:[%s249 + $0x7d0] sm:$0xff]
        %v561 = vld [vmem:[%s249 + $0x7d8] sm:$0xff]
        %v562 = vld [vmem:[%s249 + $0x7e0] sm:$0xff]
        %v563 = vld [vmem:[%s249 + $0x7e8] sm:$0xff]
        %v564 = vld [vmem:[%s249 + $0x7f0] sm:$0xff]
        %v565 = vld [vmem:[%s249 + $0x7f8] sm:$0xff]
        %v566 = vld [vmem:[%s259] sm:$0xff]
        %v567 = vld [vmem:[%s259 + $0x8] sm:$0xff]
        %v568 = vld [vmem:[%s259 + $0x10] sm:$0xff]
        %v569 = vld [vmem:[%s259 + $0x18] sm:$0xff]
        %v570 = vld [vmem:[%s259 + $0x20] sm:$0xff]
        %v571 = vld [vmem:[%s259 + $0x28] sm:$0xff]
        %v572 = vld [vmem:[%s259 + $0x30] sm:$0xff]
        %v573 = vld [vmem:[%s259 + $0x38] sm:$0xff]
        %v574 = vld [vmem:[%s259 + $0x40] sm:$0xff]
        %v575 = vld [vmem:[%s259 + $0x48] sm:$0xff]
        %v576 = vld [vmem:[%s259 + $0x50] sm:$0xff]
        %v577 = vld [vmem:[%s259 + $0x58] sm:$0xff]
        %v578 = vld [vmem:[%s259 + $0x60] sm:$0xff]
        %v579 = vld [vmem:[%s259 + $0x68] sm:$0xff]
        %v580 = vld [vmem:[%s259 + $0x70] sm:$0xff]
        %v581 = vld [vmem:[%s259 + $0x78] sm:$0xff]
        %v582 = vld [vmem:[%s259 + $0x80] sm:$0xff]
        %v583 = vld [vmem:[%s259 + $0x88] sm:$0xff]
        %v584 = vld [vmem:[%s259 + $0x90] sm:$0xff]
        %v585 = vld [vmem:[%s259 + $0x98] sm:$0xff]
        %v586 = vld [vmem:[%s259 + $0xa0] sm:$0xff]
        %v587 = vld [vmem:[%s259 + $0xa8] sm:$0xff]
        %v588 = vld [vmem:[%s259 + $0xb0] sm:$0xff]
        %v589 = vld [vmem:[%s259 + $0xb8] sm:$0xff]
        %v590 = vld [vmem:[%s259 + $0xc0] sm:$0xff]
        %v591 = vld [vmem:[%s259 + $0xc8] sm:$0xff]
        %v592 = vld [vmem:[%s259 + $0xd0] sm:$0xff]
        %v593 = vld [vmem:[%s259 + $0xd8] sm:$0xff]
        %v594 = vld [vmem:[%s259 + $0xe0] sm:$0xff]
        %v595 = vld [vmem:[%s259 + $0xe8] sm:$0xff]
        %v596 = vld [vmem:[%s259 + $0xf0] sm:$0xff]
        %v597 = vld [vmem:[%s259 + $0xf8] sm:$0xff]
        %v598 = vld [vmem:[%s259 + $0x100] sm:$0xff]
        %v599 = vld [vmem:[%s259 + $0x108] sm:$0xff]
        %v600 = vld [vmem:[%s259 + $0x110] sm:$0xff]
        %v601 = vld [vmem:[%s259 + $0x118] sm:$0xff]
        %v602 = vld [vmem:[%s259 + $0x120] sm:$0xff]
        %v603 = vld [vmem:[%s259 + $0x128] sm:$0xff]
        %v604 = vld [vmem:[%s259 + $0x130] sm:$0xff]
        %v605 = vld [vmem:[%s259 + $0x138] sm:$0xff]
        %v606 = vld [vmem:[%s259 + $0x140] sm:$0xff]
        %v607 = vld [vmem:[%s259 + $0x148] sm:$0xff]
        %v608 = vld [vmem:[%s259 + $0x150] sm:$0xff]
        %v609 = vld [vmem:[%s259 + $0x158] sm:$0xff]
        %v610 = vld [vmem:[%s259 + $0x160] sm:$0xff]
        %v611 = vld [vmem:[%s259 + $0x168] sm:$0xff]
        %v612 = vld [vmem:[%s259 + $0x170] sm:$0xff]
        %v613 = vld [vmem:[%s259 + $0x178] sm:$0xff]
        %v614 = vld [vmem:[%s259 + $0x180] sm:$0xff]
        %v615 = vld [vmem:[%s259 + $0x188] sm:$0xff]
        %v616 = vld [vmem:[%s259 + $0x190] sm:$0xff]
        %v617 = vld [vmem:[%s259 + $0x198] sm:$0xff]
        %v618 = vld [vmem:[%s259 + $0x1a0] sm:$0xff]
        %v619 = vld [vmem:[%s259 + $0x1a8] sm:$0xff]
        %v620 = vld [vmem:[%s259 + $0x1b0] sm:$0xff]
        %v621 = vld [vmem:[%s259 + $0x1b8] sm:$0xff]
        %v622 = vld [vmem:[%s259 + $0x1c0] sm:$0xff]
        %v623 = vld [vmem:[%s259 + $0x1c8] sm:$0xff]
        %v624 = vld [vmem:[%s259 + $0x1d0] sm:$0xff]
        %v625 = vld [vmem:[%s259 + $0x1d8] sm:$0xff]
        %v626 = vld [vmem:[%s259 + $0x1e0] sm:$0xff]
        %v627 = vld [vmem:[%s259 + $0x1e8] sm:$0xff]
        %v628 = vld [vmem:[%s259 + $0x1f0] sm:$0xff]
        %v629 = vld [vmem:[%s259 + $0x1f8] sm:$0xff]
        %v630 = vld [vmem:[%s259 + $0x200] sm:$0xff]
        %v631 = vld [vmem:[%s259 + $0x208] sm:$0xff]
        %v632 = vld [vmem:[%s259 + $0x210] sm:$0xff]
        %v633 = vld [vmem:[%s259 + $0x218] sm:$0xff]
        %v634 = vld [vmem:[%s259 + $0x220] sm:$0xff]
        %v635 = vld [vmem:[%s259 + $0x228] sm:$0xff]
        %v636 = vld [vmem:[%s259 + $0x230] sm:$0xff]
        %v637 = vld [vmem:[%s259 + $0x238] sm:$0xff]
        %v638 = vld [vmem:[%s259 + $0x240] sm:$0xff]
        %v639 = vld [vmem:[%s259 + $0x248] sm:$0xff]
        %v640 = vld [vmem:[%s259 + $0x250] sm:$0xff]
        %v641 = vld [vmem:[%s259 + $0x258] sm:$0xff]
        %v642 = vld [vmem:[%s259 + $0x260] sm:$0xff]
        %v643 = vld [vmem:[%s259 + $0x268] sm:$0xff]
        %v644 = vld [vmem:[%s259 + $0x270] sm:$0xff]
        %v645 = vld [vmem:[%s259 + $0x278] sm:$0xff]
        %v646 = vld [vmem:[%s259 + $0x280] sm:$0xff]
        %v647 = vld [vmem:[%s259 + $0x288] sm:$0xff]
        %v648 = vld [vmem:[%s259 + $0x290] sm:$0xff]
        %v649 = vld [vmem:[%s259 + $0x298] sm:$0xff]
        %v650 = vld [vmem:[%s259 + $0x2a0] sm:$0xff]
        %v651 = vld [vmem:[%s259 + $0x2a8] sm:$0xff]
        %v652 = vld [vmem:[%s259 + $0x2b0] sm:$0xff]
        %v653 = vld [vmem:[%s259 + $0x2b8] sm:$0xff]
        %v654 = vld [vmem:[%s259 + $0x2c0] sm:$0xff]
        %v655 = vld [vmem:[%s259 + $0x2c8] sm:$0xff]
        %v656 = vld [vmem:[%s259 + $0x2d0] sm:$0xff]
        %v657 = vld [vmem:[%s259 + $0x2d8] sm:$0xff]
        %v658 = vld [vmem:[%s259 + $0x2e0] sm:$0xff]
        %v659 = vld [vmem:[%s259 + $0x2e8] sm:$0xff]
        %v660 = vld [vmem:[%s259 + $0x2f0] sm:$0xff]
        %v661 = vld [vmem:[%s259 + $0x2f8] sm:$0xff]
        %v662 = vld [vmem:[%s259 + $0x300] sm:$0xff]
        %v663 = vld [vmem:[%s259 + $0x308] sm:$0xff]
        %v664 = vld [vmem:[%s259 + $0x310] sm:$0xff]
        %v665 = vld [vmem:[%s259 + $0x318] sm:$0xff]
        %v666 = vld [vmem:[%s259 + $0x320] sm:$0xff]
        %v667 = vld [vmem:[%s259 + $0x328] sm:$0xff]
        %v668 = vld [vmem:[%s259 + $0x330] sm:$0xff]
        %v669 = vld [vmem:[%s259 + $0x338] sm:$0xff]
        %v670 = vld [vmem:[%s259 + $0x340] sm:$0xff]
        %v671 = vld [vmem:[%s259 + $0x348] sm:$0xff]
        %v672 = vld [vmem:[%s259 + $0x350] sm:$0xff]
        %v673 = vld [vmem:[%s259 + $0x358] sm:$0xff]
        %v674 = vld [vmem:[%s259 + $0x360] sm:$0xff]
        %v675 = vld [vmem:[%s259 + $0x368] sm:$0xff]
        %v676 = vld [vmem:[%s259 + $0x370] sm:$0xff]
        %v677 = vld [vmem:[%s259 + $0x378] sm:$0xff]
        %v678 = vld [vmem:[%s259 + $0x380] sm:$0xff]
        %v679 = vld [vmem:[%s259 + $0x388] sm:$0xff]
        %v680 = vld [vmem:[%s259 + $0x390] sm:$0xff]
        %v681 = vld [vmem:[%s259 + $0x398] sm:$0xff]
        %v682 = vld [vmem:[%s259 + $0x3a0] sm:$0xff]
        %v683 = vld [vmem:[%s259 + $0x3a8] sm:$0xff]
        %v684 = vld [vmem:[%s259 + $0x3b0] sm:$0xff]
        %v685 = vld [vmem:[%s259 + $0x3b8] sm:$0xff]
        %v686 = vld [vmem:[%s259 + $0x3c0] sm:$0xff]
        %v687 = vld [vmem:[%s259 + $0x3c8] sm:$0xff]
        %v688 = vld [vmem:[%s259 + $0x3d0] sm:$0xff]
        %v689 = vld [vmem:[%s259 + $0x3d8] sm:$0xff]
        %v690 = vld [vmem:[%s259 + $0x3e0] sm:$0xff]
        %v691 = vld [vmem:[%s259 + $0x3e8] sm:$0xff]
        %v692 = vld [vmem:[%s259 + $0x3f0] sm:$0xff]
        %v693 = vld [vmem:[%s259 + $0x3f8] sm:$0xff]
        %v694 = vld [vmem:[%s259 + $0x400] sm:$0xff]
        %v695 = vld [vmem:[%s259 + $0x408] sm:$0xff]
        %v696 = vld [vmem:[%s259 + $0x410] sm:$0xff]
        %v697 = vld [vmem:[%s259 + $0x418] sm:$0xff]
        %v698 = vld [vmem:[%s259 + $0x420] sm:$0xff]
        %v699 = vld [vmem:[%s259 + $0x428] sm:$0xff]
        %v700 = vld [vmem:[%s259 + $0x430] sm:$0xff]
        %v701 = vld [vmem:[%s259 + $0x438] sm:$0xff]
        %v702 = vld [vmem:[%s259 + $0x440] sm:$0xff]
        %v703 = vld [vmem:[%s259 + $0x448] sm:$0xff]
        %v704 = vld [vmem:[%s259 + $0x450] sm:$0xff]
        %v705 = vld [vmem:[%s259 + $0x458] sm:$0xff]
        %v706 = vld [vmem:[%s259 + $0x460] sm:$0xff]
        %v707 = vld [vmem:[%s259 + $0x468] sm:$0xff]
        %v708 = vld [vmem:[%s259 + $0x470] sm:$0xff]
        %v709 = vld [vmem:[%s259 + $0x478] sm:$0xff]
        %v710 = vld [vmem:[%s259 + $0x480] sm:$0xff]
        %v711 = vld [vmem:[%s259 + $0x488] sm:$0xff]
        %v712 = vld [vmem:[%s259 + $0x490] sm:$0xff]
        %v713 = vld [vmem:[%s259 + $0x498] sm:$0xff]
        %v714 = vld [vmem:[%s259 + $0x4a0] sm:$0xff]
        %v715 = vld [vmem:[%s259 + $0x4a8] sm:$0xff]
        %v716 = vld [vmem:[%s259 + $0x4b0] sm:$0xff]
        %v717 = vld [vmem:[%s259 + $0x4b8] sm:$0xff]
        %v718 = vld [vmem:[%s259 + $0x4c0] sm:$0xff]
        %v719 = vld [vmem:[%s259 + $0x4c8] sm:$0xff]
        %v720 = vld [vmem:[%s259 + $0x4d0] sm:$0xff]
        %v721 = vld [vmem:[%s259 + $0x4d8] sm:$0xff]
        %v722 = vld [vmem:[%s259 + $0x4e0] sm:$0xff]
        %v723 = vld [vmem:[%s259 + $0x4e8] sm:$0xff]
        %v724 = vld [vmem:[%s259 + $0x4f0] sm:$0xff]
        %v725 = vld [vmem:[%s259 + $0x4f8] sm:$0xff]
        %v726 = vld [vmem:[%s259 + $0x500] sm:$0xff]
        %v727 = vld [vmem:[%s259 + $0x508] sm:$0xff]
        %v728 = vld [vmem:[%s259 + $0x510] sm:$0xff]
        %v729 = vld [vmem:[%s259 + $0x518] sm:$0xff]
        %v730 = vld [vmem:[%s259 + $0x520] sm:$0xff]
        %v731 = vld [vmem:[%s259 + $0x528] sm:$0xff]
        %v732 = vld [vmem:[%s259 + $0x530] sm:$0xff]
        %v733 = vld [vmem:[%s259 + $0x538] sm:$0xff]
        %v734 = vld [vmem:[%s259 + $0x540] sm:$0xff]
        %v735 = vld [vmem:[%s259 + $0x548] sm:$0xff]
        %v736 = vld [vmem:[%s259 + $0x550] sm:$0xff]
        %v737 = vld [vmem:[%s259 + $0x558] sm:$0xff]
        %v738 = vld [vmem:[%s259 + $0x560] sm:$0xff]
        %v739 = vld [vmem:[%s259 + $0x568] sm:$0xff]
        %v740 = vld [vmem:[%s259 + $0x570] sm:$0xff]
        %v741 = vld [vmem:[%s259 + $0x578] sm:$0xff]
        %v742 = vld [vmem:[%s259 + $0x580] sm:$0xff]
        %v743 = vld [vmem:[%s259 + $0x588] sm:$0xff]
        %v744 = vld [vmem:[%s259 + $0x590] sm:$0xff]
        %v745 = vld [vmem:[%s259 + $0x598] sm:$0xff]
        %v746 = vld [vmem:[%s259 + $0x5a0] sm:$0xff]
        %v747 = vld [vmem:[%s259 + $0x5a8] sm:$0xff]
        %v748 = vld [vmem:[%s259 + $0x5b0] sm:$0xff]
        %v749 = vld [vmem:[%s259 + $0x5b8] sm:$0xff]
        %v750 = vld [vmem:[%s259 + $0x5c0] sm:$0xff]
        %v751 = vld [vmem:[%s259 + $0x5c8] sm:$0xff]
        %v752 = vld [vmem:[%s259 + $0x5d0] sm:$0xff]
        %v753 = vld [vmem:[%s259 + $0x5d8] sm:$0xff]
        %v754 = vld [vmem:[%s259 + $0x5e0] sm:$0xff]
        %v755 = vld [vmem:[%s259 + $0x5e8] sm:$0xff]
        %v756 = vld [vmem:[%s259 + $0x5f0] sm:$0xff]
        %v757 = vld [vmem:[%s259 + $0x5f8] sm:$0xff]
        %758 = vmatpush.msra.mxu0 %v611
        %759 = vmatpush.msra.mxu0 %v608
        %760 = vmatpush.msra.mxu0 %v605
        %761 = vmatpush.msra.mxu0 %v602
        %762 = vmatpush.msra.mxu0 %v599
        %763 = vmatpush.msra.mxu0 %v596
        %764 = vmatpush.msra.mxu0 %v593
        %765 = vmatpush.msra.mxu0 %v590
        %766 = vmatpush.msra.mxu0 %v587
        %767 = vmatpush.msra.mxu0 %v584
        %768 = vmatpush.msra.mxu0 %v581
        %769 = vmatpush.msra.mxu0 %v578
        %770 = vmatpush.msra.mxu0 %v575
        %771 = vmatpush.msra.mxu0 %v572
        %772 = vmatpush.msra.mxu0 %v569
        %773 = vmatpush.msra.mxu0 %v566
        %774 = vmatmul.f32.gmra.mxu0 %v310
        %v775 = vpop.f32.mrf.mxu0
        %v776 = vadd.f32 0.0, %v775
        %777 = vmatmul.f32.gmra.mxu0 %v314
        %v778 = vpop.f32.mrf.mxu0
        %v779 = vadd.f32 0.0, %v778
        %780 = vmatmul.f32.gmra.mxu0 %v318
        %v781 = vpop.f32.mrf.mxu0
        %v782 = vadd.f32 0.0, %v781
        %783 = vmatmul.f32.gmra.mxu0 %v322
        %v784 = vpop.f32.mrf.mxu0
        %v785 = vadd.f32 0.0, %v784
        %786 = vmatmul.f32.gmra.mxu0 %v326
        %v787 = vpop.f32.mrf.mxu0
        %v788 = vadd.f32 0.0, %v787
        %789 = vmatmul.f32.gmra.mxu0 %v330
        %v790 = vpop.f32.mrf.mxu0
        %v791 = vadd.f32 0.0, %v790
        %792 = vmatmul.f32.gmra.mxu0 %v334
        %v793 = vpop.f32.mrf.mxu0
        %v794 = vadd.f32 0.0, %v793
        %795 = vmatmul.f32.gmra.mxu0 %v338
        %v796 = vpop.f32.mrf.mxu0
        %v797 = vadd.f32 0.0, %v796
        %798 = vmatmul.f32.gmra.mxu0 %v342
        %v799 = vpop.f32.mrf.mxu0
        %v800 = vadd.f32 0.0, %v799
        %801 = vmatmul.f32.gmra.mxu0 %v346
        %v802 = vpop.f32.mrf.mxu0
        %v803 = vadd.f32 0.0, %v802
        %804 = vmatmul.f32.gmra.mxu0 %v350
        %v805 = vpop.f32.mrf.mxu0
        %v806 = vadd.f32 0.0, %v805
        %807 = vmatmul.f32.gmra.mxu0 %v354
        %v808 = vpop.f32.mrf.mxu0
        %v809 = vadd.f32 0.0, %v808
        %810 = vmatmul.f32.gmra.mxu0 %v358
        %v811 = vpop.f32.mrf.mxu0
        %v812 = vadd.f32 0.0, %v811
        %813 = vmatmul.f32.gmra.mxu0 %v362
        %v814 = vpop.f32.mrf.mxu0
        %v815 = vadd.f32 0.0, %v814
        %816 = vmatmul.f32.gmra.mxu0 %v366
        %v817 = vpop.f32.mrf.mxu0
        %v818 = vadd.f32 0.0, %v817
        %819 = vmatmul.f32.gmra.mxu0 %v370
        %v820 = vpop.f32.mrf.mxu0
        %v821 = vadd.f32 0.0, %v820
        %822 = vmatmul.f32.gmra.mxu0 %v374
        %v823 = vpop.f32.mrf.mxu0
        %v824 = vadd.f32 0.0, %v823
        %825 = vmatmul.f32.gmra.mxu0 %v378
        %v826 = vpop.f32.mrf.mxu0
        %v827 = vadd.f32 0.0, %v826
        %828 = vmatmul.f32.gmra.mxu0 %v382
        %v829 = vpop.f32.mrf.mxu0
        %v830 = vadd.f32 0.0, %v829
        %831 = vmatmul.f32.gmra.mxu0 %v386
        %v832 = vpop.f32.mrf.mxu0
        %v833 = vadd.f32 0.0, %v832
        %834 = vmatmul.f32.gmra.mxu0 %v390
        %v835 = vpop.f32.mrf.mxu0
        %v836 = vadd.f32 0.0, %v835
        %837 = vmatmul.f32.gmra.mxu0 %v394
        %v838 = vpop.f32.mrf.mxu0
        %v839 = vadd.f32 0.0, %v838
        %840 = vmatmul.f32.gmra.mxu0 %v398
        %v841 = vpop.f32.mrf.mxu0
        %v842 = vadd.f32 0.0, %v841
        %843 = vmatmul.f32.gmra.mxu0 %v402
        %v844 = vpop.f32.mrf.mxu0
        %v845 = vadd.f32 0.0, %v844
        %846 = vmatmul.f32.gmra.mxu0 %v406
        %v847 = vpop.f32.mrf.mxu0
        %v848 = vadd.f32 0.0, %v847
        %849 = vmatmul.f32.gmra.mxu0 %v410
        %v850 = vpop.f32.mrf.mxu0
        %v851 = vadd.f32 0.0, %v850
        %852 = vmatmul.f32.gmra.mxu0 %v414
        %v853 = vpop.f32.mrf.mxu0
        %v854 = vadd.f32 0.0, %v853
        %855 = vmatmul.f32.gmra.mxu0 %v418
        %v856 = vpop.f32.mrf.mxu0
        %v857 = vadd.f32 0.0, %v856
        %858 = vmatmul.f32.gmra.mxu0 %v422
        %v859 = vpop.f32.mrf.mxu0
        %v860 = vadd.f32 0.0, %v859
        %861 = vmatmul.f32.gmra.mxu0 %v426
        %v862 = vpop.f32.mrf.mxu0
        %v863 = vadd.f32 0.0, %v862
        %864 = vmatmul.f32.gmra.mxu0 %v430
        %v865 = vpop.f32.mrf.mxu0
        %v866 = vadd.f32 0.0, %v865
        %867 = vmatmul.f32.gmra.mxu0 %v434
        %v868 = vpop.f32.mrf.mxu0
        %v869 = vadd.f32 0.0, %v868
        %870 = vmatmul.f32.gmra.mxu0 %v438
        %v871 = vpop.f32.mrf.mxu0
        %v872 = vadd.f32 0.0, %v871
        %873 = vmatmul.f32.gmra.mxu0 %v442
        %v874 = vpop.f32.mrf.mxu0
        %v875 = vadd.f32 0.0, %v874
        %876 = vmatmul.f32.gmra.mxu0 %v446
        %v877 = vpop.f32.mrf.mxu0
        %v878 = vadd.f32 0.0, %v877
        %879 = vmatmul.f32.gmra.mxu0 %v450
        %v880 = vpop.f32.mrf.mxu0
        %v881 = vadd.f32 0.0, %v880
        %882 = vmatmul.f32.gmra.mxu0 %v454
        %v883 = vpop.f32.mrf.mxu0
        %v884 = vadd.f32 0.0, %v883
        %885 = vmatmul.f32.gmra.mxu0 %v458
        %v886 = vpop.f32.mrf.mxu0
        %v887 = vadd.f32 0.0, %v886
        %888 = vmatmul.f32.gmra.mxu0 %v462
        %v889 = vpop.f32.mrf.mxu0
        %v890 = vadd.f32 0.0, %v889
        %891 = vmatmul.f32.gmra.mxu0 %v466
        %v892 = vpop.f32.mrf.mxu0
        %v893 = vadd.f32 0.0, %v892
        %894 = vmatmul.f32.gmra.mxu0 %v470
        %v895 = vpop.f32.mrf.mxu0
        %v896 = vadd.f32 0.0, %v895
        %897 = vmatmul.f32.gmra.mxu0 %v474
        %v898 = vpop.f32.mrf.mxu0
        %v899 = vadd.f32 0.0, %v898
        %900 = vmatmul.f32.gmra.mxu0 %v478
        %v901 = vpop.f32.mrf.mxu0
        %v902 = vadd.f32 0.0, %v901
        %903 = vmatmul.f32.gmra.mxu0 %v482
        %v904 = vpop.f32.mrf.mxu0
        %v905 = vadd.f32 0.0, %v904
        %906 = vmatmul.f32.gmra.mxu0 %v486
        %v907 = vpop.f32.mrf.mxu0
        %v908 = vadd.f32 0.0, %v907
        %909 = vmatmul.f32.gmra.mxu0 %v490
        %v910 = vpop.f32.mrf.mxu0
        %v911 = vadd.f32 0.0, %v910
        %912 = vmatmul.f32.gmra.mxu0 %v494
        %v913 = vpop.f32.mrf.mxu0
        %v914 = vadd.f32 0.0, %v913
        %915 = vmatmul.f32.gmra.mxu0 %v498
        %v916 = vpop.f32.mrf.mxu0
        %v917 = vadd.f32 0.0, %v916
        %918 = vmatmul.f32.gmra.mxu0 %v502
        %v919 = vpop.f32.mrf.mxu0
        %v920 = vadd.f32 0.0, %v919
        %921 = vmatmul.f32.gmra.mxu0 %v506
        %v922 = vpop.f32.mrf.mxu0
        %v923 = vadd.f32 0.0, %v922
        %924 = vmatmul.f32.gmra.mxu0 %v510
        %v925 = vpop.f32.mrf.mxu0
        %v926 = vadd.f32 0.0, %v925
        %927 = vmatmul.f32.gmra.mxu0 %v514
        %v928 = vpop.f32.mrf.mxu0
        %v929 = vadd.f32 0.0, %v928
        %930 = vmatmul.f32.gmra.mxu0 %v518
        %v931 = vpop.f32.mrf.mxu0
        %v932 = vadd.f32 0.0, %v931
        %933 = vmatmul.f32.gmra.mxu0 %v522
        %v934 = vpop.f32.mrf.mxu0
        %v935 = vadd.f32 0.0, %v934
        %936 = vmatmul.f32.gmra.mxu0 %v526
        %v937 = vpop.f32.mrf.mxu0
        %v938 = vadd.f32 0.0, %v937
        %939 = vmatmul.f32.gmra.mxu0 %v530
        %v940 = vpop.f32.mrf.mxu0
        %v941 = vadd.f32 0.0, %v940
        %942 = vmatmul.f32.gmra.mxu0 %v534
        %v943 = vpop.f32.mrf.mxu0
        %v944 = vadd.f32 0.0, %v943
        %945 = vmatmul.f32.gmra.mxu0 %v538
        %v946 = vpop.f32.mrf.mxu0
        %v947 = vadd.f32 0.0, %v946
        %948 = vmatmul.f32.gmra.mxu0 %v542
        %v949 = vpop.f32.mrf.mxu0
        %v950 = vadd.f32 0.0, %v949
        %951 = vmatmul.f32.gmra.mxu0 %v546
        %v952 = vpop.f32.mrf.mxu0
        %v953 = vadd.f32 0.0, %v952
        %954 = vmatmul.f32.gmra.mxu0 %v550
        %v955 = vpop.f32.mrf.mxu0
        %v956 = vadd.f32 0.0, %v955
        %957 = vmatmul.f32.gmra.mxu0 %v554
        %v958 = vpop.f32.mrf.mxu0
        %v959 = vadd.f32 0.0, %v958
        %960 = vmatmul.f32.gmra.mxu0 %v558
        %v961 = vpop.f32.mrf.mxu0
        %v962 = vadd.f32 0.0, %v961
        %963 = vmatmul.f32.gmra.mxu0 %v562
        %v964 = vpop.f32.mrf.mxu0
        %v965 = vadd.f32 0.0, %v964
        %966 = vdwg.mxu0
        %967 = vmatpush.msra.mxu0 %v659
        %968 = vmatpush.msra.mxu0 %v656
        %969 = vmatpush.msra.mxu0 %v653
        %970 = vmatpush.msra.mxu0 %v650
        %971 = vmatpush.msra.mxu0 %v647
        %972 = vmatpush.msra.mxu0 %v644
        %973 = vmatpush.msra.mxu0 %v641
        %974 = vmatpush.msra.mxu0 %v638
        %975 = vmatpush.msra.mxu0 %v635
        %976 = vmatpush.msra.mxu0 %v632
        %977 = vmatpush.msra.mxu0 %v629
        %978 = vmatpush.msra.mxu0 %v626
        %979 = vmatpush.msra.mxu0 %v623
        %980 = vmatpush.msra.mxu0 %v620
        %981 = vmatpush.msra.mxu0 %v617
        %982 = vmatpush.msra.mxu0 %v614
        %983 = vmatmul.f32.gmra.mxu0 %v311
        %v984 = vpop.f32.mrf.mxu0
        %v985 = vadd.f32 %v776, %v984
        %986 = vmatmul.f32.gmra.mxu0 %v315
        %v987 = vpop.f32.mrf.mxu0
        %v988 = vadd.f32 %v779, %v987
        %989 = vmatmul.f32.gmra.mxu0 %v319
        %v990 = vpop.f32.mrf.mxu0
        %v991 = vadd.f32 %v782, %v990
        %992 = vmatmul.f32.gmra.mxu0 %v323
        %v993 = vpop.f32.mrf.mxu0
        %v994 = vadd.f32 %v785, %v993
        %995 = vmatmul.f32.gmra.mxu0 %v327
        %v996 = vpop.f32.mrf.mxu0
        %v997 = vadd.f32 %v788, %v996
        %998 = vmatmul.f32.gmra.mxu0 %v331
        %v999 = vpop.f32.mrf.mxu0
        %v1000 = vadd.f32 %v791, %v999
        %1001 = vmatmul.f32.gmra.mxu0 %v335
        %v1002 = vpop.f32.mrf.mxu0
        %v1003 = vadd.f32 %v794, %v1002
        %1004 = vmatmul.f32.gmra.mxu0 %v339
        %v1005 = vpop.f32.mrf.mxu0
        %v1006 = vadd.f32 %v797, %v1005
        %1007 = vmatmul.f32.gmra.mxu0 %v343
        %v1008 = vpop.f32.mrf.mxu0
        %v1009 = vadd.f32 %v800, %v1008
        %1010 = vmatmul.f32.gmra.mxu0 %v347
        %v1011 = vpop.f32.mrf.mxu0
        %v1012 = vadd.f32 %v803, %v1011
        %1013 = vmatmul.f32.gmra.mxu0 %v351
        %v1014 = vpop.f32.mrf.mxu0
        %v1015 = vadd.f32 %v806, %v1014
        %1016 = vmatmul.f32.gmra.mxu0 %v355
        %v1017 = vpop.f32.mrf.mxu0
        %v1018 = vadd.f32 %v809, %v1017
        %1019 = vmatmul.f32.gmra.mxu0 %v359
        %v1020 = vpop.f32.mrf.mxu0
        %v1021 = vadd.f32 %v812, %v1020
        %1022 = vmatmul.f32.gmra.mxu0 %v363
        %v1023 = vpop.f32.mrf.mxu0
        %v1024 = vadd.f32 %v815, %v1023
        %1025 = vmatmul.f32.gmra.mxu0 %v367
        %v1026 = vpop.f32.mrf.mxu0
        %v1027 = vadd.f32 %v818, %v1026
        %1028 = vmatmul.f32.gmra.mxu0 %v371
        %v1029 = vpop.f32.mrf.mxu0
        %v1030 = vadd.f32 %v821, %v1029
        %1031 = vmatmul.f32.gmra.mxu0 %v375
        %v1032 = vpop.f32.mrf.mxu0
        %v1033 = vadd.f32 %v824, %v1032
        %1034 = vmatmul.f32.gmra.mxu0 %v379
        %v1035 = vpop.f32.mrf.mxu0
        %v1036 = vadd.f32 %v827, %v1035
        %1037 = vmatmul.f32.gmra.mxu0 %v383
        %v1038 = vpop.f32.mrf.mxu0
        %v1039 = vadd.f32 %v830, %v1038
        %1040 = vmatmul.f32.gmra.mxu0 %v387
        %v1041 = vpop.f32.mrf.mxu0
        %v1042 = vadd.f32 %v833, %v1041
        %1043 = vmatmul.f32.gmra.mxu0 %v391
        %v1044 = vpop.f32.mrf.mxu0
        %v1045 = vadd.f32 %v836, %v1044
        %1046 = vmatmul.f32.gmra.mxu0 %v395
        %v1047 = vpop.f32.mrf.mxu0
        %v1048 = vadd.f32 %v839, %v1047
        %1049 = vmatmul.f32.gmra.mxu0 %v399
        %v1050 = vpop.f32.mrf.mxu0
        %v1051 = vadd.f32 %v842, %v1050
        %1052 = vmatmul.f32.gmra.mxu0 %v403
        %v1053 = vpop.f32.mrf.mxu0
        %v1054 = vadd.f32 %v845, %v1053
        %1055 = vmatmul.f32.gmra.mxu0 %v407
        %v1056 = vpop.f32.mrf.mxu0
        %v1057 = vadd.f32 %v848, %v1056
        %1058 = vmatmul.f32.gmra.mxu0 %v411
        %v1059 = vpop.f32.mrf.mxu0
        %v1060 = vadd.f32 %v851, %v1059
        %1061 = vmatmul.f32.gmra.mxu0 %v415
        %v1062 = vpop.f32.mrf.mxu0
        %v1063 = vadd.f32 %v854, %v1062
        %1064 = vmatmul.f32.gmra.mxu0 %v419
        %v1065 = vpop.f32.mrf.mxu0
        %v1066 = vadd.f32 %v857, %v1065
        %1067 = vmatmul.f32.gmra.mxu0 %v423
        %v1068 = vpop.f32.mrf.mxu0
        %v1069 = vadd.f32 %v860, %v1068
        %1070 = vmatmul.f32.gmra.mxu0 %v427
        %v1071 = vpop.f32.mrf.mxu0
        %v1072 = vadd.f32 %v863, %v1071
        %1073 = vmatmul.f32.gmra.mxu0 %v431
        %v1074 = vpop.f32.mrf.mxu0
        %v1075 = vadd.f32 %v866, %v1074
        %1076 = vmatmul.f32.gmra.mxu0 %v435
        %v1077 = vpop.f32.mrf.mxu0
        %v1078 = vadd.f32 %v869, %v1077
        %1079 = vmatmul.f32.gmra.mxu0 %v439
        %v1080 = vpop.f32.mrf.mxu0
        %v1081 = vadd.f32 %v872, %v1080
        %1082 = vmatmul.f32.gmra.mxu0 %v443
        %v1083 = vpop.f32.mrf.mxu0
        %v1084 = vadd.f32 %v875, %v1083
        %1085 = vmatmul.f32.gmra.mxu0 %v447
        %v1086 = vpop.f32.mrf.mxu0
        %v1087 = vadd.f32 %v878, %v1086
        %1088 = vmatmul.f32.gmra.mxu0 %v451
        %v1089 = vpop.f32.mrf.mxu0
        %v1090 = vadd.f32 %v881, %v1089
        %1091 = vmatmul.f32.gmra.mxu0 %v455
        %v1092 = vpop.f32.mrf.mxu0
        %v1093 = vadd.f32 %v884, %v1092
        %1094 = vmatmul.f32.gmra.mxu0 %v459
        %v1095 = vpop.f32.mrf.mxu0
        %v1096 = vadd.f32 %v887, %v1095
        %1097 = vmatmul.f32.gmra.mxu0 %v463
        %v1098 = vpop.f32.mrf.mxu0
        %v1099 = vadd.f32 %v890, %v1098
        %1100 = vmatmul.f32.gmra.mxu0 %v467
        %v1101 = vpop.f32.mrf.mxu0
        %v1102 = vadd.f32 %v893, %v1101
        %1103 = vmatmul.f32.gmra.mxu0 %v471
        %v1104 = vpop.f32.mrf.mxu0
        %v1105 = vadd.f32 %v896, %v1104
        %1106 = vmatmul.f32.gmra.mxu0 %v475
        %v1107 = vpop.f32.mrf.mxu0
        %v1108 = vadd.f32 %v899, %v1107
        %1109 = vmatmul.f32.gmra.mxu0 %v479
        %v1110 = vpop.f32.mrf.mxu0
        %v1111 = vadd.f32 %v902, %v1110
        %1112 = vmatmul.f32.gmra.mxu0 %v483
        %v1113 = vpop.f32.mrf.mxu0
        %v1114 = vadd.f32 %v905, %v1113
        %1115 = vmatmul.f32.gmra.mxu0 %v487
        %v1116 = vpop.f32.mrf.mxu0
        %v1117 = vadd.f32 %v908, %v1116
        %1118 = vmatmul.f32.gmra.mxu0 %v491
        %v1119 = vpop.f32.mrf.mxu0
        %v1120 = vadd.f32 %v911, %v1119
        %1121 = vmatmul.f32.gmra.mxu0 %v495
        %v1122 = vpop.f32.mrf.mxu0
        %v1123 = vadd.f32 %v914, %v1122
        %1124 = vmatmul.f32.gmra.mxu0 %v499
        %v1125 = vpop.f32.mrf.mxu0
        %v1126 = vadd.f32 %v917, %v1125
        %1127 = vmatmul.f32.gmra.mxu0 %v503
        %v1128 = vpop.f32.mrf.mxu0
        %v1129 = vadd.f32 %v920, %v1128
        %1130 = vmatmul.f32.gmra.mxu0 %v507
        %v1131 = vpop.f32.mrf.mxu0
        %v1132 = vadd.f32 %v923, %v1131
        %1133 = vmatmul.f32.gmra.mxu0 %v511
        %v1134 = vpop.f32.mrf.mxu0
        %v1135 = vadd.f32 %v926, %v1134
        %1136 = vmatmul.f32.gmra.mxu0 %v515
        %v1137 = vpop.f32.mrf.mxu0
        %v1138 = vadd.f32 %v929, %v1137
        %1139 = vmatmul.f32.gmra.mxu0 %v519
        %v1140 = vpop.f32.mrf.mxu0
        %v1141 = vadd.f32 %v932, %v1140
        %1142 = vmatmul.f32.gmra.mxu0 %v523
        %v1143 = vpop.f32.mrf.mxu0
        %v1144 = vadd.f32 %v935, %v1143
        %1145 = vmatmul.f32.gmra.mxu0 %v527
        %v1146 = vpop.f32.mrf.mxu0
        %v1147 = vadd.f32 %v938, %v1146
        %1148 = vmatmul.f32.gmra.mxu0 %v531
        %v1149 = vpop.f32.mrf.mxu0
        %v1150 = vadd.f32 %v941, %v1149
        %1151 = vmatmul.f32.gmra.mxu0 %v535
        %v1152 = vpop.f32.mrf.mxu0
        %v1153 = vadd.f32 %v944, %v1152
        %1154 = vmatmul.f32.gmra.mxu0 %v539
        %v1155 = vpop.f32.mrf.mxu0
        %v1156 = vadd.f32 %v947, %v1155
        %1157 = vmatmul.f32.gmra.mxu0 %v543
        %v1158 = vpop.f32.mrf.mxu0
        %v1159 = vadd.f32 %v950, %v1158
        %1160 = vmatmul.f32.gmra.mxu0 %v547
        %v1161 = vpop.f32.mrf.mxu0
        %v1162 = vadd.f32 %v953, %v1161
        %1163 = vmatmul.f32.gmra.mxu0 %v551
        %v1164 = vpop.f32.mrf.mxu0
        %v1165 = vadd.f32 %v956, %v1164
        %1166 = vmatmul.f32.gmra.mxu0 %v555
        %v1167 = vpop.f32.mrf.mxu0
        %v1168 = vadd.f32 %v959, %v1167
        %1169 = vmatmul.f32.gmra.mxu0 %v559
        %v1170 = vpop.f32.mrf.mxu0
        %v1171 = vadd.f32 %v962, %v1170
        %1172 = vmatmul.f32.gmra.mxu0 %v563
        %v1173 = vpop.f32.mrf.mxu0
        %v1174 = vadd.f32 %v965, %v1173
        %1175 = vdwg.mxu0
        %1176 = vmatpush.msra.mxu0 %v707
        %1177 = vmatpush.msra.mxu0 %v704
        %1178 = vmatpush.msra.mxu0 %v701
        %1179 = vmatpush.msra.mxu0 %v698
        %1180 = vmatpush.msra.mxu0 %v695
        %1181 = vmatpush.msra.mxu0 %v692
        %1182 = vmatpush.msra.mxu0 %v689
        %1183 = vmatpush.msra.mxu0 %v686
        %1184 = vmatpush.msra.mxu0 %v683
        %1185 = vmatpush.msra.mxu0 %v680
        %1186 = vmatpush.msra.mxu0 %v677
        %1187 = vmatpush.msra.mxu0 %v674
        %1188 = vmatpush.msra.mxu0 %v671
        %1189 = vmatpush.msra.mxu0 %v668
        %1190 = vmatpush.msra.mxu0 %v665
        %1191 = vmatpush.msra.mxu0 %v662
        %1192 = vmatmul.f32.gmra.mxu0 %v312
        %v1193 = vpop.f32.mrf.mxu0
        %v1194 = vadd.f32 %v985, %v1193
        %1195 = vmatmul.f32.gmra.mxu0 %v316
        %v1196 = vpop.f32.mrf.mxu0
        %v1197 = vadd.f32 %v988, %v1196
        %1198 = vmatmul.f32.gmra.mxu0 %v320
        %v1199 = vpop.f32.mrf.mxu0
        %v1200 = vadd.f32 %v991, %v1199
        %1201 = vmatmul.f32.gmra.mxu0 %v324
        %v1202 = vpop.f32.mrf.mxu0
        %v1203 = vadd.f32 %v994, %v1202
        %1204 = vmatmul.f32.gmra.mxu0 %v328
        %v1205 = vpop.f32.mrf.mxu0
        %v1206 = vadd.f32 %v997, %v1205
        %1207 = vmatmul.f32.gmra.mxu0 %v332
        %v1208 = vpop.f32.mrf.mxu0
        %v1209 = vadd.f32 %v1000, %v1208
        %1210 = vmatmul.f32.gmra.mxu0 %v336
        %v1211 = vpop.f32.mrf.mxu0
        %v1212 = vadd.f32 %v1003, %v1211
        %1213 = vmatmul.f32.gmra.mxu0 %v340
        %v1214 = vpop.f32.mrf.mxu0
        %v1215 = vadd.f32 %v1006, %v1214
        %1216 = vmatmul.f32.gmra.mxu0 %v344
        %v1217 = vpop.f32.mrf.mxu0
        %v1218 = vadd.f32 %v1009, %v1217
        %1219 = vmatmul.f32.gmra.mxu0 %v348
        %v1220 = vpop.f32.mrf.mxu0
        %v1221 = vadd.f32 %v1012, %v1220
        %1222 = vmatmul.f32.gmra.mxu0 %v352
        %v1223 = vpop.f32.mrf.mxu0
        %v1224 = vadd.f32 %v1015, %v1223
        %1225 = vmatmul.f32.gmra.mxu0 %v356
        %v1226 = vpop.f32.mrf.mxu0
        %v1227 = vadd.f32 %v1018, %v1226
        %1228 = vmatmul.f32.gmra.mxu0 %v360
        %v1229 = vpop.f32.mrf.mxu0
        %v1230 = vadd.f32 %v1021, %v1229
        %1231 = vmatmul.f32.gmra.mxu0 %v364
        %v1232 = vpop.f32.mrf.mxu0
        %v1233 = vadd.f32 %v1024, %v1232
        %1234 = vmatmul.f32.gmra.mxu0 %v368
        %v1235 = vpop.f32.mrf.mxu0
        %v1236 = vadd.f32 %v1027, %v1235
        %1237 = vmatmul.f32.gmra.mxu0 %v372
        %v1238 = vpop.f32.mrf.mxu0
        %v1239 = vadd.f32 %v1030, %v1238
        %1240 = vmatmul.f32.gmra.mxu0 %v376
        %v1241 = vpop.f32.mrf.mxu0
        %v1242 = vadd.f32 %v1033, %v1241
        %1243 = vmatmul.f32.gmra.mxu0 %v380
        %v1244 = vpop.f32.mrf.mxu0
        %v1245 = vadd.f32 %v1036, %v1244
        %1246 = vmatmul.f32.gmra.mxu0 %v384
        %v1247 = vpop.f32.mrf.mxu0
        %v1248 = vadd.f32 %v1039, %v1247
        %1249 = vmatmul.f32.gmra.mxu0 %v388
        %v1250 = vpop.f32.mrf.mxu0
        %v1251 = vadd.f32 %v1042, %v1250
        %1252 = vmatmul.f32.gmra.mxu0 %v392
        %v1253 = vpop.f32.mrf.mxu0
        %v1254 = vadd.f32 %v1045, %v1253
        %1255 = vmatmul.f32.gmra.mxu0 %v396
        %v1256 = vpop.f32.mrf.mxu0
        %v1257 = vadd.f32 %v1048, %v1256
        %1258 = vmatmul.f32.gmra.mxu0 %v400
        %v1259 = vpop.f32.mrf.mxu0
        %v1260 = vadd.f32 %v1051, %v1259
        %1261 = vmatmul.f32.gmra.mxu0 %v404
        %v1262 = vpop.f32.mrf.mxu0
        %v1263 = vadd.f32 %v1054, %v1262
        %1264 = vmatmul.f32.gmra.mxu0 %v408
        %v1265 = vpop.f32.mrf.mxu0
        %v1266 = vadd.f32 %v1057, %v1265
        %1267 = vmatmul.f32.gmra.mxu0 %v412
        %v1268 = vpop.f32.mrf.mxu0
        %v1269 = vadd.f32 %v1060, %v1268
        %1270 = vmatmul.f32.gmra.mxu0 %v416
        %v1271 = vpop.f32.mrf.mxu0
        %v1272 = vadd.f32 %v1063, %v1271
        %1273 = vmatmul.f32.gmra.mxu0 %v420
        %v1274 = vpop.f32.mrf.mxu0
        %v1275 = vadd.f32 %v1066, %v1274
        %1276 = vmatmul.f32.gmra.mxu0 %v424
        %v1277 = vpop.f32.mrf.mxu0
        %v1278 = vadd.f32 %v1069, %v1277
        %1279 = vmatmul.f32.gmra.mxu0 %v428
        %v1280 = vpop.f32.mrf.mxu0
        %v1281 = vadd.f32 %v1072, %v1280
        %1282 = vmatmul.f32.gmra.mxu0 %v432
        %v1283 = vpop.f32.mrf.mxu0
        %v1284 = vadd.f32 %v1075, %v1283
        %1285 = vmatmul.f32.gmra.mxu0 %v436
        %v1286 = vpop.f32.mrf.mxu0
        %v1287 = vadd.f32 %v1078, %v1286
        %1288 = vmatmul.f32.gmra.mxu0 %v440
        %v1289 = vpop.f32.mrf.mxu0
        %v1290 = vadd.f32 %v1081, %v1289
        %1291 = vmatmul.f32.gmra.mxu0 %v444
        %v1292 = vpop.f32.mrf.mxu0
        %v1293 = vadd.f32 %v1084, %v1292
        %1294 = vmatmul.f32.gmra.mxu0 %v448
        %v1295 = vpop.f32.mrf.mxu0
        %v1296 = vadd.f32 %v1087, %v1295
        %1297 = vmatmul.f32.gmra.mxu0 %v452
        %v1298 = vpop.f32.mrf.mxu0
        %v1299 = vadd.f32 %v1090, %v1298
        %1300 = vmatmul.f32.gmra.mxu0 %v456
        %v1301 = vpop.f32.mrf.mxu0
        %v1302 = vadd.f32 %v1093, %v1301
        %1303 = vmatmul.f32.gmra.mxu0 %v460
        %v1304 = vpop.f32.mrf.mxu0
        %v1305 = vadd.f32 %v1096, %v1304
        %1306 = vmatmul.f32.gmra.mxu0 %v464
        %v1307 = vpop.f32.mrf.mxu0
        %v1308 = vadd.f32 %v1099, %v1307
        %1309 = vmatmul.f32.gmra.mxu0 %v468
        %v1310 = vpop.f32.mrf.mxu0
        %v1311 = vadd.f32 %v1102, %v1310
        %1312 = vmatmul.f32.gmra.mxu0 %v472
        %v1313 = vpop.f32.mrf.mxu0
        %v1314 = vadd.f32 %v1105, %v1313
        %1315 = vmatmul.f32.gmra.mxu0 %v476
        %v1316 = vpop.f32.mrf.mxu0
        %v1317 = vadd.f32 %v1108, %v1316
        %1318 = vmatmul.f32.gmra.mxu0 %v480
        %v1319 = vpop.f32.mrf.mxu0
        %v1320 = vadd.f32 %v1111, %v1319
        %1321 = vmatmul.f32.gmra.mxu0 %v484
        %v1322 = vpop.f32.mrf.mxu0
        %v1323 = vadd.f32 %v1114, %v1322
        %1324 = vmatmul.f32.gmra.mxu0 %v488
        %v1325 = vpop.f32.mrf.mxu0
        %v1326 = vadd.f32 %v1117, %v1325
        %1327 = vmatmul.f32.gmra.mxu0 %v492
        %v1328 = vpop.f32.mrf.mxu0
        %v1329 = vadd.f32 %v1120, %v1328
        %1330 = vmatmul.f32.gmra.mxu0 %v496
        %v1331 = vpop.f32.mrf.mxu0
        %v1332 = vadd.f32 %v1123, %v1331
        %1333 = vmatmul.f32.gmra.mxu0 %v500
        %v1334 = vpop.f32.mrf.mxu0
        %v1335 = vadd.f32 %v1126, %v1334
        %1336 = vmatmul.f32.gmra.mxu0 %v504
        %v1337 = vpop.f32.mrf.mxu0
        %v1338 = vadd.f32 %v1129, %v1337
        %1339 = vmatmul.f32.gmra.mxu0 %v508
        %v1340 = vpop.f32.mrf.mxu0
        %v1341 = vadd.f32 %v1132, %v1340
        %1342 = vmatmul.f32.gmra.mxu0 %v512
        %v1343 = vpop.f32.mrf.mxu0
        %v1344 = vadd.f32 %v1135, %v1343
        %1345 = vmatmul.f32.gmra.mxu0 %v516
        %v1346 = vpop.f32.mrf.mxu0
        %v1347 = vadd.f32 %v1138, %v1346
        %1348 = vmatmul.f32.gmra.mxu0 %v520
        %v1349 = vpop.f32.mrf.mxu0
        %v1350 = vadd.f32 %v1141, %v1349
        %1351 = vmatmul.f32.gmra.mxu0 %v524
        %v1352 = vpop.f32.mrf.mxu0
        %v1353 = vadd.f32 %v1144, %v1352
        %1354 = vmatmul.f32.gmra.mxu0 %v528
        %v1355 = vpop.f32.mrf.mxu0
        %v1356 = vadd.f32 %v1147, %v1355
        %1357 = vmatmul.f32.gmra.mxu0 %v532
        %v1358 = vpop.f32.mrf.mxu0
        %v1359 = vadd.f32 %v1150, %v1358
        %1360 = vmatmul.f32.gmra.mxu0 %v536
        %v1361 = vpop.f32.mrf.mxu0
        %v1362 = vadd.f32 %v1153, %v1361
        %1363 = vmatmul.f32.gmra.mxu0 %v540
        %v1364 = vpop.f32.mrf.mxu0
        %v1365 = vadd.f32 %v1156, %v1364
        %1366 = vmatmul.f32.gmra.mxu0 %v544
        %v1367 = vpop.f32.mrf.mxu0
        %v1368 = vadd.f32 %v1159, %v1367
        %1369 = vmatmul.f32.gmra.mxu0 %v548
        %v1370 = vpop.f32.mrf.mxu0
        %v1371 = vadd.f32 %v1162, %v1370
        %1372 = vmatmul.f32.gmra.mxu0 %v552
        %v1373 = vpop.f32.mrf.mxu0
        %v1374 = vadd.f32 %v1165, %v1373
        %1375 = vmatmul.f32.gmra.mxu0 %v556
        %v1376 = vpop.f32.mrf.mxu0
        %v1377 = vadd.f32 %v1168, %v1376
        %1378 = vmatmul.f32.gmra.mxu0 %v560
        %v1379 = vpop.f32.mrf.mxu0
        %v1380 = vadd.f32 %v1171, %v1379
        %1381 = vmatmul.f32.gmra.mxu0 %v564
        %v1382 = vpop.f32.mrf.mxu0
        %v1383 = vadd.f32 %v1174, %v1382
        %1384 = vdwg.mxu0
        %1385 = vmatpush.msra.mxu0 %v755
        %1386 = vmatpush.msra.mxu0 %v752
        %1387 = vmatpush.msra.mxu0 %v749
        %1388 = vmatpush.msra.mxu0 %v746
        %1389 = vmatpush.msra.mxu0 %v743
        %1390 = vmatpush.msra.mxu0 %v740
        %1391 = vmatpush.msra.mxu0 %v737
        %1392 = vmatpush.msra.mxu0 %v734
        %1393 = vmatpush.msra.mxu0 %v731
        %1394 = vmatpush.msra.mxu0 %v728
        %1395 = vmatpush.msra.mxu0 %v725
        %1396 = vmatpush.msra.mxu0 %v722
        %1397 = vmatpush.msra.mxu0 %v719
        %1398 = vmatpush.msra.mxu0 %v716
        %1399 = vmatpush.msra.mxu0 %v713
        %1400 = vmatpush.msra.mxu0 %v710
        %1401 = vmatmul.f32.gmra.mxu0 %v313
        %v1402 = vpop.f32.mrf.mxu0
        %v1403 = vadd.f32 %v1194, %v1402
        %1404 = vmatmul.f32.gmra.mxu0 %v317
        %v1405 = vpop.f32.mrf.mxu0
        %v1406 = vadd.f32 %v1197, %v1405
        %1407 = vmatmul.f32.gmra.mxu0 %v321
        %v1408 = vpop.f32.mrf.mxu0
        %v1409 = vadd.f32 %v1200, %v1408
        %1410 = vmatmul.f32.gmra.mxu0 %v325
        %v1411 = vpop.f32.mrf.mxu0
        %v1412 = vadd.f32 %v1203, %v1411
        %1413 = vmatmul.f32.gmra.mxu0 %v329
        %v1414 = vpop.f32.mrf.mxu0
        %v1415 = vadd.f32 %v1206, %v1414
        %1416 = vmatmul.f32.gmra.mxu0 %v333
        %v1417 = vpop.f32.mrf.mxu0
        %v1418 = vadd.f32 %v1209, %v1417
        %1419 = vmatmul.f32.gmra.mxu0 %v337
        %v1420 = vpop.f32.mrf.mxu0
        %v1421 = vadd.f32 %v1212, %v1420
        %1422 = vmatmul.f32.gmra.mxu0 %v341
        %v1423 = vpop.f32.mrf.mxu0
        %v1424 = vadd.f32 %v1215, %v1423
        %1425 = vmatmul.f32.gmra.mxu0 %v345
        %v1426 = vpop.f32.mrf.mxu0
        %v1427 = vadd.f32 %v1218, %v1426
        %1428 = vmatmul.f32.gmra.mxu0 %v349
        %v1429 = vpop.f32.mrf.mxu0
        %v1430 = vadd.f32 %v1221, %v1429
        %1431 = vmatmul.f32.gmra.mxu0 %v353
        %v1432 = vpop.f32.mrf.mxu0
        %v1433 = vadd.f32 %v1224, %v1432
        %1434 = vmatmul.f32.gmra.mxu0 %v357
        %v1435 = vpop.f32.mrf.mxu0
        %v1436 = vadd.f32 %v1227, %v1435
        %1437 = vmatmul.f32.gmra.mxu0 %v361
        %v1438 = vpop.f32.mrf.mxu0
        %v1439 = vadd.f32 %v1230, %v1438
        %1440 = vmatmul.f32.gmra.mxu0 %v365
        %v1441 = vpop.f32.mrf.mxu0
        %v1442 = vadd.f32 %v1233, %v1441
        %1443 = vmatmul.f32.gmra.mxu0 %v369
        %v1444 = vpop.f32.mrf.mxu0
        %v1445 = vadd.f32 %v1236, %v1444
        %1446 = vmatmul.f32.gmra.mxu0 %v373
        %v1447 = vpop.f32.mrf.mxu0
        %v1448 = vadd.f32 %v1239, %v1447
        %1449 = vmatmul.f32.gmra.mxu0 %v377
        %v1450 = vpop.f32.mrf.mxu0
        %v1451 = vadd.f32 %v1242, %v1450
        %1452 = vmatmul.f32.gmra.mxu0 %v381
        %v1453 = vpop.f32.mrf.mxu0
        %v1454 = vadd.f32 %v1245, %v1453
        %1455 = vmatmul.f32.gmra.mxu0 %v385
        %v1456 = vpop.f32.mrf.mxu0
        %v1457 = vadd.f32 %v1248, %v1456
        %1458 = vmatmul.f32.gmra.mxu0 %v389
        %v1459 = vpop.f32.mrf.mxu0
        %v1460 = vadd.f32 %v1251, %v1459
        %1461 = vmatmul.f32.gmra.mxu0 %v393
        %v1462 = vpop.f32.mrf.mxu0
        %v1463 = vadd.f32 %v1254, %v1462
        %1464 = vmatmul.f32.gmra.mxu0 %v397
        %v1465 = vpop.f32.mrf.mxu0
        %v1466 = vadd.f32 %v1257, %v1465
        %1467 = vmatmul.f32.gmra.mxu0 %v401
        %v1468 = vpop.f32.mrf.mxu0
        %v1469 = vadd.f32 %v1260, %v1468
        %1470 = vmatmul.f32.gmra.mxu0 %v405
        %v1471 = vpop.f32.mrf.mxu0
        %v1472 = vadd.f32 %v1263, %v1471
        %1473 = vmatmul.f32.gmra.mxu0 %v409
        %v1474 = vpop.f32.mrf.mxu0
        %v1475 = vadd.f32 %v1266, %v1474
        %1476 = vmatmul.f32.gmra.mxu0 %v413
        %v1477 = vpop.f32.mrf.mxu0
        %v1478 = vadd.f32 %v1269, %v1477
        %1479 = vmatmul.f32.gmra.mxu0 %v417
        %v1480 = vpop.f32.mrf.mxu0
        %v1481 = vadd.f32 %v1272, %v1480
        %1482 = vmatmul.f32.gmra.mxu0 %v421
        %v1483 = vpop.f32.mrf.mxu0
        %v1484 = vadd.f32 %v1275, %v1483
        %1485 = vmatmul.f32.gmra.mxu0 %v425
        %v1486 = vpop.f32.mrf.mxu0
        %v1487 = vadd.f32 %v1278, %v1486
        %1488 = vmatmul.f32.gmra.mxu0 %v429
        %v1489 = vpop.f32.mrf.mxu0
        %v1490 = vadd.f32 %v1281, %v1489
        %1491 = vmatmul.f32.gmra.mxu0 %v433
        %v1492 = vpop.f32.mrf.mxu0
        %v1493 = vadd.f32 %v1284, %v1492
        %1494 = vmatmul.f32.gmra.mxu0 %v437
        %v1495 = vpop.f32.mrf.mxu0
        %v1496 = vadd.f32 %v1287, %v1495
        %1497 = vmatmul.f32.gmra.mxu0 %v441
        %v1498 = vpop.f32.mrf.mxu0
        %v1499 = vadd.f32 %v1290, %v1498
        %1500 = vmatmul.f32.gmra.mxu0 %v445
        %v1501 = vpop.f32.mrf.mxu0
        %v1502 = vadd.f32 %v1293, %v1501
        %1503 = vmatmul.f32.gmra.mxu0 %v449
        %v1504 = vpop.f32.mrf.mxu0
        %v1505 = vadd.f32 %v1296, %v1504
        %1506 = vmatmul.f32.gmra.mxu0 %v453
        %v1507 = vpop.f32.mrf.mxu0
        %v1508 = vadd.f32 %v1299, %v1507
        %1509 = vmatmul.f32.gmra.mxu0 %v457
        %v1510 = vpop.f32.mrf.mxu0
        %v1511 = vadd.f32 %v1302, %v1510
        %1512 = vmatmul.f32.gmra.mxu0 %v461
        %v1513 = vpop.f32.mrf.mxu0
        %v1514 = vadd.f32 %v1305, %v1513
        %1515 = vmatmul.f32.gmra.mxu0 %v465
        %v1516 = vpop.f32.mrf.mxu0
        %v1517 = vadd.f32 %v1308, %v1516
        %1518 = vmatmul.f32.gmra.mxu0 %v469
        %v1519 = vpop.f32.mrf.mxu0
        %v1520 = vadd.f32 %v1311, %v1519
        %1521 = vmatmul.f32.gmra.mxu0 %v473
        %v1522 = vpop.f32.mrf.mxu0
        %v1523 = vadd.f32 %v1314, %v1522
        %1524 = vmatmul.f32.gmra.mxu0 %v477
        %v1525 = vpop.f32.mrf.mxu0
        %v1526 = vadd.f32 %v1317, %v1525
        %1527 = vmatmul.f32.gmra.mxu0 %v481
        %v1528 = vpop.f32.mrf.mxu0
        %v1529 = vadd.f32 %v1320, %v1528
        %1530 = vmatmul.f32.gmra.mxu0 %v485
        %v1531 = vpop.f32.mrf.mxu0
        %v1532 = vadd.f32 %v1323, %v1531
        %1533 = vmatmul.f32.gmra.mxu0 %v489
        %v1534 = vpop.f32.mrf.mxu0
        %v1535 = vadd.f32 %v1326, %v1534
        %1536 = vmatmul.f32.gmra.mxu0 %v493
        %v1537 = vpop.f32.mrf.mxu0
        %v1538 = vadd.f32 %v1329, %v1537
        %1539 = vmatmul.f32.gmra.mxu0 %v497
        %v1540 = vpop.f32.mrf.mxu0
        %v1541 = vadd.f32 %v1332, %v1540
        %1542 = vmatmul.f32.gmra.mxu0 %v501
        %v1543 = vpop.f32.mrf.mxu0
        %v1544 = vadd.f32 %v1335, %v1543
        %1545 = vmatmul.f32.gmra.mxu0 %v505
        %v1546 = vpop.f32.mrf.mxu0
        %v1547 = vadd.f32 %v1338, %v1546
        %1548 = vmatmul.f32.gmra.mxu0 %v509
        %v1549 = vpop.f32.mrf.mxu0
        %v1550 = vadd.f32 %v1341, %v1549
        %1551 = vmatmul.f32.gmra.mxu0 %v513
        %v1552 = vpop.f32.mrf.mxu0
        %v1553 = vadd.f32 %v1344, %v1552
        %1554 = vmatmul.f32.gmra.mxu0 %v517
        %v1555 = vpop.f32.mrf.mxu0
        %v1556 = vadd.f32 %v1347, %v1555
        %1557 = vmatmul.f32.gmra.mxu0 %v521
        %v1558 = vpop.f32.mrf.mxu0
        %v1559 = vadd.f32 %v1350, %v1558
        %1560 = vmatmul.f32.gmra.mxu0 %v525
        %v1561 = vpop.f32.mrf.mxu0
        %v1562 = vadd.f32 %v1353, %v1561
        %1563 = vmatmul.f32.gmra.mxu0 %v529
        %v1564 = vpop.f32.mrf.mxu0
        %v1565 = vadd.f32 %v1356, %v1564
        %1566 = vmatmul.f32.gmra.mxu0 %v533
        %v1567 = vpop.f32.mrf.mxu0
        %v1568 = vadd.f32 %v1359, %v1567
        %1569 = vmatmul.f32.gmra.mxu0 %v537
        %v1570 = vpop.f32.mrf.mxu0
        %v1571 = vadd.f32 %v1362, %v1570
        %1572 = vmatmul.f32.gmra.mxu0 %v541
        %v1573 = vpop.f32.mrf.mxu0
        %v1574 = vadd.f32 %v1365, %v1573
        %1575 = vmatmul.f32.gmra.mxu0 %v545
        %v1576 = vpop.f32.mrf.mxu0
        %v1577 = vadd.f32 %v1368, %v1576
        %1578 = vmatmul.f32.gmra.mxu0 %v549
        %v1579 = vpop.f32.mrf.mxu0
        %v1580 = vadd.f32 %v1371, %v1579
        %1581 = vmatmul.f32.gmra.mxu0 %v553
        %v1582 = vpop.f32.mrf.mxu0
        %v1583 = vadd.f32 %v1374, %v1582
        %1584 = vmatmul.f32.gmra.mxu0 %v557
        %v1585 = vpop.f32.mrf.mxu0
        %v1586 = vadd.f32 %v1377, %v1585
        %1587 = vmatmul.f32.gmra.mxu0 %v561
        %v1588 = vpop.f32.mrf.mxu0
        %v1589 = vadd.f32 %v1380, %v1588
        %1590 = vmatmul.f32.gmra.mxu0 %v565
        %v1591 = vpop.f32.mrf.mxu0
        %v1592 = vadd.f32 %v1383, %v1591
        %1593 = vdwg.mxu0
        %1594 = vmatpush.msra.mxu0 %v612
        %1595 = vmatpush.msra.mxu0 %v609
        %1596 = vmatpush.msra.mxu0 %v606
        %1597 = vmatpush.msra.mxu0 %v603
        %1598 = vmatpush.msra.mxu0 %v600
        %1599 = vmatpush.msra.mxu0 %v597
        %1600 = vmatpush.msra.mxu0 %v594
        %1601 = vmatpush.msra.mxu0 %v591
        %1602 = vmatpush.msra.mxu0 %v588
        %1603 = vmatpush.msra.mxu0 %v585
        %1604 = vmatpush.msra.mxu0 %v582
        %1605 = vmatpush.msra.mxu0 %v579
        %1606 = vmatpush.msra.mxu0 %v576
        %1607 = vmatpush.msra.mxu0 %v573
        %1608 = vmatpush.msra.mxu0 %v570
        %1609 = vmatpush.msra.mxu0 %v567
        %1610 = vmatmul.f32.gmra.mxu0 %v310
        %v1611 = vpop.f32.mrf.mxu0
        %v1612 = vadd.f32 0.0, %v1611
        %1613 = vmatmul.f32.gmra.mxu0 %v314
        %v1614 = vpop.f32.mrf.mxu0
        %v1615 = vadd.f32 0.0, %v1614
        %1616 = vmatmul.f32.gmra.mxu0 %v318
        %v1617 = vpop.f32.mrf.mxu0
        %v1618 = vadd.f32 0.0, %v1617
        %1619 = vmatmul.f32.gmra.mxu0 %v322
        %v1620 = vpop.f32.mrf.mxu0
        %v1621 = vadd.f32 0.0, %v1620
        %1622 = vmatmul.f32.gmra.mxu0 %v326
        %v1623 = vpop.f32.mrf.mxu0
        %v1624 = vadd.f32 0.0, %v1623
        %1625 = vmatmul.f32.gmra.mxu0 %v330
        %v1626 = vpop.f32.mrf.mxu0
        %v1627 = vadd.f32 0.0, %v1626
        %1628 = vmatmul.f32.gmra.mxu0 %v334
        %v1629 = vpop.f32.mrf.mxu0
        %v1630 = vadd.f32 0.0, %v1629
        %1631 = vmatmul.f32.gmra.mxu0 %v338
        %v1632 = vpop.f32.mrf.mxu0
        %v1633 = vadd.f32 0.0, %v1632
        %1634 = vmatmul.f32.gmra.mxu0 %v342
        %v1635 = vpop.f32.mrf.mxu0
        %v1636 = vadd.f32 0.0, %v1635
        %1637 = vmatmul.f32.gmra.mxu0 %v346
        %v1638 = vpop.f32.mrf.mxu0
        %v1639 = vadd.f32 0.0, %v1638
        %1640 = vmatmul.f32.gmra.mxu0 %v350
        %v1641 = vpop.f32.mrf.mxu0
        %v1642 = vadd.f32 0.0, %v1641
        %1643 = vmatmul.f32.gmra.mxu0 %v354
        %v1644 = vpop.f32.mrf.mxu0
        %v1645 = vadd.f32 0.0, %v1644
        %1646 = vmatmul.f32.gmra.mxu0 %v358
        %v1647 = vpop.f32.mrf.mxu0
        %v1648 = vadd.f32 0.0, %v1647
        %1649 = vmatmul.f32.gmra.mxu0 %v362
        %v1650 = vpop.f32.mrf.mxu0
        %v1651 = vadd.f32 0.0, %v1650
        %1652 = vmatmul.f32.gmra.mxu0 %v366
        %v1653 = vpop.f32.mrf.mxu0
        %v1654 = vadd.f32 0.0, %v1653
        %1655 = vmatmul.f32.gmra.mxu0 %v370
        %v1656 = vpop.f32.mrf.mxu0
        %v1657 = vadd.f32 0.0, %v1656
        %1658 = vmatmul.f32.gmra.mxu0 %v374
        %v1659 = vpop.f32.mrf.mxu0
        %v1660 = vadd.f32 0.0, %v1659
        %1661 = vmatmul.f32.gmra.mxu0 %v378
        %v1662 = vpop.f32.mrf.mxu0
        %v1663 = vadd.f32 0.0, %v1662
        %1664 = vmatmul.f32.gmra.mxu0 %v382
        %v1665 = vpop.f32.mrf.mxu0
        %v1666 = vadd.f32 0.0, %v1665
        %1667 = vmatmul.f32.gmra.mxu0 %v386
        %v1668 = vpop.f32.mrf.mxu0
        %v1669 = vadd.f32 0.0, %v1668
        %1670 = vmatmul.f32.gmra.mxu0 %v390
        %v1671 = vpop.f32.mrf.mxu0
        %v1672 = vadd.f32 0.0, %v1671
        %1673 = vmatmul.f32.gmra.mxu0 %v394
        %v1674 = vpop.f32.mrf.mxu0
        %v1675 = vadd.f32 0.0, %v1674
        %1676 = vmatmul.f32.gmra.mxu0 %v398
        %v1677 = vpop.f32.mrf.mxu0
        %v1678 = vadd.f32 0.0, %v1677
        %1679 = vmatmul.f32.gmra.mxu0 %v402
        %v1680 = vpop.f32.mrf.mxu0
        %v1681 = vadd.f32 0.0, %v1680
        %1682 = vmatmul.f32.gmra.mxu0 %v406
        %v1683 = vpop.f32.mrf.mxu0
        %v1684 = vadd.f32 0.0, %v1683
        %1685 = vmatmul.f32.gmra.mxu0 %v410
        %v1686 = vpop.f32.mrf.mxu0
        %v1687 = vadd.f32 0.0, %v1686
        %1688 = vmatmul.f32.gmra.mxu0 %v414
        %v1689 = vpop.f32.mrf.mxu0
        %v1690 = vadd.f32 0.0, %v1689
        %1691 = vmatmul.f32.gmra.mxu0 %v418
        %v1692 = vpop.f32.mrf.mxu0
        %v1693 = vadd.f32 0.0, %v1692
        %1694 = vmatmul.f32.gmra.mxu0 %v422
        %v1695 = vpop.f32.mrf.mxu0
        %v1696 = vadd.f32 0.0, %v1695
        %1697 = vmatmul.f32.gmra.mxu0 %v426
        %v1698 = vpop.f32.mrf.mxu0
        %v1699 = vadd.f32 0.0, %v1698
        %1700 = vmatmul.f32.gmra.mxu0 %v430
        %v1701 = vpop.f32.mrf.mxu0
        %v1702 = vadd.f32 0.0, %v1701
        %1703 = vmatmul.f32.gmra.mxu0 %v434
        %v1704 = vpop.f32.mrf.mxu0
        %v1705 = vadd.f32 0.0, %v1704
        %1706 = vmatmul.f32.gmra.mxu0 %v438
        %v1707 = vpop.f32.mrf.mxu0
        %v1708 = vadd.f32 0.0, %v1707
        %1709 = vmatmul.f32.gmra.mxu0 %v442
        %v1710 = vpop.f32.mrf.mxu0
        %v1711 = vadd.f32 0.0, %v1710
        %1712 = vmatmul.f32.gmra.mxu0 %v446
        %v1713 = vpop.f32.mrf.mxu0
        %v1714 = vadd.f32 0.0, %v1713
        %1715 = vmatmul.f32.gmra.mxu0 %v450
        %v1716 = vpop.f32.mrf.mxu0
        %v1717 = vadd.f32 0.0, %v1716
        %1718 = vmatmul.f32.gmra.mxu0 %v454
        %v1719 = vpop.f32.mrf.mxu0
        %v1720 = vadd.f32 0.0, %v1719
        %1721 = vmatmul.f32.gmra.mxu0 %v458
        %v1722 = vpop.f32.mrf.mxu0
        %v1723 = vadd.f32 0.0, %v1722
        %1724 = vmatmul.f32.gmra.mxu0 %v462
        %v1725 = vpop.f32.mrf.mxu0
        %v1726 = vadd.f32 0.0, %v1725
        %1727 = vmatmul.f32.gmra.mxu0 %v466
        %v1728 = vpop.f32.mrf.mxu0
        %v1729 = vadd.f32 0.0, %v1728
        %1730 = vmatmul.f32.gmra.mxu0 %v470
        %v1731 = vpop.f32.mrf.mxu0
        %v1732 = vadd.f32 0.0, %v1731
        %1733 = vmatmul.f32.gmra.mxu0 %v474
        %v1734 = vpop.f32.mrf.mxu0
        %v1735 = vadd.f32 0.0, %v1734
        %1736 = vmatmul.f32.gmra.mxu0 %v478
        %v1737 = vpop.f32.mrf.mxu0
        %v1738 = vadd.f32 0.0, %v1737
        %1739 = vmatmul.f32.gmra.mxu0 %v482
        %v1740 = vpop.f32.mrf.mxu0
        %v1741 = vadd.f32 0.0, %v1740
        %1742 = vmatmul.f32.gmra.mxu0 %v486
        %v1743 = vpop.f32.mrf.mxu0
        %v1744 = vadd.f32 0.0, %v1743
        %1745 = vmatmul.f32.gmra.mxu0 %v490
        %v1746 = vpop.f32.mrf.mxu0
        %v1747 = vadd.f32 0.0, %v1746
        %1748 = vmatmul.f32.gmra.mxu0 %v494
        %v1749 = vpop.f32.mrf.mxu0
        %v1750 = vadd.f32 0.0, %v1749
        %1751 = vmatmul.f32.gmra.mxu0 %v498
        %v1752 = vpop.f32.mrf.mxu0
        %v1753 = vadd.f32 0.0, %v1752
        %1754 = vmatmul.f32.gmra.mxu0 %v502
        %v1755 = vpop.f32.mrf.mxu0
        %v1756 = vadd.f32 0.0, %v1755
        %1757 = vmatmul.f32.gmra.mxu0 %v506
        %v1758 = vpop.f32.mrf.mxu0
        %v1759 = vadd.f32 0.0, %v1758
        %1760 = vmatmul.f32.gmra.mxu0 %v510
        %v1761 = vpop.f32.mrf.mxu0
        %v1762 = vadd.f32 0.0, %v1761
        %1763 = vmatmul.f32.gmra.mxu0 %v514
        %v1764 = vpop.f32.mrf.mxu0
        %v1765 = vadd.f32 0.0, %v1764
        %1766 = vmatmul.f32.gmra.mxu0 %v518
        %v1767 = vpop.f32.mrf.mxu0
        %v1768 = vadd.f32 0.0, %v1767
        %1769 = vmatmul.f32.gmra.mxu0 %v522
        %v1770 = vpop.f32.mrf.mxu0
        %v1771 = vadd.f32 0.0, %v1770
        %1772 = vmatmul.f32.gmra.mxu0 %v526
        %v1773 = vpop.f32.mrf.mxu0
        %v1774 = vadd.f32 0.0, %v1773
        %1775 = vmatmul.f32.gmra.mxu0 %v530
        %v1776 = vpop.f32.mrf.mxu0
        %v1777 = vadd.f32 0.0, %v1776
        %1778 = vmatmul.f32.gmra.mxu0 %v534
        %v1779 = vpop.f32.mrf.mxu0
        %v1780 = vadd.f32 0.0, %v1779
        %1781 = vmatmul.f32.gmra.mxu0 %v538
        %v1782 = vpop.f32.mrf.mxu0
        %v1783 = vadd.f32 0.0, %v1782
        %1784 = vmatmul.f32.gmra.mxu0 %v542
        %v1785 = vpop.f32.mrf.mxu0
        %v1786 = vadd.f32 0.0, %v1785
        %1787 = vmatmul.f32.gmra.mxu0 %v546
        %v1788 = vpop.f32.mrf.mxu0
        %v1789 = vadd.f32 0.0, %v1788
        %1790 = vmatmul.f32.gmra.mxu0 %v550
        %v1791 = vpop.f32.mrf.mxu0
        %v1792 = vadd.f32 0.0, %v1791
        %1793 = vmatmul.f32.gmra.mxu0 %v554
        %v1794 = vpop.f32.mrf.mxu0
        %v1795 = vadd.f32 0.0, %v1794
        %1796 = vmatmul.f32.gmra.mxu0 %v558
        %v1797 = vpop.f32.mrf.mxu0
        %v1798 = vadd.f32 0.0, %v1797
        %1799 = vmatmul.f32.gmra.mxu0 %v562
        %v1800 = vpop.f32.mrf.mxu0
        %v1801 = vadd.f32 0.0, %v1800
        %1802 = vdwg.mxu0
        %1803 = vmatpush.msra.mxu0 %v660
        %1804 = vmatpush.msra.mxu0 %v657
        %1805 = vmatpush.msra.mxu0 %v654
        %1806 = vmatpush.msra.mxu0 %v651
        %1807 = vmatpush.msra.mxu0 %v648
        %1808 = vmatpush.msra.mxu0 %v645
        %1809 = vmatpush.msra.mxu0 %v642
        %1810 = vmatpush.msra.mxu0 %v639
        %1811 = vmatpush.msra.mxu0 %v636
        %1812 = vmatpush.msra.mxu0 %v633
        %1813 = vmatpush.msra.mxu0 %v630
        %1814 = vmatpush.msra.mxu0 %v627
        %1815 = vmatpush.msra.mxu0 %v624
        %1816 = vmatpush.msra.mxu0 %v621
        %1817 = vmatpush.msra.mxu0 %v618
        %1818 = vmatpush.msra.mxu0 %v615
        %1819 = vmatmul.f32.gmra.mxu0 %v311
        %v1820 = vpop.f32.mrf.mxu0
        %v1821 = vadd.f32 %v1612, %v1820
        %1822 = vmatmul.f32.gmra.mxu0 %v315
        %v1823 = vpop.f32.mrf.mxu0
        %v1824 = vadd.f32 %v1615, %v1823
        %1825 = vmatmul.f32.gmra.mxu0 %v319
        %v1826 = vpop.f32.mrf.mxu0
        %v1827 = vadd.f32 %v1618, %v1826
        %1828 = vmatmul.f32.gmra.mxu0 %v323
        %v1829 = vpop.f32.mrf.mxu0
        %v1830 = vadd.f32 %v1621, %v1829
        %1831 = vmatmul.f32.gmra.mxu0 %v327
        %v1832 = vpop.f32.mrf.mxu0
        %v1833 = vadd.f32 %v1624, %v1832
        %1834 = vmatmul.f32.gmra.mxu0 %v331
        %v1835 = vpop.f32.mrf.mxu0
        %v1836 = vadd.f32 %v1627, %v1835
        %1837 = vmatmul.f32.gmra.mxu0 %v335
        %v1838 = vpop.f32.mrf.mxu0
        %v1839 = vadd.f32 %v1630, %v1838
        %1840 = vmatmul.f32.gmra.mxu0 %v339
        %v1841 = vpop.f32.mrf.mxu0
        %v1842 = vadd.f32 %v1633, %v1841
        %1843 = vmatmul.f32.gmra.mxu0 %v343
        %v1844 = vpop.f32.mrf.mxu0
        %v1845 = vadd.f32 %v1636, %v1844
        %1846 = vmatmul.f32.gmra.mxu0 %v347
        %v1847 = vpop.f32.mrf.mxu0
        %v1848 = vadd.f32 %v1639, %v1847
        %1849 = vmatmul.f32.gmra.mxu0 %v351
        %v1850 = vpop.f32.mrf.mxu0
        %v1851 = vadd.f32 %v1642, %v1850
        %1852 = vmatmul.f32.gmra.mxu0 %v355
        %v1853 = vpop.f32.mrf.mxu0
        %v1854 = vadd.f32 %v1645, %v1853
        %1855 = vmatmul.f32.gmra.mxu0 %v359
        %v1856 = vpop.f32.mrf.mxu0
        %v1857 = vadd.f32 %v1648, %v1856
        %1858 = vmatmul.f32.gmra.mxu0 %v363
        %v1859 = vpop.f32.mrf.mxu0
        %v1860 = vadd.f32 %v1651, %v1859
        %1861 = vmatmul.f32.gmra.mxu0 %v367
        %v1862 = vpop.f32.mrf.mxu0
        %v1863 = vadd.f32 %v1654, %v1862
        %1864 = vmatmul.f32.gmra.mxu0 %v371
        %v1865 = vpop.f32.mrf.mxu0
        %v1866 = vadd.f32 %v1657, %v1865
        %1867 = vmatmul.f32.gmra.mxu0 %v375
        %v1868 = vpop.f32.mrf.mxu0
        %v1869 = vadd.f32 %v1660, %v1868
        %1870 = vmatmul.f32.gmra.mxu0 %v379
        %v1871 = vpop.f32.mrf.mxu0
        %v1872 = vadd.f32 %v1663, %v1871
        %1873 = vmatmul.f32.gmra.mxu0 %v383
        %v1874 = vpop.f32.mrf.mxu0
        %v1875 = vadd.f32 %v1666, %v1874
        %1876 = vmatmul.f32.gmra.mxu0 %v387
        %v1877 = vpop.f32.mrf.mxu0
        %v1878 = vadd.f32 %v1669, %v1877
        %1879 = vmatmul.f32.gmra.mxu0 %v391
        %v1880 = vpop.f32.mrf.mxu0
        %v1881 = vadd.f32 %v1672, %v1880
        %1882 = vmatmul.f32.gmra.mxu0 %v395
        %v1883 = vpop.f32.mrf.mxu0
        %v1884 = vadd.f32 %v1675, %v1883
        %1885 = vmatmul.f32.gmra.mxu0 %v399
        %v1886 = vpop.f32.mrf.mxu0
        %v1887 = vadd.f32 %v1678, %v1886
        %1888 = vmatmul.f32.gmra.mxu0 %v403
        %v1889 = vpop.f32.mrf.mxu0
        %v1890 = vadd.f32 %v1681, %v1889
        %1891 = vmatmul.f32.gmra.mxu0 %v407
        %v1892 = vpop.f32.mrf.mxu0
        %v1893 = vadd.f32 %v1684, %v1892
        %1894 = vmatmul.f32.gmra.mxu0 %v411
        %v1895 = vpop.f32.mrf.mxu0
        %v1896 = vadd.f32 %v1687, %v1895
        %1897 = vmatmul.f32.gmra.mxu0 %v415
        %v1898 = vpop.f32.mrf.mxu0
        %v1899 = vadd.f32 %v1690, %v1898
        %1900 = vmatmul.f32.gmra.mxu0 %v419
        %v1901 = vpop.f32.mrf.mxu0
        %v1902 = vadd.f32 %v1693, %v1901
        %1903 = vmatmul.f32.gmra.mxu0 %v423
        %v1904 = vpop.f32.mrf.mxu0
        %v1905 = vadd.f32 %v1696, %v1904
        %1906 = vmatmul.f32.gmra.mxu0 %v427
        %v1907 = vpop.f32.mrf.mxu0
        %v1908 = vadd.f32 %v1699, %v1907
        %1909 = vmatmul.f32.gmra.mxu0 %v431
        %v1910 = vpop.f32.mrf.mxu0
        %v1911 = vadd.f32 %v1702, %v1910
        %1912 = vmatmul.f32.gmra.mxu0 %v435
        %v1913 = vpop.f32.mrf.mxu0
        %v1914 = vadd.f32 %v1705, %v1913
        %1915 = vmatmul.f32.gmra.mxu0 %v439
        %v1916 = vpop.f32.mrf.mxu0
        %v1917 = vadd.f32 %v1708, %v1916
        %1918 = vmatmul.f32.gmra.mxu0 %v443
        %v1919 = vpop.f32.mrf.mxu0
        %v1920 = vadd.f32 %v1711, %v1919
        %1921 = vmatmul.f32.gmra.mxu0 %v447
        %v1922 = vpop.f32.mrf.mxu0
        %v1923 = vadd.f32 %v1714, %v1922
        %1924 = vmatmul.f32.gmra.mxu0 %v451
        %v1925 = vpop.f32.mrf.mxu0
        %v1926 = vadd.f32 %v1717, %v1925
        %1927 = vmatmul.f32.gmra.mxu0 %v455
        %v1928 = vpop.f32.mrf.mxu0
        %v1929 = vadd.f32 %v1720, %v1928
        %1930 = vmatmul.f32.gmra.mxu0 %v459
        %v1931 = vpop.f32.mrf.mxu0
        %v1932 = vadd.f32 %v1723, %v1931
        %1933 = vmatmul.f32.gmra.mxu0 %v463
        %v1934 = vpop.f32.mrf.mxu0
        %v1935 = vadd.f32 %v1726, %v1934
        %1936 = vmatmul.f32.gmra.mxu0 %v467
        %v1937 = vpop.f32.mrf.mxu0
        %v1938 = vadd.f32 %v1729, %v1937
        %1939 = vmatmul.f32.gmra.mxu0 %v471
        %v1940 = vpop.f32.mrf.mxu0
        %v1941 = vadd.f32 %v1732, %v1940
        %1942 = vmatmul.f32.gmra.mxu0 %v475
        %v1943 = vpop.f32.mrf.mxu0
        %v1944 = vadd.f32 %v1735, %v1943
        %1945 = vmatmul.f32.gmra.mxu0 %v479
        %v1946 = vpop.f32.mrf.mxu0
        %v1947 = vadd.f32 %v1738, %v1946
        %1948 = vmatmul.f32.gmra.mxu0 %v483
        %v1949 = vpop.f32.mrf.mxu0
        %v1950 = vadd.f32 %v1741, %v1949
        %1951 = vmatmul.f32.gmra.mxu0 %v487
        %v1952 = vpop.f32.mrf.mxu0
        %v1953 = vadd.f32 %v1744, %v1952
        %1954 = vmatmul.f32.gmra.mxu0 %v491
        %v1955 = vpop.f32.mrf.mxu0
        %v1956 = vadd.f32 %v1747, %v1955
        %1957 = vmatmul.f32.gmra.mxu0 %v495
        %v1958 = vpop.f32.mrf.mxu0
        %v1959 = vadd.f32 %v1750, %v1958
        %1960 = vmatmul.f32.gmra.mxu0 %v499
        %v1961 = vpop.f32.mrf.mxu0
        %v1962 = vadd.f32 %v1753, %v1961
        %1963 = vmatmul.f32.gmra.mxu0 %v503
        %v1964 = vpop.f32.mrf.mxu0
        %v1965 = vadd.f32 %v1756, %v1964
        %1966 = vmatmul.f32.gmra.mxu0 %v507
        %v1967 = vpop.f32.mrf.mxu0
        %v1968 = vadd.f32 %v1759, %v1967
        %1969 = vmatmul.f32.gmra.mxu0 %v511
        %v1970 = vpop.f32.mrf.mxu0
        %v1971 = vadd.f32 %v1762, %v1970
        %1972 = vmatmul.f32.gmra.mxu0 %v515
        %v1973 = vpop.f32.mrf.mxu0
        %v1974 = vadd.f32 %v1765, %v1973
        %1975 = vmatmul.f32.gmra.mxu0 %v519
        %v1976 = vpop.f32.mrf.mxu0
        %v1977 = vadd.f32 %v1768, %v1976
        %1978 = vmatmul.f32.gmra.mxu0 %v523
        %v1979 = vpop.f32.mrf.mxu0
        %v1980 = vadd.f32 %v1771, %v1979
        %1981 = vmatmul.f32.gmra.mxu0 %v527
        %v1982 = vpop.f32.mrf.mxu0
        %v1983 = vadd.f32 %v1774, %v1982
        %1984 = vmatmul.f32.gmra.mxu0 %v531
        %v1985 = vpop.f32.mrf.mxu0
        %v1986 = vadd.f32 %v1777, %v1985
        %1987 = vmatmul.f32.gmra.mxu0 %v535
        %v1988 = vpop.f32.mrf.mxu0
        %v1989 = vadd.f32 %v1780, %v1988
        %1990 = vmatmul.f32.gmra.mxu0 %v539
        %v1991 = vpop.f32.mrf.mxu0
        %v1992 = vadd.f32 %v1783, %v1991
        %1993 = vmatmul.f32.gmra.mxu0 %v543
        %v1994 = vpop.f32.mrf.mxu0
        %v1995 = vadd.f32 %v1786, %v1994
        %1996 = vmatmul.f32.gmra.mxu0 %v547
        %v1997 = vpop.f32.mrf.mxu0
        %v1998 = vadd.f32 %v1789, %v1997
        %1999 = vmatmul.f32.gmra.mxu0 %v551
        %v2000 = vpop.f32.mrf.mxu0
        %v2001 = vadd.f32 %v1792, %v2000
        %2002 = vmatmul.f32.gmra.mxu0 %v555
        %v2003 = vpop.f32.mrf.mxu0
        %v2004 = vadd.f32 %v1795, %v2003
        %2005 = vmatmul.f32.gmra.mxu0 %v559
        %v2006 = vpop.f32.mrf.mxu0
        %v2007 = vadd.f32 %v1798, %v2006
        %2008 = vmatmul.f32.gmra.mxu0 %v563
        %v2009 = vpop.f32.mrf.mxu0
        %v2010 = vadd.f32 %v1801, %v2009
        %2011 = vdwg.mxu0
        %2012 = vmatpush.msra.mxu0 %v708
        %2013 = vmatpush.msra.mxu0 %v705
        %2014 = vmatpush.msra.mxu0 %v702
        %2015 = vmatpush.msra.mxu0 %v699
        %2016 = vmatpush.msra.mxu0 %v696
        %2017 = vmatpush.msra.mxu0 %v693
        %2018 = vmatpush.msra.mxu0 %v690
        %2019 = vmatpush.msra.mxu0 %v687
        %2020 = vmatpush.msra.mxu0 %v684
        %2021 = vmatpush.msra.mxu0 %v681
        %2022 = vmatpush.msra.mxu0 %v678
        %2023 = vmatpush.msra.mxu0 %v675
        %2024 = vmatpush.msra.mxu0 %v672
        %2025 = vmatpush.msra.mxu0 %v669
        %2026 = vmatpush.msra.mxu0 %v666
        %2027 = vmatpush.msra.mxu0 %v663
        %2028 = vmatmul.f32.gmra.mxu0 %v312
        %v2029 = vpop.f32.mrf.mxu0
        %v2030 = vadd.f32 %v1821, %v2029
        %2031 = vmatmul.f32.gmra.mxu0 %v316
        %v2032 = vpop.f32.mrf.mxu0
        %v2033 = vadd.f32 %v1824, %v2032
        %2034 = vmatmul.f32.gmra.mxu0 %v320
        %v2035 = vpop.f32.mrf.mxu0
        %v2036 = vadd.f32 %v1827, %v2035
        %2037 = vmatmul.f32.gmra.mxu0 %v324
        %v2038 = vpop.f32.mrf.mxu0
        %v2039 = vadd.f32 %v1830, %v2038
        %2040 = vmatmul.f32.gmra.mxu0 %v328
        %v2041 = vpop.f32.mrf.mxu0
        %v2042 = vadd.f32 %v1833, %v2041
        %2043 = vmatmul.f32.gmra.mxu0 %v332
        %v2044 = vpop.f32.mrf.mxu0
        %v2045 = vadd.f32 %v1836, %v2044
        %2046 = vmatmul.f32.gmra.mxu0 %v336
        %v2047 = vpop.f32.mrf.mxu0
        %v2048 = vadd.f32 %v1839, %v2047
        %2049 = vmatmul.f32.gmra.mxu0 %v340
        %v2050 = vpop.f32.mrf.mxu0
        %v2051 = vadd.f32 %v1842, %v2050
        %2052 = vmatmul.f32.gmra.mxu0 %v344
        %v2053 = vpop.f32.mrf.mxu0
        %v2054 = vadd.f32 %v1845, %v2053
        %2055 = vmatmul.f32.gmra.mxu0 %v348
        %v2056 = vpop.f32.mrf.mxu0
        %v2057 = vadd.f32 %v1848, %v2056
        %2058 = vmatmul.f32.gmra.mxu0 %v352
        %v2059 = vpop.f32.mrf.mxu0
        %v2060 = vadd.f32 %v1851, %v2059
        %2061 = vmatmul.f32.gmra.mxu0 %v356
        %v2062 = vpop.f32.mrf.mxu0
        %v2063 = vadd.f32 %v1854, %v2062
        %2064 = vmatmul.f32.gmra.mxu0 %v360
        %v2065 = vpop.f32.mrf.mxu0
        %v2066 = vadd.f32 %v1857, %v2065
        %2067 = vmatmul.f32.gmra.mxu0 %v364
        %v2068 = vpop.f32.mrf.mxu0
        %v2069 = vadd.f32 %v1860, %v2068
        %2070 = vmatmul.f32.gmra.mxu0 %v368
        %v2071 = vpop.f32.mrf.mxu0
        %v2072 = vadd.f32 %v1863, %v2071
        %2073 = vmatmul.f32.gmra.mxu0 %v372
        %v2074 = vpop.f32.mrf.mxu0
        %v2075 = vadd.f32 %v1866, %v2074
        %2076 = vmatmul.f32.gmra.mxu0 %v376
        %v2077 = vpop.f32.mrf.mxu0
        %v2078 = vadd.f32 %v1869, %v2077
        %2079 = vmatmul.f32.gmra.mxu0 %v380
        %v2080 = vpop.f32.mrf.mxu0
        %v2081 = vadd.f32 %v1872, %v2080
        %2082 = vmatmul.f32.gmra.mxu0 %v384
        %v2083 = vpop.f32.mrf.mxu0
        %v2084 = vadd.f32 %v1875, %v2083
        %2085 = vmatmul.f32.gmra.mxu0 %v388
        %v2086 = vpop.f32.mrf.mxu0
        %v2087 = vadd.f32 %v1878, %v2086
        %2088 = vmatmul.f32.gmra.mxu0 %v392
        %v2089 = vpop.f32.mrf.mxu0
        %v2090 = vadd.f32 %v1881, %v2089
        %2091 = vmatmul.f32.gmra.mxu0 %v396
        %v2092 = vpop.f32.mrf.mxu0
        %v2093 = vadd.f32 %v1884, %v2092
        %2094 = vmatmul.f32.gmra.mxu0 %v400
        %v2095 = vpop.f32.mrf.mxu0
        %v2096 = vadd.f32 %v1887, %v2095
        %2097 = vmatmul.f32.gmra.mxu0 %v404
        %v2098 = vpop.f32.mrf.mxu0
        %v2099 = vadd.f32 %v1890, %v2098
        %2100 = vmatmul.f32.gmra.mxu0 %v408
        %v2101 = vpop.f32.mrf.mxu0
        %v2102 = vadd.f32 %v1893, %v2101
        %2103 = vmatmul.f32.gmra.mxu0 %v412
        %v2104 = vpop.f32.mrf.mxu0
        %v2105 = vadd.f32 %v1896, %v2104
        %2106 = vmatmul.f32.gmra.mxu0 %v416
        %v2107 = vpop.f32.mrf.mxu0
        %v2108 = vadd.f32 %v1899, %v2107
        %2109 = vmatmul.f32.gmra.mxu0 %v420
        %v2110 = vpop.f32.mrf.mxu0
        %v2111 = vadd.f32 %v1902, %v2110
        %2112 = vmatmul.f32.gmra.mxu0 %v424
        %v2113 = vpop.f32.mrf.mxu0
        %v2114 = vadd.f32 %v1905, %v2113
        %2115 = vmatmul.f32.gmra.mxu0 %v428
        %v2116 = vpop.f32.mrf.mxu0
        %v2117 = vadd.f32 %v1908, %v2116
        %2118 = vmatmul.f32.gmra.mxu0 %v432
        %v2119 = vpop.f32.mrf.mxu0
        %v2120 = vadd.f32 %v1911, %v2119
        %2121 = vmatmul.f32.gmra.mxu0 %v436
        %v2122 = vpop.f32.mrf.mxu0
        %v2123 = vadd.f32 %v1914, %v2122
        %2124 = vmatmul.f32.gmra.mxu0 %v440
        %v2125 = vpop.f32.mrf.mxu0
        %v2126 = vadd.f32 %v1917, %v2125
        %2127 = vmatmul.f32.gmra.mxu0 %v444
        %v2128 = vpop.f32.mrf.mxu0
        %v2129 = vadd.f32 %v1920, %v2128
        %2130 = vmatmul.f32.gmra.mxu0 %v448
        %v2131 = vpop.f32.mrf.mxu0
        %v2132 = vadd.f32 %v1923, %v2131
        %2133 = vmatmul.f32.gmra.mxu0 %v452
        %v2134 = vpop.f32.mrf.mxu0
        %v2135 = vadd.f32 %v1926, %v2134
        %2136 = vmatmul.f32.gmra.mxu0 %v456
        %v2137 = vpop.f32.mrf.mxu0
        %v2138 = vadd.f32 %v1929, %v2137
        %2139 = vmatmul.f32.gmra.mxu0 %v460
        %v2140 = vpop.f32.mrf.mxu0
        %v2141 = vadd.f32 %v1932, %v2140
        %2142 = vmatmul.f32.gmra.mxu0 %v464
        %v2143 = vpop.f32.mrf.mxu0
        %v2144 = vadd.f32 %v1935, %v2143
        %2145 = vmatmul.f32.gmra.mxu0 %v468
        %v2146 = vpop.f32.mrf.mxu0
        %v2147 = vadd.f32 %v1938, %v2146
        %2148 = vmatmul.f32.gmra.mxu0 %v472
        %v2149 = vpop.f32.mrf.mxu0
        %v2150 = vadd.f32 %v1941, %v2149
        %2151 = vmatmul.f32.gmra.mxu0 %v476
        %v2152 = vpop.f32.mrf.mxu0
        %v2153 = vadd.f32 %v1944, %v2152
        %2154 = vmatmul.f32.gmra.mxu0 %v480
        %v2155 = vpop.f32.mrf.mxu0
        %v2156 = vadd.f32 %v1947, %v2155
        %2157 = vmatmul.f32.gmra.mxu0 %v484
        %v2158 = vpop.f32.mrf.mxu0
        %v2159 = vadd.f32 %v1950, %v2158
        %2160 = vmatmul.f32.gmra.mxu0 %v488
        %v2161 = vpop.f32.mrf.mxu0
        %v2162 = vadd.f32 %v1953, %v2161
        %2163 = vmatmul.f32.gmra.mxu0 %v492
        %v2164 = vpop.f32.mrf.mxu0
        %v2165 = vadd.f32 %v1956, %v2164
        %2166 = vmatmul.f32.gmra.mxu0 %v496
        %v2167 = vpop.f32.mrf.mxu0
        %v2168 = vadd.f32 %v1959, %v2167
        %2169 = vmatmul.f32.gmra.mxu0 %v500
        %v2170 = vpop.f32.mrf.mxu0
        %v2171 = vadd.f32 %v1962, %v2170
        %2172 = vmatmul.f32.gmra.mxu0 %v504
        %v2173 = vpop.f32.mrf.mxu0
        %v2174 = vadd.f32 %v1965, %v2173
        %2175 = vmatmul.f32.gmra.mxu0 %v508
        %v2176 = vpop.f32.mrf.mxu0
        %v2177 = vadd.f32 %v1968, %v2176
        %2178 = vmatmul.f32.gmra.mxu0 %v512
        %v2179 = vpop.f32.mrf.mxu0
        %v2180 = vadd.f32 %v1971, %v2179
        %2181 = vmatmul.f32.gmra.mxu0 %v516
        %v2182 = vpop.f32.mrf.mxu0
        %v2183 = vadd.f32 %v1974, %v2182
        %2184 = vmatmul.f32.gmra.mxu0 %v520
        %v2185 = vpop.f32.mrf.mxu0
        %v2186 = vadd.f32 %v1977, %v2185
        %2187 = vmatmul.f32.gmra.mxu0 %v524
        %v2188 = vpop.f32.mrf.mxu0
        %v2189 = vadd.f32 %v1980, %v2188
        %2190 = vmatmul.f32.gmra.mxu0 %v528
        %v2191 = vpop.f32.mrf.mxu0
        %v2192 = vadd.f32 %v1983, %v2191
        %2193 = vmatmul.f32.gmra.mxu0 %v532
        %v2194 = vpop.f32.mrf.mxu0
        %v2195 = vadd.f32 %v1986, %v2194
        %2196 = vmatmul.f32.gmra.mxu0 %v536
        %v2197 = vpop.f32.mrf.mxu0
        %v2198 = vadd.f32 %v1989, %v2197
        %2199 = vmatmul.f32.gmra.mxu0 %v540
        %v2200 = vpop.f32.mrf.mxu0
        %v2201 = vadd.f32 %v1992, %v2200
        %2202 = vmatmul.f32.gmra.mxu0 %v544
        %v2203 = vpop.f32.mrf.mxu0
        %v2204 = vadd.f32 %v1995, %v2203
        %2205 = vmatmul.f32.gmra.mxu0 %v548
        %v2206 = vpop.f32.mrf.mxu0
        %v2207 = vadd.f32 %v1998, %v2206
        %2208 = vmatmul.f32.gmra.mxu0 %v552
        %v2209 = vpop.f32.mrf.mxu0
        %v2210 = vadd.f32 %v2001, %v2209
        %2211 = vmatmul.f32.gmra.mxu0 %v556
        %v2212 = vpop.f32.mrf.mxu0
        %v2213 = vadd.f32 %v2004, %v2212
        %2214 = vmatmul.f32.gmra.mxu0 %v560
        %v2215 = vpop.f32.mrf.mxu0
        %v2216 = vadd.f32 %v2007, %v2215
        %2217 = vmatmul.f32.gmra.mxu0 %v564
        %v2218 = vpop.f32.mrf.mxu0
        %v2219 = vadd.f32 %v2010, %v2218
        %2220 = vdwg.mxu0
        %2221 = vmatpush.msra.mxu0 %v756
        %2222 = vmatpush.msra.mxu0 %v753
        %2223 = vmatpush.msra.mxu0 %v750
        %2224 = vmatpush.msra.mxu0 %v747
        %2225 = vmatpush.msra.mxu0 %v744
        %2226 = vmatpush.msra.mxu0 %v741
        %2227 = vmatpush.msra.mxu0 %v738
        %2228 = vmatpush.msra.mxu0 %v735
        %2229 = vmatpush.msra.mxu0 %v732
        %2230 = vmatpush.msra.mxu0 %v729
        %2231 = vmatpush.msra.mxu0 %v726
        %2232 = vmatpush.msra.mxu0 %v723
        %2233 = vmatpush.msra.mxu0 %v720
        %2234 = vmatpush.msra.mxu0 %v717
        %2235 = vmatpush.msra.mxu0 %v714
        %2236 = vmatpush.msra.mxu0 %v711
        %2237 = vmatmul.f32.gmra.mxu0 %v313
        %v2238 = vpop.f32.mrf.mxu0
        %v2239 = vadd.f32 %v2030, %v2238
        %2240 = vmatmul.f32.gmra.mxu0 %v317
        %v2241 = vpop.f32.mrf.mxu0
        %v2242 = vadd.f32 %v2033, %v2241
        %2243 = vmatmul.f32.gmra.mxu0 %v321
        %v2244 = vpop.f32.mrf.mxu0
        %v2245 = vadd.f32 %v2036, %v2244
        %2246 = vmatmul.f32.gmra.mxu0 %v325
        %v2247 = vpop.f32.mrf.mxu0
        %v2248 = vadd.f32 %v2039, %v2247
        %2249 = vmatmul.f32.gmra.mxu0 %v329
        %v2250 = vpop.f32.mrf.mxu0
        %v2251 = vadd.f32 %v2042, %v2250
        %2252 = vmatmul.f32.gmra.mxu0 %v333
        %v2253 = vpop.f32.mrf.mxu0
        %v2254 = vadd.f32 %v2045, %v2253
        %2255 = vmatmul.f32.gmra.mxu0 %v337
        %v2256 = vpop.f32.mrf.mxu0
        %v2257 = vadd.f32 %v2048, %v2256
        %2258 = vmatmul.f32.gmra.mxu0 %v341
        %v2259 = vpop.f32.mrf.mxu0
        %v2260 = vadd.f32 %v2051, %v2259
        %2261 = vmatmul.f32.gmra.mxu0 %v345
        %v2262 = vpop.f32.mrf.mxu0
        %v2263 = vadd.f32 %v2054, %v2262
        %2264 = vmatmul.f32.gmra.mxu0 %v349
        %v2265 = vpop.f32.mrf.mxu0
        %v2266 = vadd.f32 %v2057, %v2265
        %2267 = vmatmul.f32.gmra.mxu0 %v353
        %v2268 = vpop.f32.mrf.mxu0
        %v2269 = vadd.f32 %v2060, %v2268
        %2270 = vmatmul.f32.gmra.mxu0 %v357
        %v2271 = vpop.f32.mrf.mxu0
        %v2272 = vadd.f32 %v2063, %v2271
        %2273 = vmatmul.f32.gmra.mxu0 %v361
        %v2274 = vpop.f32.mrf.mxu0
        %v2275 = vadd.f32 %v2066, %v2274
        %2276 = vmatmul.f32.gmra.mxu0 %v365
        %v2277 = vpop.f32.mrf.mxu0
        %v2278 = vadd.f32 %v2069, %v2277
        %2279 = vmatmul.f32.gmra.mxu0 %v369
        %v2280 = vpop.f32.mrf.mxu0
        %v2281 = vadd.f32 %v2072, %v2280
        %2282 = vmatmul.f32.gmra.mxu0 %v373
        %v2283 = vpop.f32.mrf.mxu0
        %v2284 = vadd.f32 %v2075, %v2283
        %2285 = vmatmul.f32.gmra.mxu0 %v377
        %v2286 = vpop.f32.mrf.mxu0
        %v2287 = vadd.f32 %v2078, %v2286
        %2288 = vmatmul.f32.gmra.mxu0 %v381
        %v2289 = vpop.f32.mrf.mxu0
        %v2290 = vadd.f32 %v2081, %v2289
        %2291 = vmatmul.f32.gmra.mxu0 %v385
        %v2292 = vpop.f32.mrf.mxu0
        %v2293 = vadd.f32 %v2084, %v2292
        %2294 = vmatmul.f32.gmra.mxu0 %v389
        %v2295 = vpop.f32.mrf.mxu0
        %v2296 = vadd.f32 %v2087, %v2295
        %2297 = vmatmul.f32.gmra.mxu0 %v393
        %v2298 = vpop.f32.mrf.mxu0
        %v2299 = vadd.f32 %v2090, %v2298
        %2300 = vmatmul.f32.gmra.mxu0 %v397
        %v2301 = vpop.f32.mrf.mxu0
        %v2302 = vadd.f32 %v2093, %v2301
        %2303 = vmatmul.f32.gmra.mxu0 %v401
        %v2304 = vpop.f32.mrf.mxu0
        %v2305 = vadd.f32 %v2096, %v2304
        %2306 = vmatmul.f32.gmra.mxu0 %v405
        %v2307 = vpop.f32.mrf.mxu0
        %v2308 = vadd.f32 %v2099, %v2307
        %2309 = vmatmul.f32.gmra.mxu0 %v409
        %v2310 = vpop.f32.mrf.mxu0
        %v2311 = vadd.f32 %v2102, %v2310
        %2312 = vmatmul.f32.gmra.mxu0 %v413
        %v2313 = vpop.f32.mrf.mxu0
        %v2314 = vadd.f32 %v2105, %v2313
        %2315 = vmatmul.f32.gmra.mxu0 %v417
        %v2316 = vpop.f32.mrf.mxu0
        %v2317 = vadd.f32 %v2108, %v2316
        %2318 = vmatmul.f32.gmra.mxu0 %v421
        %v2319 = vpop.f32.mrf.mxu0
        %v2320 = vadd.f32 %v2111, %v2319
        %2321 = vmatmul.f32.gmra.mxu0 %v425
        %v2322 = vpop.f32.mrf.mxu0
        %v2323 = vadd.f32 %v2114, %v2322
        %2324 = vmatmul.f32.gmra.mxu0 %v429
        %v2325 = vpop.f32.mrf.mxu0
        %v2326 = vadd.f32 %v2117, %v2325
        %2327 = vmatmul.f32.gmra.mxu0 %v433
        %v2328 = vpop.f32.mrf.mxu0
        %v2329 = vadd.f32 %v2120, %v2328
        %2330 = vmatmul.f32.gmra.mxu0 %v437
        %v2331 = vpop.f32.mrf.mxu0
        %v2332 = vadd.f32 %v2123, %v2331
        %2333 = vmatmul.f32.gmra.mxu0 %v441
        %v2334 = vpop.f32.mrf.mxu0
        %v2335 = vadd.f32 %v2126, %v2334
        %2336 = vmatmul.f32.gmra.mxu0 %v445
        %v2337 = vpop.f32.mrf.mxu0
        %v2338 = vadd.f32 %v2129, %v2337
        %2339 = vmatmul.f32.gmra.mxu0 %v449
        %v2340 = vpop.f32.mrf.mxu0
        %v2341 = vadd.f32 %v2132, %v2340
        %2342 = vmatmul.f32.gmra.mxu0 %v453
        %v2343 = vpop.f32.mrf.mxu0
        %v2344 = vadd.f32 %v2135, %v2343
        %2345 = vmatmul.f32.gmra.mxu0 %v457
        %v2346 = vpop.f32.mrf.mxu0
        %v2347 = vadd.f32 %v2138, %v2346
        %2348 = vmatmul.f32.gmra.mxu0 %v461
        %v2349 = vpop.f32.mrf.mxu0
        %v2350 = vadd.f32 %v2141, %v2349
        %2351 = vmatmul.f32.gmra.mxu0 %v465
        %v2352 = vpop.f32.mrf.mxu0
        %v2353 = vadd.f32 %v2144, %v2352
        %2354 = vmatmul.f32.gmra.mxu0 %v469
        %v2355 = vpop.f32.mrf.mxu0
        %v2356 = vadd.f32 %v2147, %v2355
        %2357 = vmatmul.f32.gmra.mxu0 %v473
        %v2358 = vpop.f32.mrf.mxu0
        %v2359 = vadd.f32 %v2150, %v2358
        %2360 = vmatmul.f32.gmra.mxu0 %v477
        %v2361 = vpop.f32.mrf.mxu0
        %v2362 = vadd.f32 %v2153, %v2361
        %2363 = vmatmul.f32.gmra.mxu0 %v481
        %v2364 = vpop.f32.mrf.mxu0
        %v2365 = vadd.f32 %v2156, %v2364
        %2366 = vmatmul.f32.gmra.mxu0 %v485
        %v2367 = vpop.f32.mrf.mxu0
        %v2368 = vadd.f32 %v2159, %v2367
        %2369 = vmatmul.f32.gmra.mxu0 %v489
        %v2370 = vpop.f32.mrf.mxu0
        %v2371 = vadd.f32 %v2162, %v2370
        %2372 = vmatmul.f32.gmra.mxu0 %v493
        %v2373 = vpop.f32.mrf.mxu0
        %v2374 = vadd.f32 %v2165, %v2373
        %2375 = vmatmul.f32.gmra.mxu0 %v497
        %v2376 = vpop.f32.mrf.mxu0
        %v2377 = vadd.f32 %v2168, %v2376
        %2378 = vmatmul.f32.gmra.mxu0 %v501
        %v2379 = vpop.f32.mrf.mxu0
        %v2380 = vadd.f32 %v2171, %v2379
        %2381 = vmatmul.f32.gmra.mxu0 %v505
        %v2382 = vpop.f32.mrf.mxu0
        %v2383 = vadd.f32 %v2174, %v2382
        %2384 = vmatmul.f32.gmra.mxu0 %v509
        %v2385 = vpop.f32.mrf.mxu0
        %v2386 = vadd.f32 %v2177, %v2385
        %2387 = vmatmul.f32.gmra.mxu0 %v513
        %v2388 = vpop.f32.mrf.mxu0
        %v2389 = vadd.f32 %v2180, %v2388
        %2390 = vmatmul.f32.gmra.mxu0 %v517
        %v2391 = vpop.f32.mrf.mxu0
        %v2392 = vadd.f32 %v2183, %v2391
        %2393 = vmatmul.f32.gmra.mxu0 %v521
        %v2394 = vpop.f32.mrf.mxu0
        %v2395 = vadd.f32 %v2186, %v2394
        %2396 = vmatmul.f32.gmra.mxu0 %v525
        %v2397 = vpop.f32.mrf.mxu0
        %v2398 = vadd.f32 %v2189, %v2397
        %2399 = vmatmul.f32.gmra.mxu0 %v529
        %v2400 = vpop.f32.mrf.mxu0
        %v2401 = vadd.f32 %v2192, %v2400
        %2402 = vmatmul.f32.gmra.mxu0 %v533
        %v2403 = vpop.f32.mrf.mxu0
        %v2404 = vadd.f32 %v2195, %v2403
        %2405 = vmatmul.f32.gmra.mxu0 %v537
        %v2406 = vpop.f32.mrf.mxu0
        %v2407 = vadd.f32 %v2198, %v2406
        %2408 = vmatmul.f32.gmra.mxu0 %v541
        %v2409 = vpop.f32.mrf.mxu0
        %v2410 = vadd.f32 %v2201, %v2409
        %2411 = vmatmul.f32.gmra.mxu0 %v545
        %v2412 = vpop.f32.mrf.mxu0
        %v2413 = vadd.f32 %v2204, %v2412
        %2414 = vmatmul.f32.gmra.mxu0 %v549
        %v2415 = vpop.f32.mrf.mxu0
        %v2416 = vadd.f32 %v2207, %v2415
        %2417 = vmatmul.f32.gmra.mxu0 %v553
        %v2418 = vpop.f32.mrf.mxu0
        %v2419 = vadd.f32 %v2210, %v2418
        %2420 = vmatmul.f32.gmra.mxu0 %v557
        %v2421 = vpop.f32.mrf.mxu0
        %v2422 = vadd.f32 %v2213, %v2421
        %2423 = vmatmul.f32.gmra.mxu0 %v561
        %v2424 = vpop.f32.mrf.mxu0
        %v2425 = vadd.f32 %v2216, %v2424
        %2426 = vmatmul.f32.gmra.mxu0 %v565
        %v2427 = vpop.f32.mrf.mxu0
        %v2428 = vadd.f32 %v2219, %v2427
        %2429 = vdwg.mxu0
        %2430 = vmatpush.msra.mxu0 %v613
        %2431 = vmatpush.msra.mxu0 %v610
        %2432 = vmatpush.msra.mxu0 %v607
        %2433 = vmatpush.msra.mxu0 %v604
        %2434 = vmatpush.msra.mxu0 %v601
        %2435 = vmatpush.msra.mxu0 %v598
        %2436 = vmatpush.msra.mxu0 %v595
        %2437 = vmatpush.msra.mxu0 %v592
        %2438 = vmatpush.msra.mxu0 %v589
        %2439 = vmatpush.msra.mxu0 %v586
        %2440 = vmatpush.msra.mxu0 %v583
        %2441 = vmatpush.msra.mxu0 %v580
        %2442 = vmatpush.msra.mxu0 %v577
        %2443 = vmatpush.msra.mxu0 %v574
        %2444 = vmatpush.msra.mxu0 %v571
        %2445 = vmatpush.msra.mxu0 %v568
        %2446 = vmatmul.f32.gmra.mxu0 %v310
        %v2447 = vpop.f32.mrf.mxu0
        %v2448 = vadd.f32 0.0, %v2447
        %2449 = vmatmul.f32.gmra.mxu0 %v314
        %v2450 = vpop.f32.mrf.mxu0
        %v2451 = vadd.f32 0.0, %v2450
        %2452 = vmatmul.f32.gmra.mxu0 %v318
        %v2453 = vpop.f32.mrf.mxu0
        %v2454 = vadd.f32 0.0, %v2453
        %2455 = vmatmul.f32.gmra.mxu0 %v322
        %v2456 = vpop.f32.mrf.mxu0
        %v2457 = vadd.f32 0.0, %v2456
        %2458 = vmatmul.f32.gmra.mxu0 %v326
        %v2459 = vpop.f32.mrf.mxu0
        %v2460 = vadd.f32 0.0, %v2459
        %2461 = vmatmul.f32.gmra.mxu0 %v330
        %v2462 = vpop.f32.mrf.mxu0
        %v2463 = vadd.f32 0.0, %v2462
        %2464 = vmatmul.f32.gmra.mxu0 %v334
        %v2465 = vpop.f32.mrf.mxu0
        %v2466 = vadd.f32 0.0, %v2465
        %2467 = vmatmul.f32.gmra.mxu0 %v338
        %v2468 = vpop.f32.mrf.mxu0
        %v2469 = vadd.f32 0.0, %v2468
        %2470 = vmatmul.f32.gmra.mxu0 %v342
        %v2471 = vpop.f32.mrf.mxu0
        %v2472 = vadd.f32 0.0, %v2471
        %2473 = vmatmul.f32.gmra.mxu0 %v346
        %v2474 = vpop.f32.mrf.mxu0
        %v2475 = vadd.f32 0.0, %v2474
        %2476 = vmatmul.f32.gmra.mxu0 %v350
        %v2477 = vpop.f32.mrf.mxu0
        %v2478 = vadd.f32 0.0, %v2477
        %2479 = vmatmul.f32.gmra.mxu0 %v354
        %v2480 = vpop.f32.mrf.mxu0
        %v2481 = vadd.f32 0.0, %v2480
        %2482 = vmatmul.f32.gmra.mxu0 %v358
        %v2483 = vpop.f32.mrf.mxu0
        %v2484 = vadd.f32 0.0, %v2483
        %2485 = vmatmul.f32.gmra.mxu0 %v362
        %v2486 = vpop.f32.mrf.mxu0
        %v2487 = vadd.f32 0.0, %v2486
        %2488 = vmatmul.f32.gmra.mxu0 %v366
        %v2489 = vpop.f32.mrf.mxu0
        %v2490 = vadd.f32 0.0, %v2489
        %2491 = vmatmul.f32.gmra.mxu0 %v370
        %v2492 = vpop.f32.mrf.mxu0
        %v2493 = vadd.f32 0.0, %v2492
        %2494 = vmatmul.f32.gmra.mxu0 %v374
        %v2495 = vpop.f32.mrf.mxu0
        %v2496 = vadd.f32 0.0, %v2495
        %2497 = vmatmul.f32.gmra.mxu0 %v378
        %v2498 = vpop.f32.mrf.mxu0
        %v2499 = vadd.f32 0.0, %v2498
        %2500 = vmatmul.f32.gmra.mxu0 %v382
        %v2501 = vpop.f32.mrf.mxu0
        %v2502 = vadd.f32 0.0, %v2501
        %2503 = vmatmul.f32.gmra.mxu0 %v386
        %v2504 = vpop.f32.mrf.mxu0
        %v2505 = vadd.f32 0.0, %v2504
        %2506 = vmatmul.f32.gmra.mxu0 %v390
        %v2507 = vpop.f32.mrf.mxu0
        %v2508 = vadd.f32 0.0, %v2507
        %2509 = vmatmul.f32.gmra.mxu0 %v394
        %v2510 = vpop.f32.mrf.mxu0
        %v2511 = vadd.f32 0.0, %v2510
        %2512 = vmatmul.f32.gmra.mxu0 %v398
        %v2513 = vpop.f32.mrf.mxu0
        %v2514 = vadd.f32 0.0, %v2513
        %2515 = vmatmul.f32.gmra.mxu0 %v402
        %v2516 = vpop.f32.mrf.mxu0
        %v2517 = vadd.f32 0.0, %v2516
        %2518 = vmatmul.f32.gmra.mxu0 %v406
        %v2519 = vpop.f32.mrf.mxu0
        %v2520 = vadd.f32 0.0, %v2519
        %2521 = vmatmul.f32.gmra.mxu0 %v410
        %v2522 = vpop.f32.mrf.mxu0
        %v2523 = vadd.f32 0.0, %v2522
        %2524 = vmatmul.f32.gmra.mxu0 %v414
        %v2525 = vpop.f32.mrf.mxu0
        %v2526 = vadd.f32 0.0, %v2525
        %2527 = vmatmul.f32.gmra.mxu0 %v418
        %v2528 = vpop.f32.mrf.mxu0
        %v2529 = vadd.f32 0.0, %v2528
        %2530 = vmatmul.f32.gmra.mxu0 %v422
        %v2531 = vpop.f32.mrf.mxu0
        %v2532 = vadd.f32 0.0, %v2531
        %2533 = vmatmul.f32.gmra.mxu0 %v426
        %v2534 = vpop.f32.mrf.mxu0
        %v2535 = vadd.f32 0.0, %v2534
        %2536 = vmatmul.f32.gmra.mxu0 %v430
        %v2537 = vpop.f32.mrf.mxu0
        %v2538 = vadd.f32 0.0, %v2537
        %2539 = vmatmul.f32.gmra.mxu0 %v434
        %v2540 = vpop.f32.mrf.mxu0
        %v2541 = vadd.f32 0.0, %v2540
        %2542 = vmatmul.f32.gmra.mxu0 %v438
        %v2543 = vpop.f32.mrf.mxu0
        %v2544 = vadd.f32 0.0, %v2543
        %2545 = vmatmul.f32.gmra.mxu0 %v442
        %v2546 = vpop.f32.mrf.mxu0
        %v2547 = vadd.f32 0.0, %v2546
        %2548 = vmatmul.f32.gmra.mxu0 %v446
        %v2549 = vpop.f32.mrf.mxu0
        %v2550 = vadd.f32 0.0, %v2549
        %2551 = vmatmul.f32.gmra.mxu0 %v450
        %v2552 = vpop.f32.mrf.mxu0
        %v2553 = vadd.f32 0.0, %v2552
        %2554 = vmatmul.f32.gmra.mxu0 %v454
        %v2555 = vpop.f32.mrf.mxu0
        %v2556 = vadd.f32 0.0, %v2555
        %2557 = vmatmul.f32.gmra.mxu0 %v458
        %v2558 = vpop.f32.mrf.mxu0
        %v2559 = vadd.f32 0.0, %v2558
        %2560 = vmatmul.f32.gmra.mxu0 %v462
        %v2561 = vpop.f32.mrf.mxu0
        %v2562 = vadd.f32 0.0, %v2561
        %2563 = vmatmul.f32.gmra.mxu0 %v466
        %v2564 = vpop.f32.mrf.mxu0
        %v2565 = vadd.f32 0.0, %v2564
        %2566 = vmatmul.f32.gmra.mxu0 %v470
        %v2567 = vpop.f32.mrf.mxu0
        %v2568 = vadd.f32 0.0, %v2567
        %2569 = vmatmul.f32.gmra.mxu0 %v474
        %v2570 = vpop.f32.mrf.mxu0
        %v2571 = vadd.f32 0.0, %v2570
        %2572 = vmatmul.f32.gmra.mxu0 %v478
        %v2573 = vpop.f32.mrf.mxu0
        %v2574 = vadd.f32 0.0, %v2573
        %2575 = vmatmul.f32.gmra.mxu0 %v482
        %v2576 = vpop.f32.mrf.mxu0
        %v2577 = vadd.f32 0.0, %v2576
        %2578 = vmatmul.f32.gmra.mxu0 %v486
        %v2579 = vpop.f32.mrf.mxu0
        %v2580 = vadd.f32 0.0, %v2579
        %2581 = vmatmul.f32.gmra.mxu0 %v490
        %v2582 = vpop.f32.mrf.mxu0
        %v2583 = vadd.f32 0.0, %v2582
        %2584 = vmatmul.f32.gmra.mxu0 %v494
        %v2585 = vpop.f32.mrf.mxu0
        %v2586 = vadd.f32 0.0, %v2585
        %2587 = vmatmul.f32.gmra.mxu0 %v498
        %v2588 = vpop.f32.mrf.mxu0
        %v2589 = vadd.f32 0.0, %v2588
        %2590 = vmatmul.f32.gmra.mxu0 %v502
        %v2591 = vpop.f32.mrf.mxu0
        %v2592 = vadd.f32 0.0, %v2591
        %2593 = vmatmul.f32.gmra.mxu0 %v506
        %v2594 = vpop.f32.mrf.mxu0
        %v2595 = vadd.f32 0.0, %v2594
        %2596 = vmatmul.f32.gmra.mxu0 %v510
        %v2597 = vpop.f32.mrf.mxu0
        %v2598 = vadd.f32 0.0, %v2597
        %2599 = vmatmul.f32.gmra.mxu0 %v514
        %v2600 = vpop.f32.mrf.mxu0
        %v2601 = vadd.f32 0.0, %v2600
        %2602 = vmatmul.f32.gmra.mxu0 %v518
        %v2603 = vpop.f32.mrf.mxu0
        %v2604 = vadd.f32 0.0, %v2603
        %2605 = vmatmul.f32.gmra.mxu0 %v522
        %v2606 = vpop.f32.mrf.mxu0
        %v2607 = vadd.f32 0.0, %v2606
        %2608 = vmatmul.f32.gmra.mxu0 %v526
        %v2609 = vpop.f32.mrf.mxu0
        %v2610 = vadd.f32 0.0, %v2609
        %2611 = vmatmul.f32.gmra.mxu0 %v530
        %v2612 = vpop.f32.mrf.mxu0
        %v2613 = vadd.f32 0.0, %v2612
        %2614 = vmatmul.f32.gmra.mxu0 %v534
        %v2615 = vpop.f32.mrf.mxu0
        %v2616 = vadd.f32 0.0, %v2615
        %2617 = vmatmul.f32.gmra.mxu0 %v538
        %v2618 = vpop.f32.mrf.mxu0
        %v2619 = vadd.f32 0.0, %v2618
        %2620 = vmatmul.f32.gmra.mxu0 %v542
        %v2621 = vpop.f32.mrf.mxu0
        %v2622 = vadd.f32 0.0, %v2621
        %2623 = vmatmul.f32.gmra.mxu0 %v546
        %v2624 = vpop.f32.mrf.mxu0
        %v2625 = vadd.f32 0.0, %v2624
        %2626 = vmatmul.f32.gmra.mxu0 %v550
        %v2627 = vpop.f32.mrf.mxu0
        %v2628 = vadd.f32 0.0, %v2627
        %2629 = vmatmul.f32.gmra.mxu0 %v554
        %v2630 = vpop.f32.mrf.mxu0
        %v2631 = vadd.f32 0.0, %v2630
        %2632 = vmatmul.f32.gmra.mxu0 %v558
        %v2633 = vpop.f32.mrf.mxu0
        %v2634 = vadd.f32 0.0, %v2633
        %2635 = vmatmul.f32.gmra.mxu0 %v562
        %v2636 = vpop.f32.mrf.mxu0
        %v2637 = vadd.f32 0.0, %v2636
        %2638 = vdwg.mxu0
        %2639 = vmatpush.msra.mxu0 %v661
        %2640 = vmatpush.msra.mxu0 %v658
        %2641 = vmatpush.msra.mxu0 %v655
        %2642 = vmatpush.msra.mxu0 %v652
        %2643 = vmatpush.msra.mxu0 %v649
        %2644 = vmatpush.msra.mxu0 %v646
        %2645 = vmatpush.msra.mxu0 %v643
        %2646 = vmatpush.msra.mxu0 %v640
        %2647 = vmatpush.msra.mxu0 %v637
        %2648 = vmatpush.msra.mxu0 %v634
        %2649 = vmatpush.msra.mxu0 %v631
        %2650 = vmatpush.msra.mxu0 %v628
        %2651 = vmatpush.msra.mxu0 %v625
        %2652 = vmatpush.msra.mxu0 %v622
        %2653 = vmatpush.msra.mxu0 %v619
        %2654 = vmatpush.msra.mxu0 %v616
        %2655 = vmatmul.f32.gmra.mxu0 %v311
        %v2656 = vpop.f32.mrf.mxu0
        %v2657 = vadd.f32 %v2448, %v2656
        %2658 = vmatmul.f32.gmra.mxu0 %v315
        %v2659 = vpop.f32.mrf.mxu0
        %v2660 = vadd.f32 %v2451, %v2659
        %2661 = vmatmul.f32.gmra.mxu0 %v319
        %v2662 = vpop.f32.mrf.mxu0
        %v2663 = vadd.f32 %v2454, %v2662
        %2664 = vmatmul.f32.gmra.mxu0 %v323
        %v2665 = vpop.f32.mrf.mxu0
        %v2666 = vadd.f32 %v2457, %v2665
        %2667 = vmatmul.f32.gmra.mxu0 %v327
        %v2668 = vpop.f32.mrf.mxu0
        %v2669 = vadd.f32 %v2460, %v2668
        %2670 = vmatmul.f32.gmra.mxu0 %v331
        %v2671 = vpop.f32.mrf.mxu0
        %v2672 = vadd.f32 %v2463, %v2671
        %2673 = vmatmul.f32.gmra.mxu0 %v335
        %v2674 = vpop.f32.mrf.mxu0
        %v2675 = vadd.f32 %v2466, %v2674
        %2676 = vmatmul.f32.gmra.mxu0 %v339
        %v2677 = vpop.f32.mrf.mxu0
        %v2678 = vadd.f32 %v2469, %v2677
        %2679 = vmatmul.f32.gmra.mxu0 %v343
        %v2680 = vpop.f32.mrf.mxu0
        %v2681 = vadd.f32 %v2472, %v2680
        %2682 = vmatmul.f32.gmra.mxu0 %v347
        %v2683 = vpop.f32.mrf.mxu0
        %v2684 = vadd.f32 %v2475, %v2683
        %2685 = vmatmul.f32.gmra.mxu0 %v351
        %v2686 = vpop.f32.mrf.mxu0
        %v2687 = vadd.f32 %v2478, %v2686
        %2688 = vmatmul.f32.gmra.mxu0 %v355
        %v2689 = vpop.f32.mrf.mxu0
        %v2690 = vadd.f32 %v2481, %v2689
        %2691 = vmatmul.f32.gmra.mxu0 %v359
        %v2692 = vpop.f32.mrf.mxu0
        %v2693 = vadd.f32 %v2484, %v2692
        %2694 = vmatmul.f32.gmra.mxu0 %v363
        %v2695 = vpop.f32.mrf.mxu0
        %v2696 = vadd.f32 %v2487, %v2695
        %2697 = vmatmul.f32.gmra.mxu0 %v367
        %v2698 = vpop.f32.mrf.mxu0
        %v2699 = vadd.f32 %v2490, %v2698
        %2700 = vmatmul.f32.gmra.mxu0 %v371
        %v2701 = vpop.f32.mrf.mxu0
        %v2702 = vadd.f32 %v2493, %v2701
        %2703 = vmatmul.f32.gmra.mxu0 %v375
        %v2704 = vpop.f32.mrf.mxu0
        %v2705 = vadd.f32 %v2496, %v2704
        %2706 = vmatmul.f32.gmra.mxu0 %v379
        %v2707 = vpop.f32.mrf.mxu0
        %v2708 = vadd.f32 %v2499, %v2707
        %2709 = vmatmul.f32.gmra.mxu0 %v383
        %v2710 = vpop.f32.mrf.mxu0
        %v2711 = vadd.f32 %v2502, %v2710
        %2712 = vmatmul.f32.gmra.mxu0 %v387
        %v2713 = vpop.f32.mrf.mxu0
        %v2714 = vadd.f32 %v2505, %v2713
        %2715 = vmatmul.f32.gmra.mxu0 %v391
        %v2716 = vpop.f32.mrf.mxu0
        %v2717 = vadd.f32 %v2508, %v2716
        %2718 = vmatmul.f32.gmra.mxu0 %v395
        %v2719 = vpop.f32.mrf.mxu0
        %v2720 = vadd.f32 %v2511, %v2719
        %2721 = vmatmul.f32.gmra.mxu0 %v399
        %v2722 = vpop.f32.mrf.mxu0
        %v2723 = vadd.f32 %v2514, %v2722
        %2724 = vmatmul.f32.gmra.mxu0 %v403
        %v2725 = vpop.f32.mrf.mxu0
        %v2726 = vadd.f32 %v2517, %v2725
        %2727 = vmatmul.f32.gmra.mxu0 %v407
        %v2728 = vpop.f32.mrf.mxu0
        %v2729 = vadd.f32 %v2520, %v2728
        %2730 = vmatmul.f32.gmra.mxu0 %v411
        %v2731 = vpop.f32.mrf.mxu0
        %v2732 = vadd.f32 %v2523, %v2731
        %2733 = vmatmul.f32.gmra.mxu0 %v415
        %v2734 = vpop.f32.mrf.mxu0
        %v2735 = vadd.f32 %v2526, %v2734
        %2736 = vmatmul.f32.gmra.mxu0 %v419
        %v2737 = vpop.f32.mrf.mxu0
        %v2738 = vadd.f32 %v2529, %v2737
        %2739 = vmatmul.f32.gmra.mxu0 %v423
        %v2740 = vpop.f32.mrf.mxu0
        %v2741 = vadd.f32 %v2532, %v2740
        %2742 = vmatmul.f32.gmra.mxu0 %v427
        %v2743 = vpop.f32.mrf.mxu0
        %v2744 = vadd.f32 %v2535, %v2743
        %2745 = vmatmul.f32.gmra.mxu0 %v431
        %v2746 = vpop.f32.mrf.mxu0
        %v2747 = vadd.f32 %v2538, %v2746
        %2748 = vmatmul.f32.gmra.mxu0 %v435
        %v2749 = vpop.f32.mrf.mxu0
        %v2750 = vadd.f32 %v2541, %v2749
        %2751 = vmatmul.f32.gmra.mxu0 %v439
        %v2752 = vpop.f32.mrf.mxu0
        %v2753 = vadd.f32 %v2544, %v2752
        %2754 = vmatmul.f32.gmra.mxu0 %v443
        %v2755 = vpop.f32.mrf.mxu0
        %v2756 = vadd.f32 %v2547, %v2755
        %2757 = vmatmul.f32.gmra.mxu0 %v447
        %v2758 = vpop.f32.mrf.mxu0
        %v2759 = vadd.f32 %v2550, %v2758
        %2760 = vmatmul.f32.gmra.mxu0 %v451
        %v2761 = vpop.f32.mrf.mxu0
        %v2762 = vadd.f32 %v2553, %v2761
        %2763 = vmatmul.f32.gmra.mxu0 %v455
        %v2764 = vpop.f32.mrf.mxu0
        %v2765 = vadd.f32 %v2556, %v2764
        %2766 = vmatmul.f32.gmra.mxu0 %v459
        %v2767 = vpop.f32.mrf.mxu0
        %v2768 = vadd.f32 %v2559, %v2767
        %2769 = vmatmul.f32.gmra.mxu0 %v463
        %v2770 = vpop.f32.mrf.mxu0
        %v2771 = vadd.f32 %v2562, %v2770
        %2772 = vmatmul.f32.gmra.mxu0 %v467
        %v2773 = vpop.f32.mrf.mxu0
        %v2774 = vadd.f32 %v2565, %v2773
        %2775 = vmatmul.f32.gmra.mxu0 %v471
        %v2776 = vpop.f32.mrf.mxu0
        %v2777 = vadd.f32 %v2568, %v2776
        %2778 = vmatmul.f32.gmra.mxu0 %v475
        %v2779 = vpop.f32.mrf.mxu0
        %v2780 = vadd.f32 %v2571, %v2779
        %2781 = vmatmul.f32.gmra.mxu0 %v479
        %v2782 = vpop.f32.mrf.mxu0
        %v2783 = vadd.f32 %v2574, %v2782
        %2784 = vmatmul.f32.gmra.mxu0 %v483
        %v2785 = vpop.f32.mrf.mxu0
        %v2786 = vadd.f32 %v2577, %v2785
        %2787 = vmatmul.f32.gmra.mxu0 %v487
        %v2788 = vpop.f32.mrf.mxu0
        %v2789 = vadd.f32 %v2580, %v2788
        %2790 = vmatmul.f32.gmra.mxu0 %v491
        %v2791 = vpop.f32.mrf.mxu0
        %v2792 = vadd.f32 %v2583, %v2791
        %2793 = vmatmul.f32.gmra.mxu0 %v495
        %v2794 = vpop.f32.mrf.mxu0
        %v2795 = vadd.f32 %v2586, %v2794
        %2796 = vmatmul.f32.gmra.mxu0 %v499
        %v2797 = vpop.f32.mrf.mxu0
        %v2798 = vadd.f32 %v2589, %v2797
        %2799 = vmatmul.f32.gmra.mxu0 %v503
        %v2800 = vpop.f32.mrf.mxu0
        %v2801 = vadd.f32 %v2592, %v2800
        %2802 = vmatmul.f32.gmra.mxu0 %v507
        %v2803 = vpop.f32.mrf.mxu0
        %v2804 = vadd.f32 %v2595, %v2803
        %2805 = vmatmul.f32.gmra.mxu0 %v511
        %v2806 = vpop.f32.mrf.mxu0
        %v2807 = vadd.f32 %v2598, %v2806
        %2808 = vmatmul.f32.gmra.mxu0 %v515
        %v2809 = vpop.f32.mrf.mxu0
        %v2810 = vadd.f32 %v2601, %v2809
        %2811 = vmatmul.f32.gmra.mxu0 %v519
        %v2812 = vpop.f32.mrf.mxu0
        %v2813 = vadd.f32 %v2604, %v2812
        %2814 = vmatmul.f32.gmra.mxu0 %v523
        %v2815 = vpop.f32.mrf.mxu0
        %v2816 = vadd.f32 %v2607, %v2815
        %2817 = vmatmul.f32.gmra.mxu0 %v527
        %v2818 = vpop.f32.mrf.mxu0
        %v2819 = vadd.f32 %v2610, %v2818
        %2820 = vmatmul.f32.gmra.mxu0 %v531
        %v2821 = vpop.f32.mrf.mxu0
        %v2822 = vadd.f32 %v2613, %v2821
        %2823 = vmatmul.f32.gmra.mxu0 %v535
        %v2824 = vpop.f32.mrf.mxu0
        %v2825 = vadd.f32 %v2616, %v2824
        %2826 = vmatmul.f32.gmra.mxu0 %v539
        %v2827 = vpop.f32.mrf.mxu0
        %v2828 = vadd.f32 %v2619, %v2827
        %2829 = vmatmul.f32.gmra.mxu0 %v543
        %v2830 = vpop.f32.mrf.mxu0
        %v2831 = vadd.f32 %v2622, %v2830
        %2832 = vmatmul.f32.gmra.mxu0 %v547
        %v2833 = vpop.f32.mrf.mxu0
        %v2834 = vadd.f32 %v2625, %v2833
        %2835 = vmatmul.f32.gmra.mxu0 %v551
        %v2836 = vpop.f32.mrf.mxu0
        %v2837 = vadd.f32 %v2628, %v2836
        %2838 = vmatmul.f32.gmra.mxu0 %v555
        %v2839 = vpop.f32.mrf.mxu0
        %v2840 = vadd.f32 %v2631, %v2839
        %2841 = vmatmul.f32.gmra.mxu0 %v559
        %v2842 = vpop.f32.mrf.mxu0
        %v2843 = vadd.f32 %v2634, %v2842
        %2844 = vmatmul.f32.gmra.mxu0 %v563
        %v2845 = vpop.f32.mrf.mxu0
        %v2846 = vadd.f32 %v2637, %v2845
        %2847 = vdwg.mxu0
        %2848 = vmatpush.msra.mxu0 %v709
        %2849 = vmatpush.msra.mxu0 %v706
        %2850 = vmatpush.msra.mxu0 %v703
        %2851 = vmatpush.msra.mxu0 %v700
        %2852 = vmatpush.msra.mxu0 %v697
        %2853 = vmatpush.msra.mxu0 %v694
        %2854 = vmatpush.msra.mxu0 %v691
        %2855 = vmatpush.msra.mxu0 %v688
        %2856 = vmatpush.msra.mxu0 %v685
        %2857 = vmatpush.msra.mxu0 %v682
        %2858 = vmatpush.msra.mxu0 %v679
        %2859 = vmatpush.msra.mxu0 %v676
        %2860 = vmatpush.msra.mxu0 %v673
        %2861 = vmatpush.msra.mxu0 %v670
        %2862 = vmatpush.msra.mxu0 %v667
        %2863 = vmatpush.msra.mxu0 %v664
        %2864 = vmatmul.f32.gmra.mxu0 %v312
        %v2865 = vpop.f32.mrf.mxu0
        %v2866 = vadd.f32 %v2657, %v2865
        %2867 = vmatmul.f32.gmra.mxu0 %v316
        %v2868 = vpop.f32.mrf.mxu0
        %v2869 = vadd.f32 %v2660, %v2868
        %2870 = vmatmul.f32.gmra.mxu0 %v320
        %v2871 = vpop.f32.mrf.mxu0
        %v2872 = vadd.f32 %v2663, %v2871
        %2873 = vmatmul.f32.gmra.mxu0 %v324
        %v2874 = vpop.f32.mrf.mxu0
        %v2875 = vadd.f32 %v2666, %v2874
        %2876 = vmatmul.f32.gmra.mxu0 %v328
        %v2877 = vpop.f32.mrf.mxu0
        %v2878 = vadd.f32 %v2669, %v2877
        %2879 = vmatmul.f32.gmra.mxu0 %v332
        %v2880 = vpop.f32.mrf.mxu0
        %v2881 = vadd.f32 %v2672, %v2880
        %2882 = vmatmul.f32.gmra.mxu0 %v336
        %v2883 = vpop.f32.mrf.mxu0
        %v2884 = vadd.f32 %v2675, %v2883
        %2885 = vmatmul.f32.gmra.mxu0 %v340
        %v2886 = vpop.f32.mrf.mxu0
        %v2887 = vadd.f32 %v2678, %v2886
        %2888 = vmatmul.f32.gmra.mxu0 %v344
        %v2889 = vpop.f32.mrf.mxu0
        %v2890 = vadd.f32 %v2681, %v2889
        %2891 = vmatmul.f32.gmra.mxu0 %v348
        %v2892 = vpop.f32.mrf.mxu0
        %v2893 = vadd.f32 %v2684, %v2892
        %2894 = vmatmul.f32.gmra.mxu0 %v352
        %v2895 = vpop.f32.mrf.mxu0
        %v2896 = vadd.f32 %v2687, %v2895
        %2897 = vmatmul.f32.gmra.mxu0 %v356
        %v2898 = vpop.f32.mrf.mxu0
        %v2899 = vadd.f32 %v2690, %v2898
        %2900 = vmatmul.f32.gmra.mxu0 %v360
        %v2901 = vpop.f32.mrf.mxu0
        %v2902 = vadd.f32 %v2693, %v2901
        %2903 = vmatmul.f32.gmra.mxu0 %v364
        %v2904 = vpop.f32.mrf.mxu0
        %v2905 = vadd.f32 %v2696, %v2904
        %2906 = vmatmul.f32.gmra.mxu0 %v368
        %v2907 = vpop.f32.mrf.mxu0
        %v2908 = vadd.f32 %v2699, %v2907
        %2909 = vmatmul.f32.gmra.mxu0 %v372
        %v2910 = vpop.f32.mrf.mxu0
        %v2911 = vadd.f32 %v2702, %v2910
        %2912 = vmatmul.f32.gmra.mxu0 %v376
        %v2913 = vpop.f32.mrf.mxu0
        %v2914 = vadd.f32 %v2705, %v2913
        %2915 = vmatmul.f32.gmra.mxu0 %v380
        %v2916 = vpop.f32.mrf.mxu0
        %v2917 = vadd.f32 %v2708, %v2916
        %2918 = vmatmul.f32.gmra.mxu0 %v384
        %v2919 = vpop.f32.mrf.mxu0
        %v2920 = vadd.f32 %v2711, %v2919
        %2921 = vmatmul.f32.gmra.mxu0 %v388
        %v2922 = vpop.f32.mrf.mxu0
        %v2923 = vadd.f32 %v2714, %v2922
        %2924 = vmatmul.f32.gmra.mxu0 %v392
        %v2925 = vpop.f32.mrf.mxu0
        %v2926 = vadd.f32 %v2717, %v2925
        %2927 = vmatmul.f32.gmra.mxu0 %v396
        %v2928 = vpop.f32.mrf.mxu0
        %v2929 = vadd.f32 %v2720, %v2928
        %2930 = vmatmul.f32.gmra.mxu0 %v400
        %v2931 = vpop.f32.mrf.mxu0
        %v2932 = vadd.f32 %v2723, %v2931
        %2933 = vmatmul.f32.gmra.mxu0 %v404
        %v2934 = vpop.f32.mrf.mxu0
        %v2935 = vadd.f32 %v2726, %v2934
        %2936 = vmatmul.f32.gmra.mxu0 %v408
        %v2937 = vpop.f32.mrf.mxu0
        %v2938 = vadd.f32 %v2729, %v2937
        %2939 = vmatmul.f32.gmra.mxu0 %v412
        %v2940 = vpop.f32.mrf.mxu0
        %v2941 = vadd.f32 %v2732, %v2940
        %2942 = vmatmul.f32.gmra.mxu0 %v416
        %v2943 = vpop.f32.mrf.mxu0
        %v2944 = vadd.f32 %v2735, %v2943
        %2945 = vmatmul.f32.gmra.mxu0 %v420
        %v2946 = vpop.f32.mrf.mxu0
        %v2947 = vadd.f32 %v2738, %v2946
        %2948 = vmatmul.f32.gmra.mxu0 %v424
        %v2949 = vpop.f32.mrf.mxu0
        %v2950 = vadd.f32 %v2741, %v2949
        %2951 = vmatmul.f32.gmra.mxu0 %v428
        %v2952 = vpop.f32.mrf.mxu0
        %v2953 = vadd.f32 %v2744, %v2952
        %2954 = vmatmul.f32.gmra.mxu0 %v432
        %v2955 = vpop.f32.mrf.mxu0
        %v2956 = vadd.f32 %v2747, %v2955
        %2957 = vmatmul.f32.gmra.mxu0 %v436
        %v2958 = vpop.f32.mrf.mxu0
        %v2959 = vadd.f32 %v2750, %v2958
        %2960 = vmatmul.f32.gmra.mxu0 %v440
        %v2961 = vpop.f32.mrf.mxu0
        %v2962 = vadd.f32 %v2753, %v2961
        %2963 = vmatmul.f32.gmra.mxu0 %v444
        %v2964 = vpop.f32.mrf.mxu0
        %v2965 = vadd.f32 %v2756, %v2964
        %2966 = vmatmul.f32.gmra.mxu0 %v448
        %v2967 = vpop.f32.mrf.mxu0
        %v2968 = vadd.f32 %v2759, %v2967
        %2969 = vmatmul.f32.gmra.mxu0 %v452
        %v2970 = vpop.f32.mrf.mxu0
        %v2971 = vadd.f32 %v2762, %v2970
        %2972 = vmatmul.f32.gmra.mxu0 %v456
        %v2973 = vpop.f32.mrf.mxu0
        %v2974 = vadd.f32 %v2765, %v2973
        %2975 = vmatmul.f32.gmra.mxu0 %v460
        %v2976 = vpop.f32.mrf.mxu0
        %v2977 = vadd.f32 %v2768, %v2976
        %2978 = vmatmul.f32.gmra.mxu0 %v464
        %v2979 = vpop.f32.mrf.mxu0
        %v2980 = vadd.f32 %v2771, %v2979
        %2981 = vmatmul.f32.gmra.mxu0 %v468
        %v2982 = vpop.f32.mrf.mxu0
        %v2983 = vadd.f32 %v2774, %v2982
        %2984 = vmatmul.f32.gmra.mxu0 %v472
        %v2985 = vpop.f32.mrf.mxu0
        %v2986 = vadd.f32 %v2777, %v2985
        %2987 = vmatmul.f32.gmra.mxu0 %v476
        %v2988 = vpop.f32.mrf.mxu0
        %v2989 = vadd.f32 %v2780, %v2988
        %2990 = vmatmul.f32.gmra.mxu0 %v480
        %v2991 = vpop.f32.mrf.mxu0
        %v2992 = vadd.f32 %v2783, %v2991
        %2993 = vmatmul.f32.gmra.mxu0 %v484
        %v2994 = vpop.f32.mrf.mxu0
        %v2995 = vadd.f32 %v2786, %v2994
        %2996 = vmatmul.f32.gmra.mxu0 %v488
        %v2997 = vpop.f32.mrf.mxu0
        %v2998 = vadd.f32 %v2789, %v2997
        %2999 = vmatmul.f32.gmra.mxu0 %v492
        %v3000 = vpop.f32.mrf.mxu0
        %v3001 = vadd.f32 %v2792, %v3000
        %3002 = vmatmul.f32.gmra.mxu0 %v496
        %v3003 = vpop.f32.mrf.mxu0
        %v3004 = vadd.f32 %v2795, %v3003
        %3005 = vmatmul.f32.gmra.mxu0 %v500
        %v3006 = vpop.f32.mrf.mxu0
        %v3007 = vadd.f32 %v2798, %v3006
        %3008 = vmatmul.f32.gmra.mxu0 %v504
        %v3009 = vpop.f32.mrf.mxu0
        %v3010 = vadd.f32 %v2801, %v3009
        %3011 = vmatmul.f32.gmra.mxu0 %v508
        %v3012 = vpop.f32.mrf.mxu0
        %v3013 = vadd.f32 %v2804, %v3012
        %3014 = vmatmul.f32.gmra.mxu0 %v512
        %v3015 = vpop.f32.mrf.mxu0
        %v3016 = vadd.f32 %v2807, %v3015
        %3017 = vmatmul.f32.gmra.mxu0 %v516
        %v3018 = vpop.f32.mrf.mxu0
        %v3019 = vadd.f32 %v2810, %v3018
        %3020 = vmatmul.f32.gmra.mxu0 %v520
        %v3021 = vpop.f32.mrf.mxu0
        %v3022 = vadd.f32 %v2813, %v3021
        %3023 = vmatmul.f32.gmra.mxu0 %v524
        %v3024 = vpop.f32.mrf.mxu0
        %v3025 = vadd.f32 %v2816, %v3024
        %3026 = vmatmul.f32.gmra.mxu0 %v528
        %v3027 = vpop.f32.mrf.mxu0
        %v3028 = vadd.f32 %v2819, %v3027
        %3029 = vmatmul.f32.gmra.mxu0 %v532
        %v3030 = vpop.f32.mrf.mxu0
        %v3031 = vadd.f32 %v2822, %v3030
        %3032 = vmatmul.f32.gmra.mxu0 %v536
        %v3033 = vpop.f32.mrf.mxu0
        %v3034 = vadd.f32 %v2825, %v3033
        %3035 = vmatmul.f32.gmra.mxu0 %v540
        %v3036 = vpop.f32.mrf.mxu0
        %v3037 = vadd.f32 %v2828, %v3036
        %3038 = vmatmul.f32.gmra.mxu0 %v544
        %v3039 = vpop.f32.mrf.mxu0
        %v3040 = vadd.f32 %v2831, %v3039
        %3041 = vmatmul.f32.gmra.mxu0 %v548
        %v3042 = vpop.f32.mrf.mxu0
        %v3043 = vadd.f32 %v2834, %v3042
        %3044 = vmatmul.f32.gmra.mxu0 %v552
        %v3045 = vpop.f32.mrf.mxu0
        %v3046 = vadd.f32 %v2837, %v3045
        %3047 = vmatmul.f32.gmra.mxu0 %v556
        %v3048 = vpop.f32.mrf.mxu0
        %v3049 = vadd.f32 %v2840, %v3048
        %3050 = vmatmul.f32.gmra.mxu0 %v560
        %v3051 = vpop.f32.mrf.mxu0
        %v3052 = vadd.f32 %v2843, %v3051
        %3053 = vmatmul.f32.gmra.mxu0 %v564
        %v3054 = vpop.f32.mrf.mxu0
        %v3055 = vadd.f32 %v2846, %v3054
        %3056 = vdwg.mxu0
        %3057 = vmatpush.msra.mxu0 %v757
        %3058 = vmatpush.msra.mxu0 %v754
        %3059 = vmatpush.msra.mxu0 %v751
        %3060 = vmatpush.msra.mxu0 %v748
        %3061 = vmatpush.msra.mxu0 %v745
        %3062 = vmatpush.msra.mxu0 %v742
        %3063 = vmatpush.msra.mxu0 %v739
        %3064 = vmatpush.msra.mxu0 %v736
        %3065 = vmatpush.msra.mxu0 %v733
        %3066 = vmatpush.msra.mxu0 %v730
        %3067 = vmatpush.msra.mxu0 %v727
        %3068 = vmatpush.msra.mxu0 %v724
        %3069 = vmatpush.msra.mxu0 %v721
        %3070 = vmatpush.msra.mxu0 %v718
        %3071 = vmatpush.msra.mxu0 %v715
        %3072 = vmatpush.msra.mxu0 %v712
        %3073 = vmatmul.f32.gmra.mxu0 %v313
        %v3074 = vpop.f32.mrf.mxu0
        %v3075 = vadd.f32 %v2866, %v3074
        %3076 = vmatmul.f32.gmra.mxu0 %v317
        %v3077 = vpop.f32.mrf.mxu0
        %v3078 = vadd.f32 %v2869, %v3077
        %3079 = vmatmul.f32.gmra.mxu0 %v321
        %v3080 = vpop.f32.mrf.mxu0
        %v3081 = vadd.f32 %v2872, %v3080
        %3082 = vmatmul.f32.gmra.mxu0 %v325
        %v3083 = vpop.f32.mrf.mxu0
        %v3084 = vadd.f32 %v2875, %v3083
        %3085 = vmatmul.f32.gmra.mxu0 %v329
        %v3086 = vpop.f32.mrf.mxu0
        %v3087 = vadd.f32 %v2878, %v3086
        %3088 = vmatmul.f32.gmra.mxu0 %v333
        %v3089 = vpop.f32.mrf.mxu0
        %v3090 = vadd.f32 %v2881, %v3089
        %3091 = vmatmul.f32.gmra.mxu0 %v337
        %v3092 = vpop.f32.mrf.mxu0
        %v3093 = vadd.f32 %v2884, %v3092
        %3094 = vmatmul.f32.gmra.mxu0 %v341
        %v3095 = vpop.f32.mrf.mxu0
        %v3096 = vadd.f32 %v2887, %v3095
        %3097 = vmatmul.f32.gmra.mxu0 %v345
        %v3098 = vpop.f32.mrf.mxu0
        %v3099 = vadd.f32 %v2890, %v3098
        %3100 = vmatmul.f32.gmra.mxu0 %v349
        %v3101 = vpop.f32.mrf.mxu0
        %v3102 = vadd.f32 %v2893, %v3101
        %3103 = vmatmul.f32.gmra.mxu0 %v353
        %v3104 = vpop.f32.mrf.mxu0
        %v3105 = vadd.f32 %v2896, %v3104
        %3106 = vmatmul.f32.gmra.mxu0 %v357
        %v3107 = vpop.f32.mrf.mxu0
        %v3108 = vadd.f32 %v2899, %v3107
        %3109 = vmatmul.f32.gmra.mxu0 %v361
        %v3110 = vpop.f32.mrf.mxu0
        %v3111 = vadd.f32 %v2902, %v3110
        %3112 = vmatmul.f32.gmra.mxu0 %v365
        %v3113 = vpop.f32.mrf.mxu0
        %v3114 = vadd.f32 %v2905, %v3113
        %3115 = vmatmul.f32.gmra.mxu0 %v369
        %v3116 = vpop.f32.mrf.mxu0
        %v3117 = vadd.f32 %v2908, %v3116
        %3118 = vmatmul.f32.gmra.mxu0 %v373
        %v3119 = vpop.f32.mrf.mxu0
        %v3120 = vadd.f32 %v2911, %v3119
        %3121 = vmatmul.f32.gmra.mxu0 %v377
        %v3122 = vpop.f32.mrf.mxu0
        %v3123 = vadd.f32 %v2914, %v3122
        %3124 = vmatmul.f32.gmra.mxu0 %v381
        %v3125 = vpop.f32.mrf.mxu0
        %v3126 = vadd.f32 %v2917, %v3125
        %3127 = vmatmul.f32.gmra.mxu0 %v385
        %v3128 = vpop.f32.mrf.mxu0
        %v3129 = vadd.f32 %v2920, %v3128
        %3130 = vmatmul.f32.gmra.mxu0 %v389
        %v3131 = vpop.f32.mrf.mxu0
        %v3132 = vadd.f32 %v2923, %v3131
        %3133 = vmatmul.f32.gmra.mxu0 %v393
        %v3134 = vpop.f32.mrf.mxu0
        %v3135 = vadd.f32 %v2926, %v3134
        %3136 = vmatmul.f32.gmra.mxu0 %v397
        %v3137 = vpop.f32.mrf.mxu0
        %v3138 = vadd.f32 %v2929, %v3137
        %3139 = vmatmul.f32.gmra.mxu0 %v401
        %v3140 = vpop.f32.mrf.mxu0
        %v3141 = vadd.f32 %v2932, %v3140
        %3142 = vmatmul.f32.gmra.mxu0 %v405
        %v3143 = vpop.f32.mrf.mxu0
        %v3144 = vadd.f32 %v2935, %v3143
        %3145 = vmatmul.f32.gmra.mxu0 %v409
        %v3146 = vpop.f32.mrf.mxu0
        %v3147 = vadd.f32 %v2938, %v3146
        %3148 = vmatmul.f32.gmra.mxu0 %v413
        %v3149 = vpop.f32.mrf.mxu0
        %v3150 = vadd.f32 %v2941, %v3149
        %3151 = vmatmul.f32.gmra.mxu0 %v417
        %v3152 = vpop.f32.mrf.mxu0
        %v3153 = vadd.f32 %v2944, %v3152
        %3154 = vmatmul.f32.gmra.mxu0 %v421
        %v3155 = vpop.f32.mrf.mxu0
        %v3156 = vadd.f32 %v2947, %v3155
        %3157 = vmatmul.f32.gmra.mxu0 %v425
        %v3158 = vpop.f32.mrf.mxu0
        %v3159 = vadd.f32 %v2950, %v3158
        %3160 = vmatmul.f32.gmra.mxu0 %v429
        %v3161 = vpop.f32.mrf.mxu0
        %v3162 = vadd.f32 %v2953, %v3161
        %3163 = vmatmul.f32.gmra.mxu0 %v433
        %v3164 = vpop.f32.mrf.mxu0
        %v3165 = vadd.f32 %v2956, %v3164
        %3166 = vmatmul.f32.gmra.mxu0 %v437
        %v3167 = vpop.f32.mrf.mxu0
        %v3168 = vadd.f32 %v2959, %v3167
        %3169 = vmatmul.f32.gmra.mxu0 %v441
        %v3170 = vpop.f32.mrf.mxu0
        %v3171 = vadd.f32 %v2962, %v3170
        %3172 = vmatmul.f32.gmra.mxu0 %v445
        %v3173 = vpop.f32.mrf.mxu0
        %v3174 = vadd.f32 %v2965, %v3173
        %3175 = vmatmul.f32.gmra.mxu0 %v449
        %v3176 = vpop.f32.mrf.mxu0
        %v3177 = vadd.f32 %v2968, %v3176
        %3178 = vmatmul.f32.gmra.mxu0 %v453
        %v3179 = vpop.f32.mrf.mxu0
        %v3180 = vadd.f32 %v2971, %v3179
        %3181 = vmatmul.f32.gmra.mxu0 %v457
        %v3182 = vpop.f32.mrf.mxu0
        %v3183 = vadd.f32 %v2974, %v3182
        %3184 = vmatmul.f32.gmra.mxu0 %v461
        %v3185 = vpop.f32.mrf.mxu0
        %v3186 = vadd.f32 %v2977, %v3185
        %3187 = vmatmul.f32.gmra.mxu0 %v465
        %v3188 = vpop.f32.mrf.mxu0
        %v3189 = vadd.f32 %v2980, %v3188
        %3190 = vmatmul.f32.gmra.mxu0 %v469
        %v3191 = vpop.f32.mrf.mxu0
        %v3192 = vadd.f32 %v2983, %v3191
        %3193 = vmatmul.f32.gmra.mxu0 %v473
        %v3194 = vpop.f32.mrf.mxu0
        %v3195 = vadd.f32 %v2986, %v3194
        %3196 = vmatmul.f32.gmra.mxu0 %v477
        %v3197 = vpop.f32.mrf.mxu0
        %v3198 = vadd.f32 %v2989, %v3197
        %3199 = vmatmul.f32.gmra.mxu0 %v481
        %v3200 = vpop.f32.mrf.mxu0
        %v3201 = vadd.f32 %v2992, %v3200
        %3202 = vmatmul.f32.gmra.mxu0 %v485
        %v3203 = vpop.f32.mrf.mxu0
        %v3204 = vadd.f32 %v2995, %v3203
        %3205 = vmatmul.f32.gmra.mxu0 %v489
        %v3206 = vpop.f32.mrf.mxu0
        %v3207 = vadd.f32 %v2998, %v3206
        %3208 = vmatmul.f32.gmra.mxu0 %v493
        %v3209 = vpop.f32.mrf.mxu0
        %v3210 = vadd.f32 %v3001, %v3209
        %3211 = vmatmul.f32.gmra.mxu0 %v497
        %v3212 = vpop.f32.mrf.mxu0
        %v3213 = vadd.f32 %v3004, %v3212
        %3214 = vmatmul.f32.gmra.mxu0 %v501
        %v3215 = vpop.f32.mrf.mxu0
        %v3216 = vadd.f32 %v3007, %v3215
        %3217 = vmatmul.f32.gmra.mxu0 %v505
        %v3218 = vpop.f32.mrf.mxu0
        %v3219 = vadd.f32 %v3010, %v3218
        %3220 = vmatmul.f32.gmra.mxu0 %v509
        %v3221 = vpop.f32.mrf.mxu0
        %v3222 = vadd.f32 %v3013, %v3221
        %3223 = vmatmul.f32.gmra.mxu0 %v513
        %v3224 = vpop.f32.mrf.mxu0
        %v3225 = vadd.f32 %v3016, %v3224
        %3226 = vmatmul.f32.gmra.mxu0 %v517
        %v3227 = vpop.f32.mrf.mxu0
        %v3228 = vadd.f32 %v3019, %v3227
        %3229 = vmatmul.f32.gmra.mxu0 %v521
        %v3230 = vpop.f32.mrf.mxu0
        %v3231 = vadd.f32 %v3022, %v3230
        %3232 = vmatmul.f32.gmra.mxu0 %v525
        %v3233 = vpop.f32.mrf.mxu0
        %v3234 = vadd.f32 %v3025, %v3233
        %3235 = vmatmul.f32.gmra.mxu0 %v529
        %v3236 = vpop.f32.mrf.mxu0
        %v3237 = vadd.f32 %v3028, %v3236
        %3238 = vmatmul.f32.gmra.mxu0 %v533
        %v3239 = vpop.f32.mrf.mxu0
        %v3240 = vadd.f32 %v3031, %v3239
        %3241 = vmatmul.f32.gmra.mxu0 %v537
        %v3242 = vpop.f32.mrf.mxu0
        %v3243 = vadd.f32 %v3034, %v3242
        %3244 = vmatmul.f32.gmra.mxu0 %v541
        %v3245 = vpop.f32.mrf.mxu0
        %v3246 = vadd.f32 %v3037, %v3245
        %3247 = vmatmul.f32.gmra.mxu0 %v545
        %v3248 = vpop.f32.mrf.mxu0
        %v3249 = vadd.f32 %v3040, %v3248
        %3250 = vmatmul.f32.gmra.mxu0 %v549
        %v3251 = vpop.f32.mrf.mxu0
        %v3252 = vadd.f32 %v3043, %v3251
        %3253 = vmatmul.f32.gmra.mxu0 %v553
        %v3254 = vpop.f32.mrf.mxu0
        %v3255 = vadd.f32 %v3046, %v3254
        %3256 = vmatmul.f32.gmra.mxu0 %v557
        %v3257 = vpop.f32.mrf.mxu0
        %v3258 = vadd.f32 %v3049, %v3257
        %3259 = vmatmul.f32.gmra.mxu0 %v561
        %v3260 = vpop.f32.mrf.mxu0
        %v3261 = vadd.f32 %v3052, %v3260
        %3262 = vmatmul.f32.gmra.mxu0 %v565
        %v3263 = vpop.f32.mrf.mxu0
        %v3264 = vadd.f32 %v3055, %v3263
        %3265 = vdwg.mxu0
        %p3266 = scmp.eq.s32.totalorder %s30, 0
        // Predicated region
        $region45: #{tpu_custom_call.1} parent=31 // pred_check
          %p3267 = pneg %p3266
        $region46: #{tpu_custom_call.1} parent=31 // pred_check_branch
          %3269 = sbr.rel (%p3267) target = $region48
        $region47: #{tpu_custom_call.1} parent=31 // pred_region
          %3270 = vst [vmem:[#allocation2] sm:$0xff] %v1403
          %3271 = vst [vmem:[#allocation2 + $0x8] sm:$0xff] %v2239
          %3272 = vst [vmem:[#allocation2 + $0x10] sm:$0xff] %v3075
          %3273 = vst [vmem:[#allocation2 + $0x18] sm:$0xff] %v1406
          %3274 = vst [vmem:[#allocation2 + $0x20] sm:$0xff] %v2242
          %3275 = vst [vmem:[#allocation2 + $0x28] sm:$0xff] %v3078
          %3276 = vst [vmem:[#allocation2 + $0x30] sm:$0xff] %v1409
          %3277 = vst [vmem:[#allocation2 + $0x38] sm:$0xff] %v2245
          %3278 = vst [vmem:[#allocation2 + $0x40] sm:$0xff] %v3081
          %3279 = vst [vmem:[#allocation2 + $0x48] sm:$0xff] %v1412
          %3280 = vst [vmem:[#allocation2 + $0x50] sm:$0xff] %v2248
          %3281 = vst [vmem:[#allocation2 + $0x58] sm:$0xff] %v3084
          %3282 = vst [vmem:[#allocation2 + $0x60] sm:$0xff] %v1415
          %3283 = vst [vmem:[#allocation2 + $0x68] sm:$0xff] %v2251
          %3284 = vst [vmem:[#allocation2 + $0x70] sm:$0xff] %v3087
          %3285 = vst [vmem:[#allocation2 + $0x78] sm:$0xff] %v1418
          %3286 = vst [vmem:[#allocation2 + $0x80] sm:$0xff] %v2254
          %3287 = vst [vmem:[#allocation2 + $0x88] sm:$0xff] %v3090
          %3288 = vst [vmem:[#allocation2 + $0x90] sm:$0xff] %v1421
          %3289 = vst [vmem:[#allocation2 + $0x98] sm:$0xff] %v2257
          %3290 = vst [vmem:[#allocation2 + $0xa0] sm:$0xff] %v3093
          %3291 = vst [vmem:[#allocation2 + $0xa8] sm:$0xff] %v1424
          %3292 = vst [vmem:[#allocation2 + $0xb0] sm:$0xff] %v2260
          %3293 = vst [vmem:[#allocation2 + $0xb8] sm:$0xff] %v3096
          %3294 = vst [vmem:[#allocation2 + $0xc0] sm:$0xff] %v1427
          %3295 = vst [vmem:[#allocation2 + $0xc8] sm:$0xff] %v2263
          %3296 = vst [vmem:[#allocation2 + $0xd0] sm:$0xff] %v3099
          %3297 = vst [vmem:[#allocation2 + $0xd8] sm:$0xff] %v1430
          %3298 = vst [vmem:[#allocation2 + $0xe0] sm:$0xff] %v2266
          %3299 = vst [vmem:[#allocation2 + $0xe8] sm:$0xff] %v3102
          %3300 = vst [vmem:[#allocation2 + $0xf0] sm:$0xff] %v1433
          %3301 = vst [vmem:[#allocation2 + $0xf8] sm:$0xff] %v2269
          %3302 = vst [vmem:[#allocation2 + $0x100] sm:$0xff] %v3105
          %3303 = vst [vmem:[#allocation2 + $0x108] sm:$0xff] %v1436
          %3304 = vst [vmem:[#allocation2 + $0x110] sm:$0xff] %v2272
          %3305 = vst [vmem:[#allocation2 + $0x118] sm:$0xff] %v3108
          %3306 = vst [vmem:[#allocation2 + $0x120] sm:$0xff] %v1439
          %3307 = vst [vmem:[#allocation2 + $0x128] sm:$0xff] %v2275
          %3308 = vst [vmem:[#allocation2 + $0x130] sm:$0xff] %v3111
          %3309 = vst [vmem:[#allocation2 + $0x138] sm:$0xff] %v1442
          %3310 = vst [vmem:[#allocation2 + $0x140] sm:$0xff] %v2278
          %3311 = vst [vmem:[#allocation2 + $0x148] sm:$0xff] %v3114
          %3312 = vst [vmem:[#allocation2 + $0x150] sm:$0xff] %v1445
          %3313 = vst [vmem:[#allocation2 + $0x158] sm:$0xff] %v2281
          %3314 = vst [vmem:[#allocation2 + $0x160] sm:$0xff] %v3117
          %3315 = vst [vmem:[#allocation2 + $0x168] sm:$0xff] %v1448
          %3316 = vst [vmem:[#allocation2 + $0x170] sm:$0xff] %v2284
          %3317 = vst [vmem:[#allocation2 + $0x178] sm:$0xff] %v3120
          %3318 = vst [vmem:[#allocation2 + $0x180] sm:$0xff] %v1451
          %3319 = vst [vmem:[#allocation2 + $0x188] sm:$0xff] %v2287
          %3320 = vst [vmem:[#allocation2 + $0x190] sm:$0xff] %v3123
          %3321 = vst [vmem:[#allocation2 + $0x198] sm:$0xff] %v1454
          %3322 = vst [vmem:[#allocation2 + $0x1a0] sm:$0xff] %v2290
          %3323 = vst [vmem:[#allocation2 + $0x1a8] sm:$0xff] %v3126
          %3324 = vst [vmem:[#allocation2 + $0x1b0] sm:$0xff] %v1457
          %3325 = vst [vmem:[#allocation2 + $0x1b8] sm:$0xff] %v2293
          %3326 = vst [vmem:[#allocation2 + $0x1c0] sm:$0xff] %v3129
          %3327 = vst [vmem:[#allocation2 + $0x1c8] sm:$0xff] %v1460
          %3328 = vst [vmem:[#allocation2 + $0x1d0] sm:$0xff] %v2296
          %3329 = vst [vmem:[#allocation2 + $0x1d8] sm:$0xff] %v3132
          %3330 = vst [vmem:[#allocation2 + $0x1e0] sm:$0xff] %v1463
          %3331 = vst [vmem:[#allocation2 + $0x1e8] sm:$0xff] %v2299
          %3332 = vst [vmem:[#allocation2 + $0x1f0] sm:$0xff] %v3135
          %3333 = vst [vmem:[#allocation2 + $0x1f8] sm:$0xff] %v1466
          %3334 = vst [vmem:[#allocation2 + $0x200] sm:$0xff] %v2302
          %3335 = vst [vmem:[#allocation2 + $0x208] sm:$0xff] %v3138
          %3336 = vst [vmem:[#allocation2 + $0x210] sm:$0xff] %v1469
          %3337 = vst [vmem:[#allocation2 + $0x218] sm:$0xff] %v2305
          %3338 = vst [vmem:[#allocation2 + $0x220] sm:$0xff] %v3141
          %3339 = vst [vmem:[#allocation2 + $0x228] sm:$0xff] %v1472
          %3340 = vst [vmem:[#allocation2 + $0x230] sm:$0xff] %v2308
          %3341 = vst [vmem:[#allocation2 + $0x238] sm:$0xff] %v3144
          %3342 = vst [vmem:[#allocation2 + $0x240] sm:$0xff] %v1475
          %3343 = vst [vmem:[#allocation2 + $0x248] sm:$0xff] %v2311
          %3344 = vst [vmem:[#allocation2 + $0x250] sm:$0xff] %v3147
          %3345 = vst [vmem:[#allocation2 + $0x258] sm:$0xff] %v1478
          %3346 = vst [vmem:[#allocation2 + $0x260] sm:$0xff] %v2314
          %3347 = vst [vmem:[#allocation2 + $0x268] sm:$0xff] %v3150
          %3348 = vst [vmem:[#allocation2 + $0x270] sm:$0xff] %v1481
          %3349 = vst [vmem:[#allocation2 + $0x278] sm:$0xff] %v2317
          %3350 = vst [vmem:[#allocation2 + $0x280] sm:$0xff] %v3153
          %3351 = vst [vmem:[#allocation2 + $0x288] sm:$0xff] %v1484
          %3352 = vst [vmem:[#allocation2 + $0x290] sm:$0xff] %v2320
          %3353 = vst [vmem:[#allocation2 + $0x298] sm:$0xff] %v3156
          %3354 = vst [vmem:[#allocation2 + $0x2a0] sm:$0xff] %v1487
          %3355 = vst [vmem:[#allocation2 + $0x2a8] sm:$0xff] %v2323
          %3356 = vst [vmem:[#allocation2 + $0x2b0] sm:$0xff] %v3159
          %3357 = vst [vmem:[#allocation2 + $0x2b8] sm:$0xff] %v1490
          %3358 = vst [vmem:[#allocation2 + $0x2c0] sm:$0xff] %v2326
          %3359 = vst [vmem:[#allocation2 + $0x2c8] sm:$0xff] %v3162
          %3360 = vst [vmem:[#allocation2 + $0x2d0] sm:$0xff] %v1493
          %3361 = vst [vmem:[#allocation2 + $0x2d8] sm:$0xff] %v2329
          %3362 = vst [vmem:[#allocation2 + $0x2e0] sm:$0xff] %v3165
          %3363 = vst [vmem:[#allocation2 + $0x2e8] sm:$0xff] %v1496
          %3364 = vst [vmem:[#allocation2 + $0x2f0] sm:$0xff] %v2332
          %3365 = vst [vmem:[#allocation2 + $0x2f8] sm:$0xff] %v3168
          %3366 = vst [vmem:[#allocation2 + $0x300] sm:$0xff] %v1499
          %3367 = vst [vmem:[#allocation2 + $0x308] sm:$0xff] %v2335
          %3368 = vst [vmem:[#allocation2 + $0x310] sm:$0xff] %v3171
          %3369 = vst [vmem:[#allocation2 + $0x318] sm:$0xff] %v1502
          %3370 = vst [vmem:[#allocation2 + $0x320] sm:$0xff] %v2338
          %3371 = vst [vmem:[#allocation2 + $0x328] sm:$0xff] %v3174
          %3372 = vst [vmem:[#allocation2 + $0x330] sm:$0xff] %v1505
          %3373 = vst [vmem:[#allocation2 + $0x338] sm:$0xff] %v2341
          %3374 = vst [vmem:[#allocation2 + $0x340] sm:$0xff] %v3177
          %3375 = vst [vmem:[#allocation2 + $0x348] sm:$0xff] %v1508
          %3376 = vst [vmem:[#allocation2 + $0x350] sm:$0xff] %v2344
          %3377 = vst [vmem:[#allocation2 + $0x358] sm:$0xff] %v3180
          %3378 = vst [vmem:[#allocation2 + $0x360] sm:$0xff] %v1511
          %3379 = vst [vmem:[#allocation2 + $0x368] sm:$0xff] %v2347
          %3380 = vst [vmem:[#allocation2 + $0x370] sm:$0xff] %v3183
          %3381 = vst [vmem:[#allocation2 + $0x378] sm:$0xff] %v1514
          %3382 = vst [vmem:[#allocation2 + $0x380] sm:$0xff] %v2350
          %3383 = vst [vmem:[#allocation2 + $0x388] sm:$0xff] %v3186
          %3384 = vst [vmem:[#allocation2 + $0x390] sm:$0xff] %v1517
          %3385 = vst [vmem:[#allocation2 + $0x398] sm:$0xff] %v2353
          %3386 = vst [vmem:[#allocation2 + $0x3a0] sm:$0xff] %v3189
          %3387 = vst [vmem:[#allocation2 + $0x3a8] sm:$0xff] %v1520
          %3388 = vst [vmem:[#allocation2 + $0x3b0] sm:$0xff] %v2356
          %3389 = vst [vmem:[#allocation2 + $0x3b8] sm:$0xff] %v3192
          %3390 = vst [vmem:[#allocation2 + $0x3c0] sm:$0xff] %v1523
          %3391 = vst [vmem:[#allocation2 + $0x3c8] sm:$0xff] %v2359
          %3392 = vst [vmem:[#allocation2 + $0x3d0] sm:$0xff] %v3195
          %3393 = vst [vmem:[#allocation2 + $0x3d8] sm:$0xff] %v1526
          %3394 = vst [vmem:[#allocation2 + $0x3e0] sm:$0xff] %v2362
          %3395 = vst [vmem:[#allocation2 + $0x3e8] sm:$0xff] %v3198
          %3396 = vst [vmem:[#allocation2 + $0x3f0] sm:$0xff] %v1529
          %3397 = vst [vmem:[#allocation2 + $0x3f8] sm:$0xff] %v2365
          %3398 = vst [vmem:[#allocation2 + $0x400] sm:$0xff] %v3201
          %3399 = vst [vmem:[#allocation2 + $0x408] sm:$0xff] %v1532
          %3400 = vst [vmem:[#allocation2 + $0x410] sm:$0xff] %v2368
          %3401 = vst [vmem:[#allocation2 + $0x418] sm:$0xff] %v3204
          %3402 = vst [vmem:[#allocation2 + $0x420] sm:$0xff] %v1535
          %3403 = vst [vmem:[#allocation2 + $0x428] sm:$0xff] %v2371
          %3404 = vst [vmem:[#allocation2 + $0x430] sm:$0xff] %v3207
          %3405 = vst [vmem:[#allocation2 + $0x438] sm:$0xff] %v1538
          %3406 = vst [vmem:[#allocation2 + $0x440] sm:$0xff] %v2374
          %3407 = vst [vmem:[#allocation2 + $0x448] sm:$0xff] %v3210
          %3408 = vst [vmem:[#allocation2 + $0x450] sm:$0xff] %v1541
          %3409 = vst [vmem:[#allocation2 + $0x458] sm:$0xff] %v2377
          %3410 = vst [vmem:[#allocation2 + $0x460] sm:$0xff] %v3213
          %3411 = vst [vmem:[#allocation2 + $0x468] sm:$0xff] %v1544
          %3412 = vst [vmem:[#allocation2 + $0x470] sm:$0xff] %v2380
          %3413 = vst [vmem:[#allocation2 + $0x478] sm:$0xff] %v3216
          %3414 = vst [vmem:[#allocation2 + $0x480] sm:$0xff] %v1547
          %3415 = vst [vmem:[#allocation2 + $0x488] sm:$0xff] %v2383
          %3416 = vst [vmem:[#allocation2 + $0x490] sm:$0xff] %v3219
          %3417 = vst [vmem:[#allocation2 + $0x498] sm:$0xff] %v1550
          %3418 = vst [vmem:[#allocation2 + $0x4a0] sm:$0xff] %v2386
          %3419 = vst [vmem:[#allocation2 + $0x4a8] sm:$0xff] %v3222
          %3420 = vst [vmem:[#allocation2 + $0x4b0] sm:$0xff] %v1553
          %3421 = vst [vmem:[#allocation2 + $0x4b8] sm:$0xff] %v2389
          %3422 = vst [vmem:[#allocation2 + $0x4c0] sm:$0xff] %v3225
          %3423 = vst [vmem:[#allocation2 + $0x4c8] sm:$0xff] %v1556
          %3424 = vst [vmem:[#allocation2 + $0x4d0] sm:$0xff] %v2392
          %3425 = vst [vmem:[#allocation2 + $0x4d8] sm:$0xff] %v3228
          %3426 = vst [vmem:[#allocation2 + $0x4e0] sm:$0xff] %v1559
          %3427 = vst [vmem:[#allocation2 + $0x4e8] sm:$0xff] %v2395
          %3428 = vst [vmem:[#allocation2 + $0x4f0] sm:$0xff] %v3231
          %3429 = vst [vmem:[#allocation2 + $0x4f8] sm:$0xff] %v1562
          %3430 = vst [vmem:[#allocation2 + $0x500] sm:$0xff] %v2398
          %3431 = vst [vmem:[#allocation2 + $0x508] sm:$0xff] %v3234
          %3432 = vst [vmem:[#allocation2 + $0x510] sm:$0xff] %v1565
          %3433 = vst [vmem:[#allocation2 + $0x518] sm:$0xff] %v2401
          %3434 = vst [vmem:[#allocation2 + $0x520] sm:$0xff] %v3237
          %3435 = vst [vmem:[#allocation2 + $0x528] sm:$0xff] %v1568
          %3436 = vst [vmem:[#allocation2 + $0x530] sm:$0xff] %v2404
          %3437 = vst [vmem:[#allocation2 + $0x538] sm:$0xff] %v3240
          %3438 = vst [vmem:[#allocation2 + $0x540] sm:$0xff] %v1571
          %3439 = vst [vmem:[#allocation2 + $0x548] sm:$0xff] %v2407
          %3440 = vst [vmem:[#allocation2 + $0x550] sm:$0xff] %v3243
          %3441 = vst [vmem:[#allocation2 + $0x558] sm:$0xff] %v1574
          %3442 = vst [vmem:[#allocation2 + $0x560] sm:$0xff] %v2410
          %3443 = vst [vmem:[#allocation2 + $0x568] sm:$0xff] %v3246
          %3444 = vst [vmem:[#allocation2 + $0x570] sm:$0xff] %v1577
          %3445 = vst [vmem:[#allocation2 + $0x578] sm:$0xff] %v2413
          %3446 = vst [vmem:[#allocation2 + $0x580] sm:$0xff] %v3249
          %3447 = vst [vmem:[#allocation2 + $0x588] sm:$0xff] %v1580
          %3448 = vst [vmem:[#allocation2 + $0x590] sm:$0xff] %v2416
          %3449 = vst [vmem:[#allocation2 + $0x598] sm:$0xff] %v3252
          %3450 = vst [vmem:[#allocation2 + $0x5a0] sm:$0xff] %v1583
          %3451 = vst [vmem:[#allocation2 + $0x5a8] sm:$0xff] %v2419
          %3452 = vst [vmem:[#allocation2 + $0x5b0] sm:$0xff] %v3255
          %3453 = vst [vmem:[#allocation2 + $0x5b8] sm:$0xff] %v1586
          %3454 = vst [vmem:[#allocation2 + $0x5c0] sm:$0xff] %v2422
          %3455 = vst [vmem:[#allocation2 + $0x5c8] sm:$0xff] %v3258
          %3456 = vst [vmem:[#allocation2 + $0x5d0] sm:$0xff] %v1589
          %3457 = vst [vmem:[#allocation2 + $0x5d8] sm:$0xff] %v2425
          %3458 = vst [vmem:[#allocation2 + $0x5e0] sm:$0xff] %v3261
          %3459 = vst [vmem:[#allocation2 + $0x5e8] sm:$0xff] %v1592
          %3460 = vst [vmem:[#allocation2 + $0x5f0] sm:$0xff] %v2428
          %3461 = vst [vmem:[#allocation2 + $0x5f8] sm:$0xff] %v3264
        $region48: #{tpu_custom_call.1} parent=31 // pred_fallthru
          _
        %p3462 = scmp.gt.s32.totalorder %s30, 0
        // Predicated region
        $region49: #{tpu_custom_call.1} parent=31 // pred_check
          %p3463 = pneg %p3462
        $region50: #{tpu_custom_call.1} parent=31 // pred_check_branch
          %3465 = sbr.rel (%p3463) target = $region52
        $region51: #{tpu_custom_call.1} parent=31 // pred_region
          %v3466 = vld [vmem:[#allocation2] sm:$0xff]
          %v3467 = vld [vmem:[#allocation2 + $0x8] sm:$0xff]
          %v3468 = vld [vmem:[#allocation2 + $0x10] sm:$0xff]
          %v3469 = vld [vmem:[#allocation2 + $0x18] sm:$0xff]
          %v3470 = vld [vmem:[#allocation2 + $0x20] sm:$0xff]
          %v3471 = vld [vmem:[#allocation2 + $0x28] sm:$0xff]
          %v3472 = vld [vmem:[#allocation2 + $0x30] sm:$0xff]
          %v3473 = vld [vmem:[#allocation2 + $0x38] sm:$0xff]
          %v3474 = vld [vmem:[#allocation2 + $0x40] sm:$0xff]
          %v3475 = vld [vmem:[#allocation2 + $0x48] sm:$0xff]
          %v3476 = vld [vmem:[#allocation2 + $0x50] sm:$0xff]
          %v3477 = vld [vmem:[#allocation2 + $0x58] sm:$0xff]
          %v3478 = vld [vmem:[#allocation2 + $0x60] sm:$0xff]
          %v3479 = vld [vmem:[#allocation2 + $0x68] sm:$0xff]
          %v3480 = vld [vmem:[#allocation2 + $0x70] sm:$0xff]
          %v3481 = vld [vmem:[#allocation2 + $0x78] sm:$0xff]
          %v3482 = vld [vmem:[#allocation2 + $0x80] sm:$0xff]
          %v3483 = vld [vmem:[#allocation2 + $0x88] sm:$0xff]
          %v3484 = vld [vmem:[#allocation2 + $0x90] sm:$0xff]
          %v3485 = vld [vmem:[#allocation2 + $0x98] sm:$0xff]
          %v3486 = vld [vmem:[#allocation2 + $0xa0] sm:$0xff]
          %v3487 = vld [vmem:[#allocation2 + $0xa8] sm:$0xff]
          %v3488 = vld [vmem:[#allocation2 + $0xb0] sm:$0xff]
          %v3489 = vld [vmem:[#allocation2 + $0xb8] sm:$0xff]
          %v3490 = vld [vmem:[#allocation2 + $0xc0] sm:$0xff]
          %v3491 = vld [vmem:[#allocation2 + $0xc8] sm:$0xff]
          %v3492 = vld [vmem:[#allocation2 + $0xd0] sm:$0xff]
          %v3493 = vld [vmem:[#allocation2 + $0xd8] sm:$0xff]
          %v3494 = vld [vmem:[#allocation2 + $0xe0] sm:$0xff]
          %v3495 = vld [vmem:[#allocation2 + $0xe8] sm:$0xff]
          %v3496 = vld [vmem:[#allocation2 + $0xf0] sm:$0xff]
          %v3497 = vld [vmem:[#allocation2 + $0xf8] sm:$0xff]
          %v3498 = vld [vmem:[#allocation2 + $0x100] sm:$0xff]
          %v3499 = vld [vmem:[#allocation2 + $0x108] sm:$0xff]
          %v3500 = vld [vmem:[#allocation2 + $0x110] sm:$0xff]
          %v3501 = vld [vmem:[#allocation2 + $0x118] sm:$0xff]
          %v3502 = vld [vmem:[#allocation2 + $0x120] sm:$0xff]
          %v3503 = vld [vmem:[#allocation2 + $0x128] sm:$0xff]
          %v3504 = vld [vmem:[#allocation2 + $0x130] sm:$0xff]
          %v3505 = vld [vmem:[#allocation2 + $0x138] sm:$0xff]
          %v3506 = vld [vmem:[#allocation2 + $0x140] sm:$0xff]
          %v3507 = vld [vmem:[#allocation2 + $0x148] sm:$0xff]
          %v3508 = vld [vmem:[#allocation2 + $0x150] sm:$0xff]
          %v3509 = vld [vmem:[#allocation2 + $0x158] sm:$0xff]
          %v3510 = vld [vmem:[#allocation2 + $0x160] sm:$0xff]
          %v3511 = vld [vmem:[#allocation2 + $0x168] sm:$0xff]
          %v3512 = vld [vmem:[#allocation2 + $0x170] sm:$0xff]
          %v3513 = vld [vmem:[#allocation2 + $0x178] sm:$0xff]
          %v3514 = vld [vmem:[#allocation2 + $0x180] sm:$0xff]
          %v3515 = vld [vmem:[#allocation2 + $0x188] sm:$0xff]
          %v3516 = vld [vmem:[#allocation2 + $0x190] sm:$0xff]
          %v3517 = vld [vmem:[#allocation2 + $0x198] sm:$0xff]
          %v3518 = vld [vmem:[#allocation2 + $0x1a0] sm:$0xff]
          %v3519 = vld [vmem:[#allocation2 + $0x1a8] sm:$0xff]
          %v3520 = vld [vmem:[#allocation2 + $0x1b0] sm:$0xff]
          %v3521 = vld [vmem:[#allocation2 + $0x1b8] sm:$0xff]
          %v3522 = vld [vmem:[#allocation2 + $0x1c0] sm:$0xff]
          %v3523 = vld [vmem:[#allocation2 + $0x1c8] sm:$0xff]
          %v3524 = vld [vmem:[#allocation2 + $0x1d0] sm:$0xff]
          %v3525 = vld [vmem:[#allocation2 + $0x1d8] sm:$0xff]
          %v3526 = vld [vmem:[#allocation2 + $0x1e0] sm:$0xff]
          %v3527 = vld [vmem:[#allocation2 + $0x1e8] sm:$0xff]
          %v3528 = vld [vmem:[#allocation2 + $0x1f0] sm:$0xff]
          %v3529 = vld [vmem:[#allocation2 + $0x1f8] sm:$0xff]
          %v3530 = vld [vmem:[#allocation2 + $0x200] sm:$0xff]
          %v3531 = vld [vmem:[#allocation2 + $0x208] sm:$0xff]
          %v3532 = vld [vmem:[#allocation2 + $0x210] sm:$0xff]
          %v3533 = vld [vmem:[#allocation2 + $0x218] sm:$0xff]
          %v3534 = vld [vmem:[#allocation2 + $0x220] sm:$0xff]
          %v3535 = vld [vmem:[#allocation2 + $0x228] sm:$0xff]
          %v3536 = vld [vmem:[#allocation2 + $0x230] sm:$0xff]
          %v3537 = vld [vmem:[#allocation2 + $0x238] sm:$0xff]
          %v3538 = vld [vmem:[#allocation2 + $0x240] sm:$0xff]
          %v3539 = vld [vmem:[#allocation2 + $0x248] sm:$0xff]
          %v3540 = vld [vmem:[#allocation2 + $0x250] sm:$0xff]
          %v3541 = vld [vmem:[#allocation2 + $0x258] sm:$0xff]
          %v3542 = vld [vmem:[#allocation2 + $0x260] sm:$0xff]
          %v3543 = vld [vmem:[#allocation2 + $0x268] sm:$0xff]
          %v3544 = vld [vmem:[#allocation2 + $0x270] sm:$0xff]
          %v3545 = vld [vmem:[#allocation2 + $0x278] sm:$0xff]
          %v3546 = vld [vmem:[#allocation2 + $0x280] sm:$0xff]
          %v3547 = vld [vmem:[#allocation2 + $0x288] sm:$0xff]
          %v3548 = vld [vmem:[#allocation2 + $0x290] sm:$0xff]
          %v3549 = vld [vmem:[#allocation2 + $0x298] sm:$0xff]
          %v3550 = vld [vmem:[#allocation2 + $0x2a0] sm:$0xff]
          %v3551 = vld [vmem:[#allocation2 + $0x2a8] sm:$0xff]
          %v3552 = vld [vmem:[#allocation2 + $0x2b0] sm:$0xff]
          %v3553 = vld [vmem:[#allocation2 + $0x2b8] sm:$0xff]
          %v3554 = vld [vmem:[#allocation2 + $0x2c0] sm:$0xff]
          %v3555 = vld [vmem:[#allocation2 + $0x2c8] sm:$0xff]
          %v3556 = vld [vmem:[#allocation2 + $0x2d0] sm:$0xff]
          %v3557 = vld [vmem:[#allocation2 + $0x2d8] sm:$0xff]
          %v3558 = vld [vmem:[#allocation2 + $0x2e0] sm:$0xff]
          %v3559 = vld [vmem:[#allocation2 + $0x2e8] sm:$0xff]
          %v3560 = vld [vmem:[#allocation2 + $0x2f0] sm:$0xff]
          %v3561 = vld [vmem:[#allocation2 + $0x2f8] sm:$0xff]
          %v3562 = vld [vmem:[#allocation2 + $0x300] sm:$0xff]
          %v3563 = vld [vmem:[#allocation2 + $0x308] sm:$0xff]
          %v3564 = vld [vmem:[#allocation2 + $0x310] sm:$0xff]
          %v3565 = vld [vmem:[#allocation2 + $0x318] sm:$0xff]
          %v3566 = vld [vmem:[#allocation2 + $0x320] sm:$0xff]
          %v3567 = vld [vmem:[#allocation2 + $0x328] sm:$0xff]
          %v3568 = vld [vmem:[#allocation2 + $0x330] sm:$0xff]
          %v3569 = vld [vmem:[#allocation2 + $0x338] sm:$0xff]
          %v3570 = vld [vmem:[#allocation2 + $0x340] sm:$0xff]
          %v3571 = vld [vmem:[#allocation2 + $0x348] sm:$0xff]
          %v3572 = vld [vmem:[#allocation2 + $0x350] sm:$0xff]
          %v3573 = vld [vmem:[#allocation2 + $0x358] sm:$0xff]
          %v3574 = vld [vmem:[#allocation2 + $0x360] sm:$0xff]
          %v3575 = vld [vmem:[#allocation2 + $0x368] sm:$0xff]
          %v3576 = vld [vmem:[#allocation2 + $0x370] sm:$0xff]
          %v3577 = vld [vmem:[#allocation2 + $0x378] sm:$0xff]
          %v3578 = vld [vmem:[#allocation2 + $0x380] sm:$0xff]
          %v3579 = vld [vmem:[#allocation2 + $0x388] sm:$0xff]
          %v3580 = vld [vmem:[#allocation2 + $0x390] sm:$0xff]
          %v3581 = vld [vmem:[#allocation2 + $0x398] sm:$0xff]
          %v3582 = vld [vmem:[#allocation2 + $0x3a0] sm:$0xff]
          %v3583 = vld [vmem:[#allocation2 + $0x3a8] sm:$0xff]
          %v3584 = vld [vmem:[#allocation2 + $0x3b0] sm:$0xff]
          %v3585 = vld [vmem:[#allocation2 + $0x3b8] sm:$0xff]
          %v3586 = vld [vmem:[#allocation2 + $0x3c0] sm:$0xff]
          %v3587 = vld [vmem:[#allocation2 + $0x3c8] sm:$0xff]
          %v3588 = vld [vmem:[#allocation2 + $0x3d0] sm:$0xff]
          %v3589 = vld [vmem:[#allocation2 + $0x3d8] sm:$0xff]
          %v3590 = vld [vmem:[#allocation2 + $0x3e0] sm:$0xff]
          %v3591 = vld [vmem:[#allocation2 + $0x3e8] sm:$0xff]
          %v3592 = vld [vmem:[#allocation2 + $0x3f0] sm:$0xff]
          %v3593 = vld [vmem:[#allocation2 + $0x3f8] sm:$0xff]
          %v3594 = vld [vmem:[#allocation2 + $0x400] sm:$0xff]
          %v3595 = vld [vmem:[#allocation2 + $0x408] sm:$0xff]
          %v3596 = vld [vmem:[#allocation2 + $0x410] sm:$0xff]
          %v3597 = vld [vmem:[#allocation2 + $0x418] sm:$0xff]
          %v3598 = vld [vmem:[#allocation2 + $0x420] sm:$0xff]
          %v3599 = vld [vmem:[#allocation2 + $0x428] sm:$0xff]
          %v3600 = vld [vmem:[#allocation2 + $0x430] sm:$0xff]
          %v3601 = vld [vmem:[#allocation2 + $0x438] sm:$0xff]
          %v3602 = vld [vmem:[#allocation2 + $0x440] sm:$0xff]
          %v3603 = vld [vmem:[#allocation2 + $0x448] sm:$0xff]
          %v3604 = vld [vmem:[#allocation2 + $0x450] sm:$0xff]
          %v3605 = vld [vmem:[#allocation2 + $0x458] sm:$0xff]
          %v3606 = vld [vmem:[#allocation2 + $0x460] sm:$0xff]
          %v3607 = vld [vmem:[#allocation2 + $0x468] sm:$0xff]
          %v3608 = vld [vmem:[#allocation2 + $0x470] sm:$0xff]
          %v3609 = vld [vmem:[#allocation2 + $0x478] sm:$0xff]
          %v3610 = vld [vmem:[#allocation2 + $0x480] sm:$0xff]
          %v3611 = vld [vmem:[#allocation2 + $0x488] sm:$0xff]
          %v3612 = vld [vmem:[#allocation2 + $0x490] sm:$0xff]
          %v3613 = vld [vmem:[#allocation2 + $0x498] sm:$0xff]
          %v3614 = vld [vmem:[#allocation2 + $0x4a0] sm:$0xff]
          %v3615 = vld [vmem:[#allocation2 + $0x4a8] sm:$0xff]
          %v3616 = vld [vmem:[#allocation2 + $0x4b0] sm:$0xff]
          %v3617 = vld [vmem:[#allocation2 + $0x4b8] sm:$0xff]
          %v3618 = vld [vmem:[#allocation2 + $0x4c0] sm:$0xff]
          %v3619 = vld [vmem:[#allocation2 + $0x4c8] sm:$0xff]
          %v3620 = vld [vmem:[#allocation2 + $0x4d0] sm:$0xff]
          %v3621 = vld [vmem:[#allocation2 + $0x4d8] sm:$0xff]
          %v3622 = vld [vmem:[#allocation2 + $0x4e0] sm:$0xff]
          %v3623 = vld [vmem:[#allocation2 + $0x4e8] sm:$0xff]
          %v3624 = vld [vmem:[#allocation2 + $0x4f0] sm:$0xff]
          %v3625 = vld [vmem:[#allocation2 + $0x4f8] sm:$0xff]
          %v3626 = vld [vmem:[#allocation2 + $0x500] sm:$0xff]
          %v3627 = vld [vmem:[#allocation2 + $0x508] sm:$0xff]
          %v3628 = vld [vmem:[#allocation2 + $0x510] sm:$0xff]
          %v3629 = vld [vmem:[#allocation2 + $0x518] sm:$0xff]
          %v3630 = vld [vmem:[#allocation2 + $0x520] sm:$0xff]
          %v3631 = vld [vmem:[#allocation2 + $0x528] sm:$0xff]
          %v3632 = vld [vmem:[#allocation2 + $0x530] sm:$0xff]
          %v3633 = vld [vmem:[#allocation2 + $0x538] sm:$0xff]
          %v3634 = vld [vmem:[#allocation2 + $0x540] sm:$0xff]
          %v3635 = vld [vmem:[#allocation2 + $0x548] sm:$0xff]
          %v3636 = vld [vmem:[#allocation2 + $0x550] sm:$0xff]
          %v3637 = vld [vmem:[#allocation2 + $0x558] sm:$0xff]
          %v3638 = vld [vmem:[#allocation2 + $0x560] sm:$0xff]
          %v3639 = vld [vmem:[#allocation2 + $0x568] sm:$0xff]
          %v3640 = vld [vmem:[#allocation2 + $0x570] sm:$0xff]
          %v3641 = vld [vmem:[#allocation2 + $0x578] sm:$0xff]
          %v3642 = vld [vmem:[#allocation2 + $0x580] sm:$0xff]
          %v3643 = vld [vmem:[#allocation2 + $0x588] sm:$0xff]
          %v3644 = vld [vmem:[#allocation2 + $0x590] sm:$0xff]
          %v3645 = vld [vmem:[#allocation2 + $0x598] sm:$0xff]
          %v3646 = vld [vmem:[#allocation2 + $0x5a0] sm:$0xff]
          %v3647 = vld [vmem:[#allocation2 + $0x5a8] sm:$0xff]
          %v3648 = vld [vmem:[#allocation2 + $0x5b0] sm:$0xff]
          %v3649 = vld [vmem:[#allocation2 + $0x5b8] sm:$0xff]
          %v3650 = vld [vmem:[#allocation2 + $0x5c0] sm:$0xff]
          %v3651 = vld [vmem:[#allocation2 + $0x5c8] sm:$0xff]
          %v3652 = vld [vmem:[#allocation2 + $0x5d0] sm:$0xff]
          %v3653 = vld [vmem:[#allocation2 + $0x5d8] sm:$0xff]
          %v3654 = vld [vmem:[#allocation2 + $0x5e0] sm:$0xff]
          %v3655 = vld [vmem:[#allocation2 + $0x5e8] sm:$0xff]
          %v3656 = vld [vmem:[#allocation2 + $0x5f0] sm:$0xff]
          %v3657 = vld [vmem:[#allocation2 + $0x5f8] sm:$0xff]
          %v3658 = vadd.f32 %v3466, %v1403
          %v3659 = vadd.f32 %v3467, %v2239
          %v3660 = vadd.f32 %v3468, %v3075
          %v3661 = vadd.f32 %v3469, %v1406
          %v3662 = vadd.f32 %v3470, %v2242
          %v3663 = vadd.f32 %v3471, %v3078
          %v3664 = vadd.f32 %v3472, %v1409
          %v3665 = vadd.f32 %v3473, %v2245
          %v3666 = vadd.f32 %v3474, %v3081
          %v3667 = vadd.f32 %v3475, %v1412
          %v3668 = vadd.f32 %v3476, %v2248
          %v3669 = vadd.f32 %v3477, %v3084
          %v3670 = vadd.f32 %v3478, %v1415
          %v3671 = vadd.f32 %v3479, %v2251
          %v3672 = vadd.f32 %v3480, %v3087
          %v3673 = vadd.f32 %v3481, %v1418
          %v3674 = vadd.f32 %v3482, %v2254
          %v3675 = vadd.f32 %v3483, %v3090
          %v3676 = vadd.f32 %v3484, %v1421
          %v3677 = vadd.f32 %v3485, %v2257
          %v3678 = vadd.f32 %v3486, %v3093
          %v3679 = vadd.f32 %v3487, %v1424
          %v3680 = vadd.f32 %v3488, %v2260
          %v3681 = vadd.f32 %v3489, %v3096
          %v3682 = vadd.f32 %v3490, %v1427
          %v3683 = vadd.f32 %v3491, %v2263
          %v3684 = vadd.f32 %v3492, %v3099
          %v3685 = vadd.f32 %v3493, %v1430
          %v3686 = vadd.f32 %v3494, %v2266
          %v3687 = vadd.f32 %v3495, %v3102
          %v3688 = vadd.f32 %v3496, %v1433
          %v3689 = vadd.f32 %v3497, %v2269
          %v3690 = vadd.f32 %v3498, %v3105
          %v3691 = vadd.f32 %v3499, %v1436
          %v3692 = vadd.f32 %v3500, %v2272
          %v3693 = vadd.f32 %v3501, %v3108
          %v3694 = vadd.f32 %v3502, %v1439
          %v3695 = vadd.f32 %v3503, %v2275
          %v3696 = vadd.f32 %v3504, %v3111
          %v3697 = vadd.f32 %v3505, %v1442
          %v3698 = vadd.f32 %v3506, %v2278
          %v3699 = vadd.f32 %v3507, %v3114
          %v3700 = vadd.f32 %v3508, %v1445
          %v3701 = vadd.f32 %v3509, %v2281
          %v3702 = vadd.f32 %v3510, %v3117
          %v3703 = vadd.f32 %v3511, %v1448
          %v3704 = vadd.f32 %v3512, %v2284
          %v3705 = vadd.f32 %v3513, %v3120
          %v3706 = vadd.f32 %v3514, %v1451
          %v3707 = vadd.f32 %v3515, %v2287
          %v3708 = vadd.f32 %v3516, %v3123
          %v3709 = vadd.f32 %v3517, %v1454
          %v3710 = vadd.f32 %v3518, %v2290
          %v3711 = vadd.f32 %v3519, %v3126
          %v3712 = vadd.f32 %v3520, %v1457
          %v3713 = vadd.f32 %v3521, %v2293
          %v3714 = vadd.f32 %v3522, %v3129
          %v3715 = vadd.f32 %v3523, %v1460
          %v3716 = vadd.f32 %v3524, %v2296
          %v3717 = vadd.f32 %v3525, %v3132
          %v3718 = vadd.f32 %v3526, %v1463
          %v3719 = vadd.f32 %v3527, %v2299
          %v3720 = vadd.f32 %v3528, %v3135
          %v3721 = vadd.f32 %v3529, %v1466
          %v3722 = vadd.f32 %v3530, %v2302
          %v3723 = vadd.f32 %v3531, %v3138
          %v3724 = vadd.f32 %v3532, %v1469
          %v3725 = vadd.f32 %v3533, %v2305
          %v3726 = vadd.f32 %v3534, %v3141
          %v3727 = vadd.f32 %v3535, %v1472
          %v3728 = vadd.f32 %v3536, %v2308
          %v3729 = vadd.f32 %v3537, %v3144
          %v3730 = vadd.f32 %v3538, %v1475
          %v3731 = vadd.f32 %v3539, %v2311
          %v3732 = vadd.f32 %v3540, %v3147
          %v3733 = vadd.f32 %v3541, %v1478
          %v3734 = vadd.f32 %v3542, %v2314
          %v3735 = vadd.f32 %v3543, %v3150
          %v3736 = vadd.f32 %v3544, %v1481
          %v3737 = vadd.f32 %v3545, %v2317
          %v3738 = vadd.f32 %v3546, %v3153
          %v3739 = vadd.f32 %v3547, %v1484
          %v3740 = vadd.f32 %v3548, %v2320
          %v3741 = vadd.f32 %v3549, %v3156
          %v3742 = vadd.f32 %v3550, %v1487
          %v3743 = vadd.f32 %v3551, %v2323
          %v3744 = vadd.f32 %v3552, %v3159
          %v3745 = vadd.f32 %v3553, %v1490
          %v3746 = vadd.f32 %v3554, %v2326
          %v3747 = vadd.f32 %v3555, %v3162
          %v3748 = vadd.f32 %v3556, %v1493
          %v3749 = vadd.f32 %v3557, %v2329
          %v3750 = vadd.f32 %v3558, %v3165
          %v3751 = vadd.f32 %v3559, %v1496
          %v3752 = vadd.f32 %v3560, %v2332
          %v3753 = vadd.f32 %v3561, %v3168
          %v3754 = vadd.f32 %v3562, %v1499
          %v3755 = vadd.f32 %v3563, %v2335
          %v3756 = vadd.f32 %v3564, %v3171
          %v3757 = vadd.f32 %v3565, %v1502
          %v3758 = vadd.f32 %v3566, %v2338
          %v3759 = vadd.f32 %v3567, %v3174
          %v3760 = vadd.f32 %v3568, %v1505
          %v3761 = vadd.f32 %v3569, %v2341
          %v3762 = vadd.f32 %v3570, %v3177
          %v3763 = vadd.f32 %v3571, %v1508
          %v3764 = vadd.f32 %v3572, %v2344
          %v3765 = vadd.f32 %v3573, %v3180
          %v3766 = vadd.f32 %v3574, %v1511
          %v3767 = vadd.f32 %v3575, %v2347
          %v3768 = vadd.f32 %v3576, %v3183
          %v3769 = vadd.f32 %v3577, %v1514
          %v3770 = vadd.f32 %v3578, %v2350
          %v3771 = vadd.f32 %v3579, %v3186
          %v3772 = vadd.f32 %v3580, %v1517
          %v3773 = vadd.f32 %v3581, %v2353
          %v3774 = vadd.f32 %v3582, %v3189
          %v3775 = vadd.f32 %v3583, %v1520
          %v3776 = vadd.f32 %v3584, %v2356
          %v3777 = vadd.f32 %v3585, %v3192
          %v3778 = vadd.f32 %v3586, %v1523
          %v3779 = vadd.f32 %v3587, %v2359
          %v3780 = vadd.f32 %v3588, %v3195
          %v3781 = vadd.f32 %v3589, %v1526
          %v3782 = vadd.f32 %v3590, %v2362
          %v3783 = vadd.f32 %v3591, %v3198
          %v3784 = vadd.f32 %v3592, %v1529
          %v3785 = vadd.f32 %v3593, %v2365
          %v3786 = vadd.f32 %v3594, %v3201
          %v3787 = vadd.f32 %v3595, %v1532
          %v3788 = vadd.f32 %v3596, %v2368
          %v3789 = vadd.f32 %v3597, %v3204
          %v3790 = vadd.f32 %v3598, %v1535
          %v3791 = vadd.f32 %v3599, %v2371
          %v3792 = vadd.f32 %v3600, %v3207
          %v3793 = vadd.f32 %v3601, %v1538
          %v3794 = vadd.f32 %v3602, %v2374
          %v3795 = vadd.f32 %v3603, %v3210
          %v3796 = vadd.f32 %v3604, %v1541
          %v3797 = vadd.f32 %v3605, %v2377
          %v3798 = vadd.f32 %v3606, %v3213
          %v3799 = vadd.f32 %v3607, %v1544
          %v3800 = vadd.f32 %v3608, %v2380
          %v3801 = vadd.f32 %v3609, %v3216
          %v3802 = vadd.f32 %v3610, %v1547
          %v3803 = vadd.f32 %v3611, %v2383
          %v3804 = vadd.f32 %v3612, %v3219
          %v3805 = vadd.f32 %v3613, %v1550
          %v3806 = vadd.f32 %v3614, %v2386
          %v3807 = vadd.f32 %v3615, %v3222
          %v3808 = vadd.f32 %v3616, %v1553
          %v3809 = vadd.f32 %v3617, %v2389
          %v3810 = vadd.f32 %v3618, %v3225
          %v3811 = vadd.f32 %v3619, %v1556
          %v3812 = vadd.f32 %v3620, %v2392
          %v3813 = vadd.f32 %v3621, %v3228
          %v3814 = vadd.f32 %v3622, %v1559
          %v3815 = vadd.f32 %v3623, %v2395
          %v3816 = vadd.f32 %v3624, %v3231
          %v3817 = vadd.f32 %v3625, %v1562
          %v3818 = vadd.f32 %v3626, %v2398
          %v3819 = vadd.f32 %v3627, %v3234
          %v3820 = vadd.f32 %v3628, %v1565
          %v3821 = vadd.f32 %v3629, %v2401
          %v3822 = vadd.f32 %v3630, %v3237
          %v3823 = vadd.f32 %v3631, %v1568
          %v3824 = vadd.f32 %v3632, %v2404
          %v3825 = vadd.f32 %v3633, %v3240
          %v3826 = vadd.f32 %v3634, %v1571
          %v3827 = vadd.f32 %v3635, %v2407
          %v3828 = vadd.f32 %v3636, %v3243
          %v3829 = vadd.f32 %v3637, %v1574
          %v3830 = vadd.f32 %v3638, %v2410
          %v3831 = vadd.f32 %v3639, %v3246
          %v3832 = vadd.f32 %v3640, %v1577
          %v3833 = vadd.f32 %v3641, %v2413
          %v3834 = vadd.f32 %v3642, %v3249
          %v3835 = vadd.f32 %v3643, %v1580
          %v3836 = vadd.f32 %v3644, %v2416
          %v3837 = vadd.f32 %v3645, %v3252
          %v3838 = vadd.f32 %v3646, %v1583
          %v3839 = vadd.f32 %v3647, %v2419
          %v3840 = vadd.f32 %v3648, %v3255
          %v3841 = vadd.f32 %v3649, %v1586
          %v3842 = vadd.f32 %v3650, %v2422
          %v3843 = vadd.f32 %v3651, %v3258
          %v3844 = vadd.f32 %v3652, %v1589
          %v3845 = vadd.f32 %v3653, %v2425
          %v3846 = vadd.f32 %v3654, %v3261
          %v3847 = vadd.f32 %v3655, %v1592
          %v3848 = vadd.f32 %v3656, %v2428
          %v3849 = vadd.f32 %v3657, %v3264
          %3850 = vst [vmem:[#allocation2] sm:$0xff] %v3658
          %3851 = vst [vmem:[#allocation2 + $0x8] sm:$0xff] %v3659
          %3852 = vst [vmem:[#allocation2 + $0x10] sm:$0xff] %v3660
          %3853 = vst [vmem:[#allocation2 + $0x18] sm:$0xff] %v3661
          %3854 = vst [vmem:[#allocation2 + $0x20] sm:$0xff] %v3662
          %3855 = vst [vmem:[#allocation2 + $0x28] sm:$0xff] %v3663
          %3856 = vst [vmem:[#allocation2 + $0x30] sm:$0xff] %v3664
          %3857 = vst [vmem:[#allocation2 + $0x38] sm:$0xff] %v3665
          %3858 = vst [vmem:[#allocation2 + $0x40] sm:$0xff] %v3666
          %3859 = vst [vmem:[#allocation2 + $0x48] sm:$0xff] %v3667
          %3860 = vst [vmem:[#allocation2 + $0x50] sm:$0xff] %v3668
          %3861 = vst [vmem:[#allocation2 + $0x58] sm:$0xff] %v3669
          %3862 = vst [vmem:[#allocation2 + $0x60] sm:$0xff] %v3670
          %3863 = vst [vmem:[#allocation2 + $0x68] sm:$0xff] %v3671
          %3864 = vst [vmem:[#allocation2 + $0x70] sm:$0xff] %v3672
          %3865 = vst [vmem:[#allocation2 + $0x78] sm:$0xff] %v3673
          %3866 = vst [vmem:[#allocation2 + $0x80] sm:$0xff] %v3674
          %3867 = vst [vmem:[#allocation2 + $0x88] sm:$0xff] %v3675
          %3868 = vst [vmem:[#allocation2 + $0x90] sm:$0xff] %v3676
          %3869 = vst [vmem:[#allocation2 + $0x98] sm:$0xff] %v3677
          %3870 = vst [vmem:[#allocation2 + $0xa0] sm:$0xff] %v3678
          %3871 = vst [vmem:[#allocation2 + $0xa8] sm:$0xff] %v3679
          %3872 = vst [vmem:[#allocation2 + $0xb0] sm:$0xff] %v3680
          %3873 = vst [vmem:[#allocation2 + $0xb8] sm:$0xff] %v3681
          %3874 = vst [vmem:[#allocation2 + $0xc0] sm:$0xff] %v3682
          %3875 = vst [vmem:[#allocation2 + $0xc8] sm:$0xff] %v3683
          %3876 = vst [vmem:[#allocation2 + $0xd0] sm:$0xff] %v3684
          %3877 = vst [vmem:[#allocation2 + $0xd8] sm:$0xff] %v3685
          %3878 = vst [vmem:[#allocation2 + $0xe0] sm:$0xff] %v3686
          %3879 = vst [vmem:[#allocation2 + $0xe8] sm:$0xff] %v3687
          %3880 = vst [vmem:[#allocation2 + $0xf0] sm:$0xff] %v3688
          %3881 = vst [vmem:[#allocation2 + $0xf8] sm:$0xff] %v3689
          %3882 = vst [vmem:[#allocation2 + $0x100] sm:$0xff] %v3690
          %3883 = vst [vmem:[#allocation2 + $0x108] sm:$0xff] %v3691
          %3884 = vst [vmem:[#allocation2 + $0x110] sm:$0xff] %v3692
          %3885 = vst [vmem:[#allocation2 + $0x118] sm:$0xff] %v3693
          %3886 = vst [vmem:[#allocation2 + $0x120] sm:$0xff] %v3694
          %3887 = vst [vmem:[#allocation2 + $0x128] sm:$0xff] %v3695
          %3888 = vst [vmem:[#allocation2 + $0x130] sm:$0xff] %v3696
          %3889 = vst [vmem:[#allocation2 + $0x138] sm:$0xff] %v3697
          %3890 = vst [vmem:[#allocation2 + $0x140] sm:$0xff] %v3698
          %3891 = vst [vmem:[#allocation2 + $0x148] sm:$0xff] %v3699
          %3892 = vst [vmem:[#allocation2 + $0x150] sm:$0xff] %v3700
          %3893 = vst [vmem:[#allocation2 + $0x158] sm:$0xff] %v3701
          %3894 = vst [vmem:[#allocation2 + $0x160] sm:$0xff] %v3702
          %3895 = vst [vmem:[#allocation2 + $0x168] sm:$0xff] %v3703
          %3896 = vst [vmem:[#allocation2 + $0x170] sm:$0xff] %v3704
          %3897 = vst [vmem:[#allocation2 + $0x178] sm:$0xff] %v3705
          %3898 = vst [vmem:[#allocation2 + $0x180] sm:$0xff] %v3706
          %3899 = vst [vmem:[#allocation2 + $0x188] sm:$0xff] %v3707
          %3900 = vst [vmem:[#allocation2 + $0x190] sm:$0xff] %v3708
          %3901 = vst [vmem:[#allocation2 + $0x198] sm:$0xff] %v3709
          %3902 = vst [vmem:[#allocation2 + $0x1a0] sm:$0xff] %v3710
          %3903 = vst [vmem:[#allocation2 + $0x1a8] sm:$0xff] %v3711
          %3904 = vst [vmem:[#allocation2 + $0x1b0] sm:$0xff] %v3712
          %3905 = vst [vmem:[#allocation2 + $0x1b8] sm:$0xff] %v3713
          %3906 = vst [vmem:[#allocation2 + $0x1c0] sm:$0xff] %v3714
          %3907 = vst [vmem:[#allocation2 + $0x1c8] sm:$0xff] %v3715
          %3908 = vst [vmem:[#allocation2 + $0x1d0] sm:$0xff] %v3716
          %3909 = vst [vmem:[#allocation2 + $0x1d8] sm:$0xff] %v3717
          %3910 = vst [vmem:[#allocation2 + $0x1e0] sm:$0xff] %v3718
          %3911 = vst [vmem:[#allocation2 + $0x1e8] sm:$0xff] %v3719
          %3912 = vst [vmem:[#allocation2 + $0x1f0] sm:$0xff] %v3720
          %3913 = vst [vmem:[#allocation2 + $0x1f8] sm:$0xff] %v3721
          %3914 = vst [vmem:[#allocation2 + $0x200] sm:$0xff] %v3722
          %3915 = vst [vmem:[#allocation2 + $0x208] sm:$0xff] %v3723
          %3916 = vst [vmem:[#allocation2 + $0x210] sm:$0xff] %v3724
          %3917 = vst [vmem:[#allocation2 + $0x218] sm:$0xff] %v3725
          %3918 = vst [vmem:[#allocation2 + $0x220] sm:$0xff] %v3726
          %3919 = vst [vmem:[#allocation2 + $0x228] sm:$0xff] %v3727
          %3920 = vst [vmem:[#allocation2 + $0x230] sm:$0xff] %v3728
          %3921 = vst [vmem:[#allocation2 + $0x238] sm:$0xff] %v3729
          %3922 = vst [vmem:[#allocation2 + $0x240] sm:$0xff] %v3730
          %3923 = vst [vmem:[#allocation2 + $0x248] sm:$0xff] %v3731
          %3924 = vst [vmem:[#allocation2 + $0x250] sm:$0xff] %v3732
          %3925 = vst [vmem:[#allocation2 + $0x258] sm:$0xff] %v3733
          %3926 = vst [vmem:[#allocation2 + $0x260] sm:$0xff] %v3734
          %3927 = vst [vmem:[#allocation2 + $0x268] sm:$0xff] %v3735
          %3928 = vst [vmem:[#allocation2 + $0x270] sm:$0xff] %v3736
          %3929 = vst [vmem:[#allocation2 + $0x278] sm:$0xff] %v3737
          %3930 = vst [vmem:[#allocation2 + $0x280] sm:$0xff] %v3738
          %3931 = vst [vmem:[#allocation2 + $0x288] sm:$0xff] %v3739
          %3932 = vst [vmem:[#allocation2 + $0x290] sm:$0xff] %v3740
          %3933 = vst [vmem:[#allocation2 + $0x298] sm:$0xff] %v3741
          %3934 = vst [vmem:[#allocation2 + $0x2a0] sm:$0xff] %v3742
          %3935 = vst [vmem:[#allocation2 + $0x2a8] sm:$0xff] %v3743
          %3936 = vst [vmem:[#allocation2 + $0x2b0] sm:$0xff] %v3744
          %3937 = vst [vmem:[#allocation2 + $0x2b8] sm:$0xff] %v3745
          %3938 = vst [vmem:[#allocation2 + $0x2c0] sm:$0xff] %v3746
          %3939 = vst [vmem:[#allocation2 + $0x2c8] sm:$0xff] %v3747
          %3940 = vst [vmem:[#allocation2 + $0x2d0] sm:$0xff] %v3748
          %3941 = vst [vmem:[#allocation2 + $0x2d8] sm:$0xff] %v3749
          %3942 = vst [vmem:[#allocation2 + $0x2e0] sm:$0xff] %v3750
          %3943 = vst [vmem:[#allocation2 + $0x2e8] sm:$0xff] %v3751
          %3944 = vst [vmem:[#allocation2 + $0x2f0] sm:$0xff] %v3752
          %3945 = vst [vmem:[#allocation2 + $0x2f8] sm:$0xff] %v3753
          %3946 = vst [vmem:[#allocation2 + $0x300] sm:$0xff] %v3754
          %3947 = vst [vmem:[#allocation2 + $0x308] sm:$0xff] %v3755
          %3948 = vst [vmem:[#allocation2 + $0x310] sm:$0xff] %v3756
          %3949 = vst [vmem:[#allocation2 + $0x318] sm:$0xff] %v3757
          %3950 = vst [vmem:[#allocation2 + $0x320] sm:$0xff] %v3758
          %3951 = vst [vmem:[#allocation2 + $0x328] sm:$0xff] %v3759
          %3952 = vst [vmem:[#allocation2 + $0x330] sm:$0xff] %v3760
          %3953 = vst [vmem:[#allocation2 + $0x338] sm:$0xff] %v3761
          %3954 = vst [vmem:[#allocation2 + $0x340] sm:$0xff] %v3762
          %3955 = vst [vmem:[#allocation2 + $0x348] sm:$0xff] %v3763
          %3956 = vst [vmem:[#allocation2 + $0x350] sm:$0xff] %v3764
          %3957 = vst [vmem:[#allocation2 + $0x358] sm:$0xff] %v3765
          %3958 = vst [vmem:[#allocation2 + $0x360] sm:$0xff] %v3766
          %3959 = vst [vmem:[#allocation2 + $0x368] sm:$0xff] %v3767
          %3960 = vst [vmem:[#allocation2 + $0x370] sm:$0xff] %v3768
          %3961 = vst [vmem:[#allocation2 + $0x378] sm:$0xff] %v3769
          %3962 = vst [vmem:[#allocation2 + $0x380] sm:$0xff] %v3770
          %3963 = vst [vmem:[#allocation2 + $0x388] sm:$0xff] %v3771
          %3964 = vst [vmem:[#allocation2 + $0x390] sm:$0xff] %v3772
          %3965 = vst [vmem:[#allocation2 + $0x398] sm:$0xff] %v3773
          %3966 = vst [vmem:[#allocation2 + $0x3a0] sm:$0xff] %v3774
          %3967 = vst [vmem:[#allocation2 + $0x3a8] sm:$0xff] %v3775
          %3968 = vst [vmem:[#allocation2 + $0x3b0] sm:$0xff] %v3776
          %3969 = vst [vmem:[#allocation2 + $0x3b8] sm:$0xff] %v3777
          %3970 = vst [vmem:[#allocation2 + $0x3c0] sm:$0xff] %v3778
          %3971 = vst [vmem:[#allocation2 + $0x3c8] sm:$0xff] %v3779
          %3972 = vst [vmem:[#allocation2 + $0x3d0] sm:$0xff] %v3780
          %3973 = vst [vmem:[#allocation2 + $0x3d8] sm:$0xff] %v3781
          %3974 = vst [vmem:[#allocation2 + $0x3e0] sm:$0xff] %v3782
          %3975 = vst [vmem:[#allocation2 + $0x3e8] sm:$0xff] %v3783
          %3976 = vst [vmem:[#allocation2 + $0x3f0] sm:$0xff] %v3784
          %3977 = vst [vmem:[#allocation2 + $0x3f8] sm:$0xff] %v3785
          %3978 = vst [vmem:[#allocation2 + $0x400] sm:$0xff] %v3786
          %3979 = vst [vmem:[#allocation2 + $0x408] sm:$0xff] %v3787
          %3980 = vst [vmem:[#allocation2 + $0x410] sm:$0xff] %v3788
          %3981 = vst [vmem:[#allocation2 + $0x418] sm:$0xff] %v3789
          %3982 = vst [vmem:[#allocation2 + $0x420] sm:$0xff] %v3790
          %3983 = vst [vmem:[#allocation2 + $0x428] sm:$0xff] %v3791
          %3984 = vst [vmem:[#allocation2 + $0x430] sm:$0xff] %v3792
          %3985 = vst [vmem:[#allocation2 + $0x438] sm:$0xff] %v3793
          %3986 = vst [vmem:[#allocation2 + $0x440] sm:$0xff] %v3794
          %3987 = vst [vmem:[#allocation2 + $0x448] sm:$0xff] %v3795
          %3988 = vst [vmem:[#allocation2 + $0x450] sm:$0xff] %v3796
          %3989 = vst [vmem:[#allocation2 + $0x458] sm:$0xff] %v3797
          %3990 = vst [vmem:[#allocation2 + $0x460] sm:$0xff] %v3798
          %3991 = vst [vmem:[#allocation2 + $0x468] sm:$0xff] %v3799
          %3992 = vst [vmem:[#allocation2 + $0x470] sm:$0xff] %v3800
          %3993 = vst [vmem:[#allocation2 + $0x478] sm:$0xff] %v3801
          %3994 = vst [vmem:[#allocation2 + $0x480] sm:$0xff] %v3802
          %3995 = vst [vmem:[#allocation2 + $0x488] sm:$0xff] %v3803
          %3996 = vst [vmem:[#allocation2 + $0x490] sm:$0xff] %v3804
          %3997 = vst [vmem:[#allocation2 + $0x498] sm:$0xff] %v3805
          %3998 = vst [vmem:[#allocation2 + $0x4a0] sm:$0xff] %v3806
          %3999 = vst [vmem:[#allocation2 + $0x4a8] sm:$0xff] %v3807
          %4000 = vst [vmem:[#allocation2 + $0x4b0] sm:$0xff] %v3808
          %4001 = vst [vmem:[#allocation2 + $0x4b8] sm:$0xff] %v3809
          %4002 = vst [vmem:[#allocation2 + $0x4c0] sm:$0xff] %v3810
          %4003 = vst [vmem:[#allocation2 + $0x4c8] sm:$0xff] %v3811
          %4004 = vst [vmem:[#allocation2 + $0x4d0] sm:$0xff] %v3812
          %4005 = vst [vmem:[#allocation2 + $0x4d8] sm:$0xff] %v3813
          %4006 = vst [vmem:[#allocation2 + $0x4e0] sm:$0xff] %v3814
          %4007 = vst [vmem:[#allocation2 + $0x4e8] sm:$0xff] %v3815
          %4008 = vst [vmem:[#allocation2 + $0x4f0] sm:$0xff] %v3816
          %4009 = vst [vmem:[#allocation2 + $0x4f8] sm:$0xff] %v3817
          %4010 = vst [vmem:[#allocation2 + $0x500] sm:$0xff] %v3818
          %4011 = vst [vmem:[#allocation2 + $0x508] sm:$0xff] %v3819
          %4012 = vst [vmem:[#allocation2 + $0x510] sm:$0xff] %v3820
          %4013 = vst [vmem:[#allocation2 + $0x518] sm:$0xff] %v3821
          %4014 = vst [vmem:[#allocation2 + $0x520] sm:$0xff] %v3822
          %4015 = vst [vmem:[#allocation2 + $0x528] sm:$0xff] %v3823
          %4016 = vst [vmem:[#allocation2 + $0x530] sm:$0xff] %v3824
          %4017 = vst [vmem:[#allocation2 + $0x538] sm:$0xff] %v3825
          %4018 = vst [vmem:[#allocation2 + $0x540] sm:$0xff] %v3826
          %4019 = vst [vmem:[#allocation2 + $0x548] sm:$0xff] %v3827
          %4020 = vst [vmem:[#allocation2 + $0x550] sm:$0xff] %v3828
          %4021 = vst [vmem:[#allocation2 + $0x558] sm:$0xff] %v3829
          %4022 = vst [vmem:[#allocation2 + $0x560] sm:$0xff] %v3830
          %4023 = vst [vmem:[#allocation2 + $0x568] sm:$0xff] %v3831
          %4024 = vst [vmem:[#allocation2 + $0x570] sm:$0xff] %v3832
          %4025 = vst [vmem:[#allocation2 + $0x578] sm:$0xff] %v3833
          %4026 = vst [vmem:[#allocation2 + $0x580] sm:$0xff] %v3834
          %4027 = vst [vmem:[#allocation2 + $0x588] sm:$0xff] %v3835
          %4028 = vst [vmem:[#allocation2 + $0x590] sm:$0xff] %v3836
          %4029 = vst [vmem:[#allocation2 + $0x598] sm:$0xff] %v3837
          %4030 = vst [vmem:[#allocation2 + $0x5a0] sm:$0xff] %v3838
          %4031 = vst [vmem:[#allocation2 + $0x5a8] sm:$0xff] %v3839
          %4032 = vst [vmem:[#allocation2 + $0x5b0] sm:$0xff] %v3840
          %4033 = vst [vmem:[#allocation2 + $0x5b8] sm:$0xff] %v3841
          %4034 = vst [vmem:[#allocation2 + $0x5c0] sm:$0xff] %v3842
          %4035 = vst [vmem:[#allocation2 + $0x5c8] sm:$0xff] %v3843
          %4036 = vst [vmem:[#allocation2 + $0x5d0] sm:$0xff] %v3844
          %4037 = vst [vmem:[#allocation2 + $0x5d8] sm:$0xff] %v3845
          %4038 = vst [vmem:[#allocation2 + $0x5e0] sm:$0xff] %v3846
          %4039 = vst [vmem:[#allocation2 + $0x5e8] sm:$0xff] %v3847
          %4040 = vst [vmem:[#allocation2 + $0x5f0] sm:$0xff] %v3848
          %4041 = vst [vmem:[#allocation2 + $0x5f8] sm:$0xff] %v3849
        $region52: #{tpu_custom_call.1} parent=31 // pred_fallthru
          _
        %p4042 = scmp.eq.s32.totalorder %s30, 2
        // Predicated region
        $region53: #{tpu_custom_call.1} parent=31 // pred_check
          %p4043 = pneg %p4042
        $region54: #{tpu_custom_call.1} parent=31 // pred_check_branch
          %4045 = sbr.rel (%p4043) target = $region56
        $region55: #{tpu_custom_call.1} parent=31 // pred_region
          %v4046 = vld [vmem:[#allocation2] sm:$0xff]
          %v4047 = vld [vmem:[#allocation2 + $0x8] sm:$0xff]
          %v4048 = vld [vmem:[#allocation2 + $0x10] sm:$0xff]
          %v4049 = vld [vmem:[#allocation2 + $0x18] sm:$0xff]
          %v4050 = vld [vmem:[#allocation2 + $0x20] sm:$0xff]
          %v4051 = vld [vmem:[#allocation2 + $0x28] sm:$0xff]
          %v4052 = vld [vmem:[#allocation2 + $0x30] sm:$0xff]
          %v4053 = vld [vmem:[#allocation2 + $0x38] sm:$0xff]
          %v4054 = vld [vmem:[#allocation2 + $0x40] sm:$0xff]
          %v4055 = vld [vmem:[#allocation2 + $0x48] sm:$0xff]
          %v4056 = vld [vmem:[#allocation2 + $0x50] sm:$0xff]
          %v4057 = vld [vmem:[#allocation2 + $0x58] sm:$0xff]
          %v4058 = vld [vmem:[#allocation2 + $0x60] sm:$0xff]
          %v4059 = vld [vmem:[#allocation2 + $0x68] sm:$0xff]
          %v4060 = vld [vmem:[#allocation2 + $0x70] sm:$0xff]
          %v4061 = vld [vmem:[#allocation2 + $0x78] sm:$0xff]
          %v4062 = vld [vmem:[#allocation2 + $0x80] sm:$0xff]
          %v4063 = vld [vmem:[#allocation2 + $0x88] sm:$0xff]
          %v4064 = vld [vmem:[#allocation2 + $0x90] sm:$0xff]
          %v4065 = vld [vmem:[#allocation2 + $0x98] sm:$0xff]
          %v4066 = vld [vmem:[#allocation2 + $0xa0] sm:$0xff]
          %v4067 = vld [vmem:[#allocation2 + $0xa8] sm:$0xff]
          %v4068 = vld [vmem:[#allocation2 + $0xb0] sm:$0xff]
          %v4069 = vld [vmem:[#allocation2 + $0xb8] sm:$0xff]
          %v4070 = vld [vmem:[#allocation2 + $0xc0] sm:$0xff]
          %v4071 = vld [vmem:[#allocation2 + $0xc8] sm:$0xff]
          %v4072 = vld [vmem:[#allocation2 + $0xd0] sm:$0xff]
          %v4073 = vld [vmem:[#allocation2 + $0xd8] sm:$0xff]
          %v4074 = vld [vmem:[#allocation2 + $0xe0] sm:$0xff]
          %v4075 = vld [vmem:[#allocation2 + $0xe8] sm:$0xff]
          %v4076 = vld [vmem:[#allocation2 + $0xf0] sm:$0xff]
          %v4077 = vld [vmem:[#allocation2 + $0xf8] sm:$0xff]
          %v4078 = vld [vmem:[#allocation2 + $0x100] sm:$0xff]
          %v4079 = vld [vmem:[#allocation2 + $0x108] sm:$0xff]
          %v4080 = vld [vmem:[#allocation2 + $0x110] sm:$0xff]
          %v4081 = vld [vmem:[#allocation2 + $0x118] sm:$0xff]
          %v4082 = vld [vmem:[#allocation2 + $0x120] sm:$0xff]
          %v4083 = vld [vmem:[#allocation2 + $0x128] sm:$0xff]
          %v4084 = vld [vmem:[#allocation2 + $0x130] sm:$0xff]
          %v4085 = vld [vmem:[#allocation2 + $0x138] sm:$0xff]
          %v4086 = vld [vmem:[#allocation2 + $0x140] sm:$0xff]
          %v4087 = vld [vmem:[#allocation2 + $0x148] sm:$0xff]
          %v4088 = vld [vmem:[#allocation2 + $0x150] sm:$0xff]
          %v4089 = vld [vmem:[#allocation2 + $0x158] sm:$0xff]
          %v4090 = vld [vmem:[#allocation2 + $0x160] sm:$0xff]
          %v4091 = vld [vmem:[#allocation2 + $0x168] sm:$0xff]
          %v4092 = vld [vmem:[#allocation2 + $0x170] sm:$0xff]
          %v4093 = vld [vmem:[#allocation2 + $0x178] sm:$0xff]
          %v4094 = vld [vmem:[#allocation2 + $0x180] sm:$0xff]
          %v4095 = vld [vmem:[#allocation2 + $0x188] sm:$0xff]
          %v4096 = vld [vmem:[#allocation2 + $0x190] sm:$0xff]
          %v4097 = vld [vmem:[#allocation2 + $0x198] sm:$0xff]
          %v4098 = vld [vmem:[#allocation2 + $0x1a0] sm:$0xff]
          %v4099 = vld [vmem:[#allocation2 + $0x1a8] sm:$0xff]
          %v4100 = vld [vmem:[#allocation2 + $0x1b0] sm:$0xff]
          %v4101 = vld [vmem:[#allocation2 + $0x1b8] sm:$0xff]
          %v4102 = vld [vmem:[#allocation2 + $0x1c0] sm:$0xff]
          %v4103 = vld [vmem:[#allocation2 + $0x1c8] sm:$0xff]
          %v4104 = vld [vmem:[#allocation2 + $0x1d0] sm:$0xff]
          %v4105 = vld [vmem:[#allocation2 + $0x1d8] sm:$0xff]
          %v4106 = vld [vmem:[#allocation2 + $0x1e0] sm:$0xff]
          %v4107 = vld [vmem:[#allocation2 + $0x1e8] sm:$0xff]
          %v4108 = vld [vmem:[#allocation2 + $0x1f0] sm:$0xff]
          %v4109 = vld [vmem:[#allocation2 + $0x1f8] sm:$0xff]
          %v4110 = vld [vmem:[#allocation2 + $0x200] sm:$0xff]
          %v4111 = vld [vmem:[#allocation2 + $0x208] sm:$0xff]
          %v4112 = vld [vmem:[#allocation2 + $0x210] sm:$0xff]
          %v4113 = vld [vmem:[#allocation2 + $0x218] sm:$0xff]
          %v4114 = vld [vmem:[#allocation2 + $0x220] sm:$0xff]
          %v4115 = vld [vmem:[#allocation2 + $0x228] sm:$0xff]
          %v4116 = vld [vmem:[#allocation2 + $0x230] sm:$0xff]
          %v4117 = vld [vmem:[#allocation2 + $0x238] sm:$0xff]
          %v4118 = vld [vmem:[#allocation2 + $0x240] sm:$0xff]
          %v4119 = vld [vmem:[#allocation2 + $0x248] sm:$0xff]
          %v4120 = vld [vmem:[#allocation2 + $0x250] sm:$0xff]
          %v4121 = vld [vmem:[#allocation2 + $0x258] sm:$0xff]
          %v4122 = vld [vmem:[#allocation2 + $0x260] sm:$0xff]
          %v4123 = vld [vmem:[#allocation2 + $0x268] sm:$0xff]
          %v4124 = vld [vmem:[#allocation2 + $0x270] sm:$0xff]
          %v4125 = vld [vmem:[#allocation2 + $0x278] sm:$0xff]
          %v4126 = vld [vmem:[#allocation2 + $0x280] sm:$0xff]
          %v4127 = vld [vmem:[#allocation2 + $0x288] sm:$0xff]
          %v4128 = vld [vmem:[#allocation2 + $0x290] sm:$0xff]
          %v4129 = vld [vmem:[#allocation2 + $0x298] sm:$0xff]
          %v4130 = vld [vmem:[#allocation2 + $0x2a0] sm:$0xff]
          %v4131 = vld [vmem:[#allocation2 + $0x2a8] sm:$0xff]
          %v4132 = vld [vmem:[#allocation2 + $0x2b0] sm:$0xff]
          %v4133 = vld [vmem:[#allocation2 + $0x2b8] sm:$0xff]
          %v4134 = vld [vmem:[#allocation2 + $0x2c0] sm:$0xff]
          %v4135 = vld [vmem:[#allocation2 + $0x2c8] sm:$0xff]
          %v4136 = vld [vmem:[#allocation2 + $0x2d0] sm:$0xff]
          %v4137 = vld [vmem:[#allocation2 + $0x2d8] sm:$0xff]
          %v4138 = vld [vmem:[#allocation2 + $0x2e0] sm:$0xff]
          %v4139 = vld [vmem:[#allocation2 + $0x2e8] sm:$0xff]
          %v4140 = vld [vmem:[#allocation2 + $0x2f0] sm:$0xff]
          %v4141 = vld [vmem:[#allocation2 + $0x2f8] sm:$0xff]
          %v4142 = vld [vmem:[#allocation2 + $0x300] sm:$0xff]
          %v4143 = vld [vmem:[#allocation2 + $0x308] sm:$0xff]
          %v4144 = vld [vmem:[#allocation2 + $0x310] sm:$0xff]
          %v4145 = vld [vmem:[#allocation2 + $0x318] sm:$0xff]
          %v4146 = vld [vmem:[#allocation2 + $0x320] sm:$0xff]
          %v4147 = vld [vmem:[#allocation2 + $0x328] sm:$0xff]
          %v4148 = vld [vmem:[#allocation2 + $0x330] sm:$0xff]
          %v4149 = vld [vmem:[#allocation2 + $0x338] sm:$0xff]
          %v4150 = vld [vmem:[#allocation2 + $0x340] sm:$0xff]
          %v4151 = vld [vmem:[#allocation2 + $0x348] sm:$0xff]
          %v4152 = vld [vmem:[#allocation2 + $0x350] sm:$0xff]
          %v4153 = vld [vmem:[#allocation2 + $0x358] sm:$0xff]
          %v4154 = vld [vmem:[#allocation2 + $0x360] sm:$0xff]
          %v4155 = vld [vmem:[#allocation2 + $0x368] sm:$0xff]
          %v4156 = vld [vmem:[#allocation2 + $0x370] sm:$0xff]
          %v4157 = vld [vmem:[#allocation2 + $0x378] sm:$0xff]
          %v4158 = vld [vmem:[#allocation2 + $0x380] sm:$0xff]
          %v4159 = vld [vmem:[#allocation2 + $0x388] sm:$0xff]
          %v4160 = vld [vmem:[#allocation2 + $0x390] sm:$0xff]
          %v4161 = vld [vmem:[#allocation2 + $0x398] sm:$0xff]
          %v4162 = vld [vmem:[#allocation2 + $0x3a0] sm:$0xff]
          %v4163 = vld [vmem:[#allocation2 + $0x3a8] sm:$0xff]
          %v4164 = vld [vmem:[#allocation2 + $0x3b0] sm:$0xff]
          %v4165 = vld [vmem:[#allocation2 + $0x3b8] sm:$0xff]
          %v4166 = vld [vmem:[#allocation2 + $0x3c0] sm:$0xff]
          %v4167 = vld [vmem:[#allocation2 + $0x3c8] sm:$0xff]
          %v4168 = vld [vmem:[#allocation2 + $0x3d0] sm:$0xff]
          %v4169 = vld [vmem:[#allocation2 + $0x3d8] sm:$0xff]
          %v4170 = vld [vmem:[#allocation2 + $0x3e0] sm:$0xff]
          %v4171 = vld [vmem:[#allocation2 + $0x3e8] sm:$0xff]
          %v4172 = vld [vmem:[#allocation2 + $0x3f0] sm:$0xff]
          %v4173 = vld [vmem:[#allocation2 + $0x3f8] sm:$0xff]
          %v4174 = vld [vmem:[#allocation2 + $0x400] sm:$0xff]
          %v4175 = vld [vmem:[#allocation2 + $0x408] sm:$0xff]
          %v4176 = vld [vmem:[#allocation2 + $0x410] sm:$0xff]
          %v4177 = vld [vmem:[#allocation2 + $0x418] sm:$0xff]
          %v4178 = vld [vmem:[#allocation2 + $0x420] sm:$0xff]
          %v4179 = vld [vmem:[#allocation2 + $0x428] sm:$0xff]
          %v4180 = vld [vmem:[#allocation2 + $0x430] sm:$0xff]
          %v4181 = vld [vmem:[#allocation2 + $0x438] sm:$0xff]
          %v4182 = vld [vmem:[#allocation2 + $0x440] sm:$0xff]
          %v4183 = vld [vmem:[#allocation2 + $0x448] sm:$0xff]
          %v4184 = vld [vmem:[#allocation2 + $0x450] sm:$0xff]
          %v4185 = vld [vmem:[#allocation2 + $0x458] sm:$0xff]
          %v4186 = vld [vmem:[#allocation2 + $0x460] sm:$0xff]
          %v4187 = vld [vmem:[#allocation2 + $0x468] sm:$0xff]
          %v4188 = vld [vmem:[#allocation2 + $0x470] sm:$0xff]
          %v4189 = vld [vmem:[#allocation2 + $0x478] sm:$0xff]
          %v4190 = vld [vmem:[#allocation2 + $0x480] sm:$0xff]
          %v4191 = vld [vmem:[#allocation2 + $0x488] sm:$0xff]
          %v4192 = vld [vmem:[#allocation2 + $0x490] sm:$0xff]
          %v4193 = vld [vmem:[#allocation2 + $0x498] sm:$0xff]
          %v4194 = vld [vmem:[#allocation2 + $0x4a0] sm:$0xff]
          %v4195 = vld [vmem:[#allocation2 + $0x4a8] sm:$0xff]
          %v4196 = vld [vmem:[#allocation2 + $0x4b0] sm:$0xff]
          %v4197 = vld [vmem:[#allocation2 + $0x4b8] sm:$0xff]
          %v4198 = vld [vmem:[#allocation2 + $0x4c0] sm:$0xff]
          %v4199 = vld [vmem:[#allocation2 + $0x4c8] sm:$0xff]
          %v4200 = vld [vmem:[#allocation2 + $0x4d0] sm:$0xff]
          %v4201 = vld [vmem:[#allocation2 + $0x4d8] sm:$0xff]
          %v4202 = vld [vmem:[#allocation2 + $0x4e0] sm:$0xff]
          %v4203 = vld [vmem:[#allocation2 + $0x4e8] sm:$0xff]
          %v4204 = vld [vmem:[#allocation2 + $0x4f0] sm:$0xff]
          %v4205 = vld [vmem:[#allocation2 + $0x4f8] sm:$0xff]
          %v4206 = vld [vmem:[#allocation2 + $0x500] sm:$0xff]
          %v4207 = vld [vmem:[#allocation2 + $0x508] sm:$0xff]
          %v4208 = vld [vmem:[#allocation2 + $0x510] sm:$0xff]
          %v4209 = vld [vmem:[#allocation2 + $0x518] sm:$0xff]
          %v4210 = vld [vmem:[#allocation2 + $0x520] sm:$0xff]
          %v4211 = vld [vmem:[#allocation2 + $0x528] sm:$0xff]
          %v4212 = vld [vmem:[#allocation2 + $0x530] sm:$0xff]
          %v4213 = vld [vmem:[#allocation2 + $0x538] sm:$0xff]
          %v4214 = vld [vmem:[#allocation2 + $0x540] sm:$0xff]
          %v4215 = vld [vmem:[#allocation2 + $0x548] sm:$0xff]
          %v4216 = vld [vmem:[#allocation2 + $0x550] sm:$0xff]
          %v4217 = vld [vmem:[#allocation2 + $0x558] sm:$0xff]
          %v4218 = vld [vmem:[#allocation2 + $0x560] sm:$0xff]
          %v4219 = vld [vmem:[#allocation2 + $0x568] sm:$0xff]
          %v4220 = vld [vmem:[#allocation2 + $0x570] sm:$0xff]
          %v4221 = vld [vmem:[#allocation2 + $0x578] sm:$0xff]
          %v4222 = vld [vmem:[#allocation2 + $0x580] sm:$0xff]
          %v4223 = vld [vmem:[#allocation2 + $0x588] sm:$0xff]
          %v4224 = vld [vmem:[#allocation2 + $0x590] sm:$0xff]
          %v4225 = vld [vmem:[#allocation2 + $0x598] sm:$0xff]
          %v4226 = vld [vmem:[#allocation2 + $0x5a0] sm:$0xff]
          %v4227 = vld [vmem:[#allocation2 + $0x5a8] sm:$0xff]
          %v4228 = vld [vmem:[#allocation2 + $0x5b0] sm:$0xff]
          %v4229 = vld [vmem:[#allocation2 + $0x5b8] sm:$0xff]
          %v4230 = vld [vmem:[#allocation2 + $0x5c0] sm:$0xff]
          %v4231 = vld [vmem:[#allocation2 + $0x5c8] sm:$0xff]
          %v4232 = vld [vmem:[#allocation2 + $0x5d0] sm:$0xff]
          %v4233 = vld [vmem:[#allocation2 + $0x5d8] sm:$0xff]
          %v4234 = vld [vmem:[#allocation2 + $0x5e0] sm:$0xff]
          %v4235 = vld [vmem:[#allocation2 + $0x5e8] sm:$0xff]
          %v4236 = vld [vmem:[#allocation2 + $0x5f0] sm:$0xff]
          %v4237 = vld [vmem:[#allocation2 + $0x5f8] sm:$0xff]
          %v4238 = vld [vmem:[#allocation8] sm:$0x7]
          %v4240 = vperm.slane %v4238, 0
          %v4241 = vperm.slane %v4238, 1
          %v4242 = vperm.slane %v4238, 2
          %v4246 = vadd.f32 %v4046, %v4240
          %v4247 = vadd.f32 %v4047, %v4241
          %v4248 = vadd.f32 %v4048, %v4242
          %v4249 = vadd.f32 %v4049, %v4240
          %v4250 = vadd.f32 %v4050, %v4241
          %v4251 = vadd.f32 %v4051, %v4242
          %v4252 = vadd.f32 %v4052, %v4240
          %v4253 = vadd.f32 %v4053, %v4241
          %v4254 = vadd.f32 %v4054, %v4242
          %v4255 = vadd.f32 %v4055, %v4240
          %v4256 = vadd.f32 %v4056, %v4241
          %v4257 = vadd.f32 %v4057, %v4242
          %v4258 = vadd.f32 %v4058, %v4240
          %v4259 = vadd.f32 %v4059, %v4241
          %v4260 = vadd.f32 %v4060, %v4242
          %v4261 = vadd.f32 %v4061, %v4240
          %v4262 = vadd.f32 %v4062, %v4241
          %v4263 = vadd.f32 %v4063, %v4242
          %v4264 = vadd.f32 %v4064, %v4240
          %v4265 = vadd.f32 %v4065, %v4241
          %v4266 = vadd.f32 %v4066, %v4242
          %v4267 = vadd.f32 %v4067, %v4240
          %v4268 = vadd.f32 %v4068, %v4241
          %v4269 = vadd.f32 %v4069, %v4242
          %v4270 = vadd.f32 %v4070, %v4240
          %v4271 = vadd.f32 %v4071, %v4241
          %v4272 = vadd.f32 %v4072, %v4242
          %v4273 = vadd.f32 %v4073, %v4240
          %v4274 = vadd.f32 %v4074, %v4241
          %v4275 = vadd.f32 %v4075, %v4242
          %v4276 = vadd.f32 %v4076, %v4240
          %v4277 = vadd.f32 %v4077, %v4241
          %v4278 = vadd.f32 %v4078, %v4242
          %v4279 = vadd.f32 %v4079, %v4240
          %v4280 = vadd.f32 %v4080, %v4241
          %v4281 = vadd.f32 %v4081, %v4242
          %v4282 = vadd.f32 %v4082, %v4240
          %v4283 = vadd.f32 %v4083, %v4241
          %v4284 = vadd.f32 %v4084, %v4242
          %v4285 = vadd.f32 %v4085, %v4240
          %v4286 = vadd.f32 %v4086, %v4241
          %v4287 = vadd.f32 %v4087, %v4242
          %v4288 = vadd.f32 %v4088, %v4240
          %v4289 = vadd.f32 %v4089, %v4241
          %v4290 = vadd.f32 %v4090, %v4242
          %v4291 = vadd.f32 %v4091, %v4240
          %v4292 = vadd.f32 %v4092, %v4241
          %v4293 = vadd.f32 %v4093, %v4242
          %v4294 = vadd.f32 %v4094, %v4240
          %v4295 = vadd.f32 %v4095, %v4241
          %v4296 = vadd.f32 %v4096, %v4242
          %v4297 = vadd.f32 %v4097, %v4240
          %v4298 = vadd.f32 %v4098, %v4241
          %v4299 = vadd.f32 %v4099, %v4242
          %v4300 = vadd.f32 %v4100, %v4240
          %v4301 = vadd.f32 %v4101, %v4241
          %v4302 = vadd.f32 %v4102, %v4242
          %v4303 = vadd.f32 %v4103, %v4240
          %v4304 = vadd.f32 %v4104, %v4241
          %v4305 = vadd.f32 %v4105, %v4242
          %v4306 = vadd.f32 %v4106, %v4240
          %v4307 = vadd.f32 %v4107, %v4241
          %v4308 = vadd.f32 %v4108, %v4242
          %v4309 = vadd.f32 %v4109, %v4240
          %v4310 = vadd.f32 %v4110, %v4241
          %v4311 = vadd.f32 %v4111, %v4242
          %v4312 = vadd.f32 %v4112, %v4240
          %v4313 = vadd.f32 %v4113, %v4241
          %v4314 = vadd.f32 %v4114, %v4242
          %v4315 = vadd.f32 %v4115, %v4240
          %v4316 = vadd.f32 %v4116, %v4241
          %v4317 = vadd.f32 %v4117, %v4242
          %v4318 = vadd.f32 %v4118, %v4240
          %v4319 = vadd.f32 %v4119, %v4241
          %v4320 = vadd.f32 %v4120, %v4242
          %v4321 = vadd.f32 %v4121, %v4240
          %v4322 = vadd.f32 %v4122, %v4241
          %v4323 = vadd.f32 %v4123, %v4242
          %v4324 = vadd.f32 %v4124, %v4240
          %v4325 = vadd.f32 %v4125, %v4241
          %v4326 = vadd.f32 %v4126, %v4242
          %v4327 = vadd.f32 %v4127, %v4240
          %v4328 = vadd.f32 %v4128, %v4241
          %v4329 = vadd.f32 %v4129, %v4242
          %v4330 = vadd.f32 %v4130, %v4240
          %v4331 = vadd.f32 %v4131, %v4241
          %v4332 = vadd.f32 %v4132, %v4242
          %v4333 = vadd.f32 %v4133, %v4240
          %v4334 = vadd.f32 %v4134, %v4241
          %v4335 = vadd.f32 %v4135, %v4242
          %v4336 = vadd.f32 %v4136, %v4240
          %v4337 = vadd.f32 %v4137, %v4241
          %v4338 = vadd.f32 %v4138, %v4242
          %v4339 = vadd.f32 %v4139, %v4240
          %v4340 = vadd.f32 %v4140, %v4241
          %v4341 = vadd.f32 %v4141, %v4242
          %v4342 = vadd.f32 %v4142, %v4240
          %v4343 = vadd.f32 %v4143, %v4241
          %v4344 = vadd.f32 %v4144, %v4242
          %v4345 = vadd.f32 %v4145, %v4240
          %v4346 = vadd.f32 %v4146, %v4241
          %v4347 = vadd.f32 %v4147, %v4242
          %v4348 = vadd.f32 %v4148, %v4240
          %v4349 = vadd.f32 %v4149, %v4241
          %v4350 = vadd.f32 %v4150, %v4242
          %v4351 = vadd.f32 %v4151, %v4240
          %v4352 = vadd.f32 %v4152, %v4241
          %v4353 = vadd.f32 %v4153, %v4242
          %v4354 = vadd.f32 %v4154, %v4240
          %v4355 = vadd.f32 %v4155, %v4241
          %v4356 = vadd.f32 %v4156, %v4242
          %v4357 = vadd.f32 %v4157, %v4240
          %v4358 = vadd.f32 %v4158, %v4241
          %v4359 = vadd.f32 %v4159, %v4242
          %v4360 = vadd.f32 %v4160, %v4240
          %v4361 = vadd.f32 %v4161, %v4241
          %v4362 = vadd.f32 %v4162, %v4242
          %v4363 = vadd.f32 %v4163, %v4240
          %v4364 = vadd.f32 %v4164, %v4241
          %v4365 = vadd.f32 %v4165, %v4242
          %v4366 = vadd.f32 %v4166, %v4240
          %v4367 = vadd.f32 %v4167, %v4241
          %v4368 = vadd.f32 %v4168, %v4242
          %v4369 = vadd.f32 %v4169, %v4240
          %v4370 = vadd.f32 %v4170, %v4241
          %v4371 = vadd.f32 %v4171, %v4242
          %v4372 = vadd.f32 %v4172, %v4240
          %v4373 = vadd.f32 %v4173, %v4241
          %v4374 = vadd.f32 %v4174, %v4242
          %v4375 = vadd.f32 %v4175, %v4240
          %v4376 = vadd.f32 %v4176, %v4241
          %v4377 = vadd.f32 %v4177, %v4242
          %v4378 = vadd.f32 %v4178, %v4240
          %v4379 = vadd.f32 %v4179, %v4241
          %v4380 = vadd.f32 %v4180, %v4242
          %v4381 = vadd.f32 %v4181, %v4240
          %v4382 = vadd.f32 %v4182, %v4241
          %v4383 = vadd.f32 %v4183, %v4242
          %v4384 = vadd.f32 %v4184, %v4240
          %v4385 = vadd.f32 %v4185, %v4241
          %v4386 = vadd.f32 %v4186, %v4242
          %v4387 = vadd.f32 %v4187, %v4240
          %v4388 = vadd.f32 %v4188, %v4241
          %v4389 = vadd.f32 %v4189, %v4242
          %v4390 = vadd.f32 %v4190, %v4240
          %v4391 = vadd.f32 %v4191, %v4241
          %v4392 = vadd.f32 %v4192, %v4242
          %v4393 = vadd.f32 %v4193, %v4240
          %v4394 = vadd.f32 %v4194, %v4241
          %v4395 = vadd.f32 %v4195, %v4242
          %v4396 = vadd.f32 %v4196, %v4240
          %v4397 = vadd.f32 %v4197, %v4241
          %v4398 = vadd.f32 %v4198, %v4242
          %v4399 = vadd.f32 %v4199, %v4240
          %v4400 = vadd.f32 %v4200, %v4241
          %v4401 = vadd.f32 %v4201, %v4242
          %v4402 = vadd.f32 %v4202, %v4240
          %v4403 = vadd.f32 %v4203, %v4241
          %v4404 = vadd.f32 %v4204, %v4242
          %v4405 = vadd.f32 %v4205, %v4240
          %v4406 = vadd.f32 %v4206, %v4241
          %v4407 = vadd.f32 %v4207, %v4242
          %v4408 = vadd.f32 %v4208, %v4240
          %v4409 = vadd.f32 %v4209, %v4241
          %v4410 = vadd.f32 %v4210, %v4242
          %v4411 = vadd.f32 %v4211, %v4240
          %v4412 = vadd.f32 %v4212, %v4241
          %v4413 = vadd.f32 %v4213, %v4242
          %v4414 = vadd.f32 %v4214, %v4240
          %v4415 = vadd.f32 %v4215, %v4241
          %v4416 = vadd.f32 %v4216, %v4242
          %v4417 = vadd.f32 %v4217, %v4240
          %v4418 = vadd.f32 %v4218, %v4241
          %v4419 = vadd.f32 %v4219, %v4242
          %v4420 = vadd.f32 %v4220, %v4240
          %v4421 = vadd.f32 %v4221, %v4241
          %v4422 = vadd.f32 %v4222, %v4242
          %v4423 = vadd.f32 %v4223, %v4240
          %v4424 = vadd.f32 %v4224, %v4241
          %v4425 = vadd.f32 %v4225, %v4242
          %v4426 = vadd.f32 %v4226, %v4240
          %v4427 = vadd.f32 %v4227, %v4241
          %v4428 = vadd.f32 %v4228, %v4242
          %v4429 = vadd.f32 %v4229, %v4240
          %v4430 = vadd.f32 %v4230, %v4241
          %v4431 = vadd.f32 %v4231, %v4242
          %v4432 = vadd.f32 %v4232, %v4240
          %v4433 = vadd.f32 %v4233, %v4241
          %v4434 = vadd.f32 %v4234, %v4242
          %v4435 = vadd.f32 %v4235, %v4240
          %v4436 = vadd.f32 %v4236, %v4241
          %v4437 = vadd.f32 %v4237, %v4242
          %4438 = vst [vmem:[%s292] sm:$0xff] %v4246
          %4439 = vst [vmem:[%s292 + $0x8] sm:$0xff] %v4247
          %4440 = vst [vmem:[%s292 + $0x10] sm:$0xff] %v4248
          %4441 = vst [vmem:[%s292 + $0x18] sm:$0xff] %v4249
          %4442 = vst [vmem:[%s292 + $0x20] sm:$0xff] %v4250
          %4443 = vst [vmem:[%s292 + $0x28] sm:$0xff] %v4251
          %4444 = vst [vmem:[%s292 + $0x30] sm:$0xff] %v4252
          %4445 = vst [vmem:[%s292 + $0x38] sm:$0xff] %v4253
          %4446 = vst [vmem:[%s292 + $0x40] sm:$0xff] %v4254
          %4447 = vst [vmem:[%s292 + $0x48] sm:$0xff] %v4255
          %4448 = vst [vmem:[%s292 + $0x50] sm:$0xff] %v4256
          %4449 = vst [vmem:[%s292 + $0x58] sm:$0xff] %v4257
          %4450 = vst [vmem:[%s292 + $0x60] sm:$0xff] %v4258
          %4451 = vst [vmem:[%s292 + $0x68] sm:$0xff] %v4259
          %4452 = vst [vmem:[%s292 + $0x70] sm:$0xff] %v4260
          %4453 = vst [vmem:[%s292 + $0x78] sm:$0xff] %v4261
          %4454 = vst [vmem:[%s292 + $0x80] sm:$0xff] %v4262
          %4455 = vst [vmem:[%s292 + $0x88] sm:$0xff] %v4263
          %4456 = vst [vmem:[%s292 + $0x90] sm:$0xff] %v4264
          %4457 = vst [vmem:[%s292 + $0x98] sm:$0xff] %v4265
          %4458 = vst [vmem:[%s292 + $0xa0] sm:$0xff] %v4266
          %4459 = vst [vmem:[%s292 + $0xa8] sm:$0xff] %v4267
          %4460 = vst [vmem:[%s292 + $0xb0] sm:$0xff] %v4268
          %4461 = vst [vmem:[%s292 + $0xb8] sm:$0xff] %v4269
          %4462 = vst [vmem:[%s292 + $0xc0] sm:$0xff] %v4270
          %4463 = vst [vmem:[%s292 + $0xc8] sm:$0xff] %v4271
          %4464 = vst [vmem:[%s292 + $0xd0] sm:$0xff] %v4272
          %4465 = vst [vmem:[%s292 + $0xd8] sm:$0xff] %v4273
          %4466 = vst [vmem:[%s292 + $0xe0] sm:$0xff] %v4274
          %4467 = vst [vmem:[%s292 + $0xe8] sm:$0xff] %v4275
          %4468 = vst [vmem:[%s292 + $0xf0] sm:$0xff] %v4276
          %4469 = vst [vmem:[%s292 + $0xf8] sm:$0xff] %v4277
          %4470 = vst [vmem:[%s292 + $0x100] sm:$0xff] %v4278
          %4471 = vst [vmem:[%s292 + $0x108] sm:$0xff] %v4279
          %4472 = vst [vmem:[%s292 + $0x110] sm:$0xff] %v4280
          %4473 = vst [vmem:[%s292 + $0x118] sm:$0xff] %v4281
          %4474 = vst [vmem:[%s292 + $0x120] sm:$0xff] %v4282
          %4475 = vst [vmem:[%s292 + $0x128] sm:$0xff] %v4283
          %4476 = vst [vmem:[%s292 + $0x130] sm:$0xff] %v4284
          %4477 = vst [vmem:[%s292 + $0x138] sm:$0xff] %v4285
          %4478 = vst [vmem:[%s292 + $0x140] sm:$0xff] %v4286
          %4479 = vst [vmem:[%s292 + $0x148] sm:$0xff] %v4287
          %4480 = vst [vmem:[%s292 + $0x150] sm:$0xff] %v4288
          %4481 = vst [vmem:[%s292 + $0x158] sm:$0xff] %v4289
          %4482 = vst [vmem:[%s292 + $0x160] sm:$0xff] %v4290
          %4483 = vst [vmem:[%s292 + $0x168] sm:$0xff] %v4291
          %4484 = vst [vmem:[%s292 + $0x170] sm:$0xff] %v4292
          %4485 = vst [vmem:[%s292 + $0x178] sm:$0xff] %v4293
          %4486 = vst [vmem:[%s292 + $0x180] sm:$0xff] %v4294
          %4487 = vst [vmem:[%s292 + $0x188] sm:$0xff] %v4295
          %4488 = vst [vmem:[%s292 + $0x190] sm:$0xff] %v4296
          %4489 = vst [vmem:[%s292 + $0x198] sm:$0xff] %v4297
          %4490 = vst [vmem:[%s292 + $0x1a0] sm:$0xff] %v4298
          %4491 = vst [vmem:[%s292 + $0x1a8] sm:$0xff] %v4299
          %4492 = vst [vmem:[%s292 + $0x1b0] sm:$0xff] %v4300
          %4493 = vst [vmem:[%s292 + $0x1b8] sm:$0xff] %v4301
          %4494 = vst [vmem:[%s292 + $0x1c0] sm:$0xff] %v4302
          %4495 = vst [vmem:[%s292 + $0x1c8] sm:$0xff] %v4303
          %4496 = vst [vmem:[%s292 + $0x1d0] sm:$0xff] %v4304
          %4497 = vst [vmem:[%s292 + $0x1d8] sm:$0xff] %v4305
          %4498 = vst [vmem:[%s292 + $0x1e0] sm:$0xff] %v4306
          %4499 = vst [vmem:[%s292 + $0x1e8] sm:$0xff] %v4307
          %4500 = vst [vmem:[%s292 + $0x1f0] sm:$0xff] %v4308
          %4501 = vst [vmem:[%s292 + $0x1f8] sm:$0xff] %v4309
          %4502 = vst [vmem:[%s292 + $0x200] sm:$0xff] %v4310
          %4503 = vst [vmem:[%s292 + $0x208] sm:$0xff] %v4311
          %4504 = vst [vmem:[%s292 + $0x210] sm:$0xff] %v4312
          %4505 = vst [vmem:[%s292 + $0x218] sm:$0xff] %v4313
          %4506 = vst [vmem:[%s292 + $0x220] sm:$0xff] %v4314
          %4507 = vst [vmem:[%s292 + $0x228] sm:$0xff] %v4315
          %4508 = vst [vmem:[%s292 + $0x230] sm:$0xff] %v4316
          %4509 = vst [vmem:[%s292 + $0x238] sm:$0xff] %v4317
          %4510 = vst [vmem:[%s292 + $0x240] sm:$0xff] %v4318
          %4511 = vst [vmem:[%s292 + $0x248] sm:$0xff] %v4319
          %4512 = vst [vmem:[%s292 + $0x250] sm:$0xff] %v4320
          %4513 = vst [vmem:[%s292 + $0x258] sm:$0xff] %v4321
          %4514 = vst [vmem:[%s292 + $0x260] sm:$0xff] %v4322
          %4515 = vst [vmem:[%s292 + $0x268] sm:$0xff] %v4323
          %4516 = vst [vmem:[%s292 + $0x270] sm:$0xff] %v4324
          %4517 = vst [vmem:[%s292 + $0x278] sm:$0xff] %v4325
          %4518 = vst [vmem:[%s292 + $0x280] sm:$0xff] %v4326
          %4519 = vst [vmem:[%s292 + $0x288] sm:$0xff] %v4327
          %4520 = vst [vmem:[%s292 + $0x290] sm:$0xff] %v4328
          %4521 = vst [vmem:[%s292 + $0x298] sm:$0xff] %v4329
          %4522 = vst [vmem:[%s292 + $0x2a0] sm:$0xff] %v4330
          %4523 = vst [vmem:[%s292 + $0x2a8] sm:$0xff] %v4331
          %4524 = vst [vmem:[%s292 + $0x2b0] sm:$0xff] %v4332
          %4525 = vst [vmem:[%s292 + $0x2b8] sm:$0xff] %v4333
          %4526 = vst [vmem:[%s292 + $0x2c0] sm:$0xff] %v4334
          %4527 = vst [vmem:[%s292 + $0x2c8] sm:$0xff] %v4335
          %4528 = vst [vmem:[%s292 + $0x2d0] sm:$0xff] %v4336
          %4529 = vst [vmem:[%s292 + $0x2d8] sm:$0xff] %v4337
          %4530 = vst [vmem:[%s292 + $0x2e0] sm:$0xff] %v4338
          %4531 = vst [vmem:[%s292 + $0x2e8] sm:$0xff] %v4339
          %4532 = vst [vmem:[%s292 + $0x2f0] sm:$0xff] %v4340
          %4533 = vst [vmem:[%s292 + $0x2f8] sm:$0xff] %v4341
          %4534 = vst [vmem:[%s292 + $0x300] sm:$0xff] %v4342
          %4535 = vst [vmem:[%s292 + $0x308] sm:$0xff] %v4343
          %4536 = vst [vmem:[%s292 + $0x310] sm:$0xff] %v4344
          %4537 = vst [vmem:[%s292 + $0x318] sm:$0xff] %v4345
          %4538 = vst [vmem:[%s292 + $0x320] sm:$0xff] %v4346
          %4539 = vst [vmem:[%s292 + $0x328] sm:$0xff] %v4347
          %4540 = vst [vmem:[%s292 + $0x330] sm:$0xff] %v4348
          %4541 = vst [vmem:[%s292 + $0x338] sm:$0xff] %v4349
          %4542 = vst [vmem:[%s292 + $0x340] sm:$0xff] %v4350
          %4543 = vst [vmem:[%s292 + $0x348] sm:$0xff] %v4351
          %4544 = vst [vmem:[%s292 + $0x350] sm:$0xff] %v4352
          %4545 = vst [vmem:[%s292 + $0x358] sm:$0xff] %v4353
          %4546 = vst [vmem:[%s292 + $0x360] sm:$0xff] %v4354
          %4547 = vst [vmem:[%s292 + $0x368] sm:$0xff] %v4355
          %4548 = vst [vmem:[%s292 + $0x370] sm:$0xff] %v4356
          %4549 = vst [vmem:[%s292 + $0x378] sm:$0xff] %v4357
          %4550 = vst [vmem:[%s292 + $0x380] sm:$0xff] %v4358
          %4551 = vst [vmem:[%s292 + $0x388] sm:$0xff] %v4359
          %4552 = vst [vmem:[%s292 + $0x390] sm:$0xff] %v4360
          %4553 = vst [vmem:[%s292 + $0x398] sm:$0xff] %v4361
          %4554 = vst [vmem:[%s292 + $0x3a0] sm:$0xff] %v4362
          %4555 = vst [vmem:[%s292 + $0x3a8] sm:$0xff] %v4363
          %4556 = vst [vmem:[%s292 + $0x3b0] sm:$0xff] %v4364
          %4557 = vst [vmem:[%s292 + $0x3b8] sm:$0xff] %v4365
          %4558 = vst [vmem:[%s292 + $0x3c0] sm:$0xff] %v4366
          %4559 = vst [vmem:[%s292 + $0x3c8] sm:$0xff] %v4367
          %4560 = vst [vmem:[%s292 + $0x3d0] sm:$0xff] %v4368
          %4561 = vst [vmem:[%s292 + $0x3d8] sm:$0xff] %v4369
          %4562 = vst [vmem:[%s292 + $0x3e0] sm:$0xff] %v4370
          %4563 = vst [vmem:[%s292 + $0x3e8] sm:$0xff] %v4371
          %4564 = vst [vmem:[%s292 + $0x3f0] sm:$0xff] %v4372
          %4565 = vst [vmem:[%s292 + $0x3f8] sm:$0xff] %v4373
          %4566 = vst [vmem:[%s292 + $0x400] sm:$0xff] %v4374
          %4567 = vst [vmem:[%s292 + $0x408] sm:$0xff] %v4375
          %4568 = vst [vmem:[%s292 + $0x410] sm:$0xff] %v4376
          %4569 = vst [vmem:[%s292 + $0x418] sm:$0xff] %v4377
          %4570 = vst [vmem:[%s292 + $0x420] sm:$0xff] %v4378
          %4571 = vst [vmem:[%s292 + $0x428] sm:$0xff] %v4379
          %4572 = vst [vmem:[%s292 + $0x430] sm:$0xff] %v4380
          %4573 = vst [vmem:[%s292 + $0x438] sm:$0xff] %v4381
          %4574 = vst [vmem:[%s292 + $0x440] sm:$0xff] %v4382
          %4575 = vst [vmem:[%s292 + $0x448] sm:$0xff] %v4383
          %4576 = vst [vmem:[%s292 + $0x450] sm:$0xff] %v4384
          %4577 = vst [vmem:[%s292 + $0x458] sm:$0xff] %v4385
          %4578 = vst [vmem:[%s292 + $0x460] sm:$0xff] %v4386
          %4579 = vst [vmem:[%s292 + $0x468] sm:$0xff] %v4387
          %4580 = vst [vmem:[%s292 + $0x470] sm:$0xff] %v4388
          %4581 = vst [vmem:[%s292 + $0x478] sm:$0xff] %v4389
          %4582 = vst [vmem:[%s292 + $0x480] sm:$0xff] %v4390
          %4583 = vst [vmem:[%s292 + $0x488] sm:$0xff] %v4391
          %4584 = vst [vmem:[%s292 + $0x490] sm:$0xff] %v4392
          %4585 = vst [vmem:[%s292 + $0x498] sm:$0xff] %v4393
          %4586 = vst [vmem:[%s292 + $0x4a0] sm:$0xff] %v4394
          %4587 = vst [vmem:[%s292 + $0x4a8] sm:$0xff] %v4395
          %4588 = vst [vmem:[%s292 + $0x4b0] sm:$0xff] %v4396
          %4589 = vst [vmem:[%s292 + $0x4b8] sm:$0xff] %v4397
          %4590 = vst [vmem:[%s292 + $0x4c0] sm:$0xff] %v4398
          %4591 = vst [vmem:[%s292 + $0x4c8] sm:$0xff] %v4399
          %4592 = vst [vmem:[%s292 + $0x4d0] sm:$0xff] %v4400
          %4593 = vst [vmem:[%s292 + $0x4d8] sm:$0xff] %v4401
          %4594 = vst [vmem:[%s292 + $0x4e0] sm:$0xff] %v4402
          %4595 = vst [vmem:[%s292 + $0x4e8] sm:$0xff] %v4403
          %4596 = vst [vmem:[%s292 + $0x4f0] sm:$0xff] %v4404
          %4597 = vst [vmem:[%s292 + $0x4f8] sm:$0xff] %v4405
          %4598 = vst [vmem:[%s292 + $0x500] sm:$0xff] %v4406
          %4599 = vst [vmem:[%s292 + $0x508] sm:$0xff] %v4407
          %4600 = vst [vmem:[%s292 + $0x510] sm:$0xff] %v4408
          %4601 = vst [vmem:[%s292 + $0x518] sm:$0xff] %v4409
          %4602 = vst [vmem:[%s292 + $0x520] sm:$0xff] %v4410
          %4603 = vst [vmem:[%s292 + $0x528] sm:$0xff] %v4411
          %4604 = vst [vmem:[%s292 + $0x530] sm:$0xff] %v4412
          %4605 = vst [vmem:[%s292 + $0x538] sm:$0xff] %v4413
          %4606 = vst [vmem:[%s292 + $0x540] sm:$0xff] %v4414
          %4607 = vst [vmem:[%s292 + $0x548] sm:$0xff] %v4415
          %4608 = vst [vmem:[%s292 + $0x550] sm:$0xff] %v4416
          %4609 = vst [vmem:[%s292 + $0x558] sm:$0xff] %v4417
          %4610 = vst [vmem:[%s292 + $0x560] sm:$0xff] %v4418
          %4611 = vst [vmem:[%s292 + $0x568] sm:$0xff] %v4419
          %4612 = vst [vmem:[%s292 + $0x570] sm:$0xff] %v4420
          %4613 = vst [vmem:[%s292 + $0x578] sm:$0xff] %v4421
          %4614 = vst [vmem:[%s292 + $0x580] sm:$0xff] %v4422
          %4615 = vst [vmem:[%s292 + $0x588] sm:$0xff] %v4423
          %4616 = vst [vmem:[%s292 + $0x590] sm:$0xff] %v4424
          %4617 = vst [vmem:[%s292 + $0x598] sm:$0xff] %v4425
          %4618 = vst [vmem:[%s292 + $0x5a0] sm:$0xff] %v4426
          %4619 = vst [vmem:[%s292 + $0x5a8] sm:$0xff] %v4427
          %4620 = vst [vmem:[%s292 + $0x5b0] sm:$0xff] %v4428
          %4621 = vst [vmem:[%s292 + $0x5b8] sm:$0xff] %v4429
          %4622 = vst [vmem:[%s292 + $0x5c0] sm:$0xff] %v4430
          %4623 = vst [vmem:[%s292 + $0x5c8] sm:$0xff] %v4431
          %4624 = vst [vmem:[%s292 + $0x5d0] sm:$0xff] %v4432
          %4625 = vst [vmem:[%s292 + $0x5d8] sm:$0xff] %v4433
          %4626 = vst [vmem:[%s292 + $0x5e0] sm:$0xff] %v4434
          %4627 = vst [vmem:[%s292 + $0x5e8] sm:$0xff] %v4435
          %4628 = vst [vmem:[%s292 + $0x5f0] sm:$0xff] %v4436
          %4629 = vst [vmem:[%s292 + $0x5f8] sm:$0xff] %v4437
        $region56: #{tpu_custom_call.1} parent=31 // pred_fallthru
          _
        %s4630 = sand.u32 %s134, 1
        %s4631 = scalar_lea.sflag [#allocation5], %s4630
        %s4632 = sand.u32 %s134, 1
        %s4633 = smul.addr %s4632, 1536
        %s4634 = scalar_lea.vmem [#allocation9], %s4633
        // Predicated region
        $region57: #{tpu_custom_call.1} parent=31 // pred_check
          %p4635 = pneg %p144
        $region58: #{tpu_custom_call.1} parent=31 // pred_check_branch
          %4637 = sbr.rel (%p4635) target = $region60
        $region59: #{tpu_custom_call.1} parent=31 // pred_region
          %s4638 = smul.u32 64, %s28
          %s4639 = smul.u32 3, %s29
          %s4640 = ssub.s32 80, %s4638
          %p4641 = scmp.lt.s32.totalorder %s4640, 64
          %s4642 = scalar_select %p4641, %s4640, 64
          %s4643 = smul.u32 8, %s4642
          %s4644 = smul.u32 %s4643, 3
          %s4645 = ssub.s32 1536, %s4644
          %s4646 = sshll.u32 %s4645, 4
          %4647 = vsyncadd %s4631, %s4646
          %p4648 = scmp.ne.s32.totalorder 0, %s4644
          %s4649 = smul.addr %s4638, 3
          %s4650 = sadd.s32 %s4639, %s4649
          %s4651 = smul.addr %s4650, 8
          %s4652 = scalar_lea.hbm %s3, %s4651
          %s4653 = smul.u32 24, %s4642
          %s4654 = sshll.u32 %s4634, 4
          %s4655 = int_to_ptr.vmem [resolvable:$true] %s4654
          %s4656 = sshll.u32 %s4652, 4
          %s4657 = int_to_ptr.hbm [resolvable:$true] %s4656
          %s4658 = sshll.u32 %s4653, 4
          %4662 = dma.vmem_to_hbm [thread:$0]  (%p4648), %s4655, %s4658, %s4657, %s4631, 384, 384, 24
        $region60: #{tpu_custom_call.1} parent=31 // pred_fallthru
          _
      $region32: #{tpu_custom_call.1} parent=5 // pred_fallthru
        _
      %p4663 = scmp.le.s32.totalorder 2, %s18
      // Predicated region
      $region61: #{tpu_custom_call.1} parent=5 // pred_check
        %p4664 = pneg %p4663
      $region62: #{tpu_custom_call.1} parent=5 // pred_check_branch
        %4666 = sbr.rel (%p4664) target = $region64
      $region63: #{tpu_custom_call.1} parent=5 // pred_region
        %s4667 = ssub.s32 %s18, 2
        // Predicated region
        $region65: #{tpu_custom_call.1} parent=63 // pred_check
          %p4668 = pneg %p150
        $region66: #{tpu_custom_call.1} parent=63 // pred_check_branch
          %4670 = sbr.rel (%p4668) target = $region68
        $region67: #{tpu_custom_call.1} parent=63 // pred_region
          %s4671 = sand.u32 %s135, 1
          %s4672 = scalar_lea.sflag [#allocation5], %s4671
          %s4673 = sand.u32 %s135, 1
          %s4674 = smul.addr %s4673, 1536
          %s4675 = scalar_lea.vmem [#allocation9], %s4674
          %4677 = dma.done %s4672, 24576
        $region68: #{tpu_custom_call.1} parent=63 // pred_fallthru
          _
      $region64: #{tpu_custom_call.1} parent=5 // pred_fallthru
        _
    $region6: #{tpu_custom_call.1} parent=1 // loop_footer
      %s22 = sadd.s32 1, %s18
    $region7: #{tpu_custom_call.1} parent=1 // loop_footer_branch
      %17 = sbr.rel target = $region3
    $region8: #{tpu_custom_call.1} parent=1 // loop_exit
      _
    %4678 = vsyncpa [#allocation4], 1
    %s4679 = scalar_lea.sflag [#allocation4], 1
    %4680 = vsyncpa %s4679, 1
    %4681 = vsyncpa [#allocation7], 1
    %s4682 = scalar_lea.sflag [#allocation7], 1
    %4683 = vsyncpa %s4682, 1
    %4684 = vsyncpa [#allocation5], 1
    %s4685 = scalar_lea.sflag [#allocation5], 1
    %4686 = vsyncpa %s4685, 1

</llo_original>
